<compile_context>
chip_gen: v5e
topology: v5e:2x2
jax: 0.10.0
libtpu: 0.0.40
codegen_flags: <defaults>
</compile_context>

<pallas_src>
import numpy as np
import jax
import jax.numpy as jnp
from jax.experimental import pallas as pl
from jax.experimental.pallas import tpu as pltpu

NCLS = 6   # real classes
NCP = 8    # padded class rows (one full f32 sublane tile)


# ----------------------------------------------------------------------------
# trace-time (numpy) constant builders
# ----------------------------------------------------------------------------
def _interp_matrix_np(n_out, n_in):
    """1-D linear interpolation matrix, align_corners=True (PyTorch)."""
    if n_out == 1 or n_in == 1:
        src = np.zeros((n_out,), np.float64)
    else:
        src = np.arange(n_out, dtype=np.float64) * (n_in - 1) / (n_out - 1)
    lo = np.clip(np.floor(src).astype(np.int64), 0, n_in - 1)
    hi = np.clip(lo + 1, 0, n_in - 1)
    frac = (src - np.floor(src)).astype(np.float32)
    A = np.zeros((n_out, n_in), np.float32)
    A[np.arange(n_out), lo] += 1.0 - frac
    A[np.arange(n_out), hi] += frac
    return A


def _up_chain_np(n_out, n_in):
    """Composition of repeated 2x align_corners upsamples (matches applying
    nn.Upsample(scale_factor=2, align_corners=True) several times)."""
    A = np.eye(n_in, dtype=np.float32)
    cur = n_in
    while cur < n_out:
        A = _interp_matrix_np(cur * 2, cur) @ A
        cur *= 2
    return A


def _upsample_kron_np(hi_h, hi_w, lo_h, lo_w):
    """(lo_h*lo_w, hi_h*hi_w): x_flat @ U == chained-2x-upsampled x, flattened."""
    Ah = _up_chain_np(hi_h, lo_h)
    Aw = _up_chain_np(hi_w, lo_w)
    return np.kron(Ah, Aw).T.astype(np.float32)


def _final_resize_np(H, W, Hm, Wm, crop):
    """(H*W, Hm*Wm): crop the (H-2*crop)x(W-2*crop) valid window at offset
    (crop, crop) and bilinearly resize it (align_corners=True) to (Hm, Wm).
    NOTE: crop=3 hard-codes exactly three valid 3x3 convs before the resize."""
    Hv, Wv = H - 2 * crop, W - 2 * crop
    Ah = np.zeros((Hm, H), np.float32)
    Aw = np.zeros((Wm, W), np.float32)
    Ah[:, crop:crop + Hv] = _interp_matrix_np(Hm, Hv)
    Aw[:, crop:crop + Wv] = _interp_matrix_np(Wm, Wv)
    return np.kron(Ah, Aw).T.astype(np.float32)


def _tap_mask_np(H, W):
    """(9, H*W) 0/1 masks: tap t=(dy*3+dx) output pixel (y,x) is valid iff its
    source pixel (y+dy-1, x+dx-1) is inside the grid (zero padding)."""
    P = H * W
    m = np.zeros((9, P), np.float32)
    for t in range(9):
        dy, dx = divmod(t, 3)
        for p in range(P):
            y, x = divmod(p, W)
            ys, xs = y + dy - 1, x + dx - 1
            m[t, p] = 1.0 if (0 <= ys < H and 0 <= xs < W) else 0.0
    return m


# ----------------------------------------------------------------------------
# The single fused Pallas kernel (one grid step == one group of bb batch elems)
# ----------------------------------------------------------------------------
def _build_kernel(bb, C, H, W):
    P = H * W

    def kernel(f1_ref, f2_ref, f3_ref, f4_ref,
               u2_ref, u4_ref, u8_ref, ur_ref, tmask_ref,
               w1_ref, b1_ref, w2_ref, b2_ref, w3_ref, b3_ref,
               wo1_ref, bo1_ref, wo2_ref, bo2_ref, wof_ref, bof_ref,
               logits_ref):
        f32, bf16 = jnp.float32, jnp.bfloat16
        tmask = tmask_ref[...].astype(f32)                       # (9, P)

        def mm_shared(lhs_f32, rhs_ref):
            # batched "data @ shared constant" matmul (streams bb*rows per push)
            return jnp.dot(lhs_f32.astype(bf16), rhs_ref[...],
                           preferred_element_type=f32)

        def conv3x3(x, w_ref, b_ref, relu):
            # x: (Cin, P) f32 -> (Cout, P) f32.   3x3 / stride 1 / zero pad 1.
            # 9 shifted+masked copies via XLU rolls, stacked along sublanes,
            # then ONE MXU matmul with the tap-stacked (Cout, 9*Cin) weight.
            taps = []
            for t in range(9):
                if t == 4:                                        # centre tap
                    taps.append(x)
                    continue
                dy, dx = divmod(t, 3)
                shift = ((1 - dy) * W + (1 - dx)) % P
                taps.append(pltpu.roll(x, shift=shift, axis=1)
                            * tmask[t:t + 1, :])
            stacked = jnp.concatenate(taps, axis=0).astype(bf16)  # (9*Cin, P)
            acc = jnp.dot(w_ref[...], stacked, preferred_element_type=f32)
            acc = acc + b_ref[...]
            if relu:
                acc = jnp.maximum(acc, 0.0)
            return acc

        # --- upsample chains: one Kronecker matmul each, batched over bb ---
        f1a = f1_ref[0]                                           # (bb*C, P) f32
        f2u = mm_shared(f2_ref[0], u2_ref)                        # (bb*C, P)
        f3u = mm_shared(f3_ref[0], u4_ref)
        f4u = mm_shared(f4_ref[0], u8_ref)

        # --- per-batch conv chain (weights are the small LHS; loop is static) ---
        cls_rows = []
        for b in range(bb):
            sl = slice(b * C, (b + 1) * C)
            x = conv3x3(jnp.concatenate([f4u[sl], f3u[sl]], axis=0),
                        w1_ref, b1_ref, True)                     # fusion_conv1
            x = conv3x3(jnp.concatenate([x, f2u[sl]], axis=0),
                        w2_ref, b2_ref, True)                     # fusion_conv2
            x = conv3x3(jnp.concatenate([x, f1a[sl]], axis=0),
                        w3_ref, b3_ref, True)                     # fusion_conv3
            x = conv3x3(x, wo1_ref, bo1_ref, False)               # output_conv1
            x = conv3x3(x, wo2_ref, bo2_ref, False)               # output_conv2
            x = conv3x3(x, wof_ref, bof_ref, False)               # output_conv ∘ classify
            cls_rows.append(x)                                    # (NCP, P)

        # --- crop(3px ring) + bilinear resize to mask size (batched), then one
        #     lane-dense (bb*NCP, Pm) store ---
        cls_all = jnp.concatenate(cls_rows, axis=0)               # (bb*NCP, P)
        logits_ref[0] = mm_shared(cls_all, ur_ref)                # (bb*NCP, Pm)

    return kernel


# ----------------------------------------------------------------------------
# Parameters (deterministic synthetic init; BN folded in inference mode)
# ----------------------------------------------------------------------------
def init_params(key, channel):
    def nrm(k, shape, s=0.1):
        return jax.random.normal(k, shape, jnp.float32) * s

    def convbr_params(k, cin, cout):
        k1, k2, k3, k4, k5 = jax.random.split(k, 5)
        w = nrm(k1, (cout, cin, 3, 3))
        gamma = 1.0 + nrm(k2, (cout,), 0.05)
        beta = nrm(k3, (cout,), 0.05)
        rmean = nrm(k4, (cout,), 0.05)
        rvar = 1.0 + jnp.abs(nrm(k5, (cout,), 0.05))
        scale = gamma / jnp.sqrt(rvar + 1e-5)            # BN (eval) folded
        bias = beta - rmean * scale
        return dict(w=w, scale=scale, bias=bias)

    def conv_params(k, cin, cout, ksize):
        k1, k2 = jax.random.split(k)
        return dict(w=nrm(k1, (cout, cin, ksize, ksize)), b=nrm(k2, (cout,)))

    keys = jax.random.split(key, 8)
    c = channel
    # NOTE: fusion_conv (4c -> c) and global_pool exist in __init__ but are
    # unused in forward, so they are not materialized here.
    return dict(
        fc1=convbr_params(keys[0], 2 * c, c),
        fc2=convbr_params(keys[1], 2 * c, c),
        fc3=convbr_params(keys[2], 2 * c, c),
        out1=conv_params(keys[3], c, 2 * c, 3),
        out2=conv_params(keys[4], 2 * c, c, 3),
        out=conv_params(keys[5], c, c, 3),
        cls=conv_params(keys[6], c, 6, 1),
    )


# ----------------------------------------------------------------------------
# Forward pass wrapper (single pallas_call)
# ----------------------------------------------------------------------------
def _stack_conv_w(w, scale=None):
    """(Cout, Cin, 3, 3) -> (Cout, 9*Cin) f32, tap-major columns (t = ky*3+kx),
    optionally with a per-output-channel BN scale folded in."""
    if scale is not None:
        w = w * scale[:, None, None, None]
    co, ci = w.shape[0], w.shape[1]
    return jnp.transpose(w, (0, 2, 3, 1)).reshape(co, 9 * ci)


def _col(v):
    return v.reshape(-1, 1).astype(jnp.float32)


@jax.jit
def simple_decoder_forward(params, f1, f2, f3, f4, mask_gt):
    f32, bf16 = jnp.float32, jnp.bfloat16
    B, C, H, W = f1.shape
    H2, W2 = f2.shape[2], f2.shape[3]
    H3, W3 = f3.shape[2], f3.shape[3]
    H4, W4 = f4.shape[2], f4.shape[3]
    Hm, Wm = mask_gt.shape[2], mask_gt.shape[3]     # mask_gt used for size only
    P, Pm = H * W, Hm * Wm
    P2, P3, P4 = H2 * W2, H3 * W3, H4 * W4
    P4p = max(P4, 8)                                 # pad tiny K to 8 (exact)

    # batch grouping: stream bb*C rows per shared-RHS MXU push; grid over groups.
    # (For small B this prefers fewer, fatter grid steps; on v7x larger B still
    #  yields >=2 parallel steps for the second TensorCore.)
    bb = int(min(B, max(1, 64 // C)))
    G = -(-B // bb)
    Bp = G * bb

    # --- trace-time constants (folded into the executable) ---
    U2 = jnp.asarray(_upsample_kron_np(H, W, H2, W2), bf16)        # (P2, P)
    U4 = jnp.asarray(_upsample_kron_np(H, W, H3, W3), bf16)        # (P3, P)
    u8_np = _upsample_kron_np(H, W, H4, W4)
    if P4p > P4:
        u8_np = np.concatenate([u8_np, np.zeros((P4p - P4, P), np.float32)], 0)
    U8 = jnp.asarray(u8_np, bf16)                                  # (P4p, P)
    UR = jnp.asarray(_final_resize_np(H, W, Hm, Wm, crop=3), bf16)  # (P, Pm)
    TM = jnp.asarray(_tap_mask_np(H, W), bf16)                     # (9, P)

    # --- features: (B, C, h, w) -> (G, bb*C, h*w), zero-pad batch remainder ---
    def prep(f, pk, pad_to=None):
        x = f.reshape(B, C, pk)
        if pad_to is not None and pad_to > pk:
            x = jnp.pad(x, ((0, 0), (0, 0), (0, pad_to - pk)))
            pk = pad_to
        if Bp > B:
            x = jnp.pad(x, ((0, Bp - B), (0, 0), (0, 0)))
        return x.reshape(G, bb * C, pk)

    f1r, f2r = prep(f1, P), prep(f2, P2)
    f3r, f4r = prep(f3, P3), prep(f4, P4, P4p)

    # --- weights: BN scale folded, taps stacked along K, bf16 for the MXU ---
    W1 = _stack_conv_w(params["fc1"]["w"], params["fc1"]["scale"]).astype(bf16)
    W2 = _stack_conv_w(params["fc2"]["w"], params["fc2"]["scale"]).astype(bf16)
    W3 = _stack_conv_w(params["fc3"]["w"], params["fc3"]["scale"]).astype(bf16)
    B1, B2, B3 = (_col(params["fc1"]["bias"]), _col(params["fc2"]["bias"]),
                  _col(params["fc3"]["bias"]))
    WO1 = _stack_conv_w(params["out1"]["w"]).astype(bf16)
    WO2 = _stack_conv_w(params["out2"]["w"]).astype(bf16)
    BO1, BO2 = _col(params["out1"]["b"]), _col(params["out2"]["b"])
    # Fold the 1x1 classifier into the last 3x3 conv (both linear; the bilinear
    # resize commutes with the channel mix since its rows sum to 1), and pad the
    # class dim 6 -> 8 so stores/reductions stay on full (8,128) tiles.
    clsw = params["cls"]["w"].reshape(NCLS, C).astype(f32)
    clsw_p = jnp.concatenate([clsw, jnp.zeros((NCP - NCLS, C), f32)], axis=0)
    clsb_p = jnp.concatenate([params["cls"]["b"].astype(f32),
                              jnp.zeros((NCP - NCLS,), f32)], axis=0)
    WOF = (clsw_p @ _stack_conv_w(params["out"]["w"])).astype(bf16)      # (8, 9C)
    BOF = clsw_p @ _col(params["out"]["b"]) + clsb_p.reshape(NCP, 1)     # (8, 1)

    kernel = _build_kernel(bb, C, H, W)

    def feat_spec(shape):
        return pl.BlockSpec((1,) + tuple(shape[1:]), lambda g: (g, 0, 0))

    def const_spec(shape):
        # grid-invariant operand: single-buffered (no useless revolving buffer)
        return pl.BlockSpec(tuple(shape), lambda g: (0, 0),
                            pipeline_mode=pl.Buffered(1))

    consts = (U2, U4, U8, UR, TM,
              W1, B1, W2, B2, W3, B3, WO1, BO1, WO2, BO2, WOF, BOF)

    out = pl.pallas_call(
        kernel,
        out_shape=jax.ShapeDtypeStruct((G, bb * NCP, Pm), f32),
        grid=(G,),
        in_specs=[feat_spec(f1r.shape), feat_spec(f2r.shape),
                  feat_spec(f3r.shape), feat_spec(f4r.shape)]
                 + [const_spec(c.shape) for c in consts],
        out_specs=pl.BlockSpec((1, bb * NCP, Pm), lambda g: (g, 0, 0)),
        compiler_params=pltpu.CompilerParams(
            dimension_semantics=("parallel",)),
    )(f1r, f2r, f3r, f4r, *consts)

    logits = out.reshape(Bp, NCP, Hm, Wm)[:B, :NCLS]               # (B, 6, Hm, Wm)

    # target_logits in plain XLA from the returned logits (6-element reduction):
    # softmax is monotone, so argmax(softmax(x)) == argmax(x).
    pred = jnp.argmax(logits, axis=1)
    mask = (pred != 0).astype(f32)[:, None]                        # (B, 1, Hm, Wm)
    msum = jnp.sum(logits * mask, axis=(2, 3))                     # (B, 6)
    area = jnp.maximum(jnp.sum(mask, axis=(2, 3)), 1e-6)           # (B, 1)
    target_logits = msum / area
    return logits, target_logits


# ----------------------------------------------------------------------------
# Independent f32 XLA reference (loose sanity check only)
# ----------------------------------------------------------------------------
def _reference_forward(params, f1, f2, f3, f4, mask_gt):
    f32 = jnp.float32
    HIGH = jax.lax.Precision.HIGHEST

    def conv2d(x, w, padding):
        return jax.lax.conv_general_dilated(
            x.astype(f32), w.astype(f32), (1, 1),
            padding=((padding, padding), (padding, padding)),
            dimension_numbers=("NCHW", "OIHW", "NCHW"), precision=HIGH)

    def convbr(x, p):
        y = conv2d(x, p["w"], 1)
        y = y * p["scale"][None, :, None, None] + p["bias"][None, :, None, None]
        return jnp.maximum(y, 0.0)

    def conv_b(x, p, padding):
        return conv2d(x, p["w"], padding) + p["b"][None, :, None, None]

    def lin2d(x, Ah, Aw):
        return jnp.einsum("hy,bcyx,wx->bchw", jnp.asarray(Ah), x,
                          jnp.asarray(Aw), precision=HIGH)

    H, W = f1.shape[2], f1.shape[3]
    Hm, Wm = mask_gt.shape[2], mask_gt.shape[3]
    f2u = lin2d(f2, _up_chain_np(H, f2.shape[2]), _up_chain_np(W, f2.shape[3]))
    f3u = lin2d(f3, _up_chain_np(H, f3.shape[2]), _up_chain_np(W, f3.shape[3]))
    f4u = lin2d(f4, _up_chain_np(H, f4.shape[2]), _up_chain_np(W, f4.shape[3]))
    fused1 = convbr(jnp.concatenate([f4u, f3u], axis=1), params["fc1"])
    fused2 = convbr(jnp.concatenate([fused1, f2u], axis=1), params["fc2"])
    fused3 = convbr(jnp.concatenate([fused2, f1], axis=1), params["fc3"])
    o1 = conv_b(fused3, params["out1"], 0)
    o2 = conv_b(o1, params["out2"], 0)
    o3 = conv_b(o2, params["out"], 0)
    logits = lin2d(o3, _interp_matrix_np(Hm, o3.shape[2]),
                   _interp_matrix_np(Wm, o3.shape[3]))
    logits = conv_b(logits, params["cls"], 0)
    pred = jnp.argmax(jax.nn.softmax(logits, axis=1), axis=1)
    mask = (pred != 0).astype(f32)[:, None]
    msum = jnp.sum(logits * mask, axis=(2, 3))
    area = jnp.maximum(jnp.sum(mask, axis=(2, 3)), 1e-6)
    return logits, msum / area


# ----------------------------------------------------------------------------
if __name__ == "__main__":
    key = jax.random.PRNGKey(0)
    kp, k1, k2, k3, k4, km = jax.random.split(key, 6)

    channel, B = 8, 2
    params = init_params(kp, channel)

    f1 = jax.random.normal(k1, (B, channel, 16, 16), jnp.float32)
    f2 = jax.random.normal(k2, (B, channel, 8, 8), jnp.float32)
    f3 = jax.random.normal(k3, (B, channel, 4, 4), jnp.float32)
    f4 = jax.random.normal(k4, (B, channel, 2, 2), jnp.float32)
    mask_gt = (jax.random.uniform(km, (B, 1, 16, 16)) > 0.5).astype(jnp.float32)

    logits, target_logits = simple_decoder_forward(
        params, f1, f2, f3, f4, mask_gt)
    jax.block_until_ready((logits, target_logits))

    assert logits.shape == (B, 6, 16, 16), logits.shape
    assert target_logits.shape == (B, 6), target_logits.shape
    assert bool(jnp.all(jnp.isfinite(logits)))
    assert bool(jnp.all(jnp.isfinite(target_logits)))

    # Loose sanity check vs. an independent f32 XLA reference (kernel uses bf16
    # MXU inputs, so allow small numerical drift).
    ref_logits, ref_target = _reference_forward(params, f1, f2, f3, f4, mask_gt)
    ldiff = float(jnp.max(jnp.abs(logits - ref_logits)))
    assert ldiff < 0.25, ldiff
    # Only compare the masked means when the argmax masks agree pixelwise
    # (near-tie flips under bf16 are numerics, not a kernel defect).
    if bool(jnp.all(jnp.argmax(logits, axis=1) == jnp.argmax(ref_logits, axis=1))):
        tdiff = float(jnp.max(jnp.abs(target_logits - ref_target)))
        assert tdiff < 0.25, tdiff

    print("KERNEL_OK")
</pallas_src>

<mosaic_0001>
module attributes {stable_mosaic.version = 11 : i64} {
  func.func @kernel(%arg0: i32, %arg1: memref<1x16x256xf32, #tpu.memory_space<vmem>>, %arg2: memref<1x16x64xf32, #tpu.memory_space<vmem>>, %arg3: memref<1x16x16xf32, #tpu.memory_space<vmem>>, %arg4: memref<1x16x8xf32, #tpu.memory_space<vmem>>, %arg5: memref<64x256xbf16, #tpu.memory_space<vmem>>, %arg6: memref<16x256xbf16, #tpu.memory_space<vmem>>, %arg7: memref<8x256xbf16, #tpu.memory_space<vmem>>, %arg8: memref<256x256xbf16, #tpu.memory_space<vmem>>, %arg9: memref<9x256xbf16, #tpu.memory_space<vmem>>, %arg10: memref<8x144xbf16, #tpu.memory_space<vmem>>, %arg11: memref<8x1xf32, #tpu.memory_space<vmem>>, %arg12: memref<8x144xbf16, #tpu.memory_space<vmem>>, %arg13: memref<8x1xf32, #tpu.memory_space<vmem>>, %arg14: memref<8x144xbf16, #tpu.memory_space<vmem>>, %arg15: memref<8x1xf32, #tpu.memory_space<vmem>>, %arg16: memref<16x72xbf16, #tpu.memory_space<vmem>>, %arg17: memref<16x1xf32, #tpu.memory_space<vmem>>, %arg18: memref<8x144xbf16, #tpu.memory_space<vmem>>, %arg19: memref<8x1xf32, #tpu.memory_space<vmem>>, %arg20: memref<8x72xbf16, #tpu.memory_space<vmem>>, %arg21: memref<8x1xf32, #tpu.memory_space<vmem>>, %arg22: memref<1x16x256xf32, #tpu.memory_space<vmem>>) attributes {dimension_semantics = [#tpu.dimension_semantics<parallel>], iteration_bounds = array<i64: 1>, scalar_prefetch = 0 : i64, scratch_operands = 0 : i64, tpu.core_type = #tpu.core_type<tc>, window_params = [{transform_indices = @transform_0, window_bounds = array<i64: 1, 16, 256>}, {transform_indices = @transform_1, window_bounds = array<i64: 1, 16, 64>}, {transform_indices = @transform_2, window_bounds = array<i64: 1, 16, 16>}, {transform_indices = @transform_3, window_bounds = array<i64: 1, 16, 8>}, {pipeline_mode = #tpu.pipeline_mode<synchronous>, transform_indices = @transform_4, window_bounds = array<i64: 64, 256>}, {pipeline_mode = #tpu.pipeline_mode<synchronous>, transform_indices = @transform_5, window_bounds = array<i64: 16, 256>}, {pipeline_mode = #tpu.pipeline_mode<synchronous>, transform_indices = @transform_6, window_bounds = array<i64: 8, 256>}, {pipeline_mode = #tpu.pipeline_mode<synchronous>, transform_indices = @transform_7, window_bounds = array<i64: 256, 256>}, {pipeline_mode = #tpu.pipeline_mode<synchronous>, transform_indices = @transform_8, window_bounds = array<i64: 9, 256>}, {pipeline_mode = #tpu.pipeline_mode<synchronous>, transform_indices = @transform_9, window_bounds = array<i64: 8, 144>}, {pipeline_mode = #tpu.pipeline_mode<synchronous>, transform_indices = @transform_10, window_bounds = array<i64: 8, 1>}, {pipeline_mode = #tpu.pipeline_mode<synchronous>, transform_indices = @transform_11, window_bounds = array<i64: 8, 144>}, {pipeline_mode = #tpu.pipeline_mode<synchronous>, transform_indices = @transform_12, window_bounds = array<i64: 8, 1>}, {pipeline_mode = #tpu.pipeline_mode<synchronous>, transform_indices = @transform_13, window_bounds = array<i64: 8, 144>}, {pipeline_mode = #tpu.pipeline_mode<synchronous>, transform_indices = @transform_14, window_bounds = array<i64: 8, 1>}, {pipeline_mode = #tpu.pipeline_mode<synchronous>, transform_indices = @transform_15, window_bounds = array<i64: 16, 72>}, {pipeline_mode = #tpu.pipeline_mode<synchronous>, transform_indices = @transform_16, window_bounds = array<i64: 16, 1>}, {pipeline_mode = #tpu.pipeline_mode<synchronous>, transform_indices = @transform_17, window_bounds = array<i64: 8, 144>}, {pipeline_mode = #tpu.pipeline_mode<synchronous>, transform_indices = @transform_18, window_bounds = array<i64: 8, 1>}, {pipeline_mode = #tpu.pipeline_mode<synchronous>, transform_indices = @transform_19, window_bounds = array<i64: 8, 72>}, {pipeline_mode = #tpu.pipeline_mode<synchronous>, transform_indices = @transform_20, window_bounds = array<i64: 8, 1>}, {transform_indices = @transform_21, window_bounds = array<i64: 1, 16, 256>}]} {
    %c0 = arith.constant 0 : index
    %c0_0 = arith.constant 0 : index
    %0 = vector.load %arg9[%c0, %c0_0] : memref<9x256xbf16, #tpu.memory_space<vmem>>, vector<9x256xbf16>
    %1 = arith.extf %0 : vector<9x256xbf16> to vector<9x256xf32>
    %c0_1 = arith.constant 0 : index
    %c0_2 = arith.constant 0 : index
    %c0_3 = arith.constant 0 : index
    %2 = vector.load %arg1[%c0_1, %c0_2, %c0_3] : memref<1x16x256xf32, #tpu.memory_space<vmem>>, vector<1x16x256xf32>
    %3 = vector.shape_cast %2 : vector<1x16x256xf32> to vector<16x256xf32>
    %c0_4 = arith.constant 0 : index
    %c0_5 = arith.constant 0 : index
    %c0_6 = arith.constant 0 : index
    %4 = vector.load %arg2[%c0_4, %c0_5, %c0_6] : memref<1x16x64xf32, #tpu.memory_space<vmem>>, vector<1x16x64xf32>
    %5 = vector.shape_cast %4 : vector<1x16x64xf32> to vector<16x64xf32>
    %6 = arith.truncf %5 : vector<16x64xf32> to vector<16x64xbf16>
    %c0_7 = arith.constant 0 : index
    %c0_8 = arith.constant 0 : index
    %7 = vector.load %arg5[%c0_7, %c0_8] : memref<64x256xbf16, #tpu.memory_space<vmem>>, vector<64x256xbf16>
    %cst = arith.constant dense<0.000000e+00> : vector<16x256xf32>
    %8 = tpu.matmul %6, %7, %cst {dimension_numbers = #tpu.dot_dimension_numbers<[1], [0], [0], [1], [0, 0, 1, 1], [], []>} : vector<16x64xbf16>, vector<64x256xbf16>, vector<16x256xf32> -> vector<16x256xf32>
    %c0_9 = arith.constant 0 : index
    %c0_10 = arith.constant 0 : index
    %c0_11 = arith.constant 0 : index
    %9 = vector.load %arg3[%c0_9, %c0_10, %c0_11] : memref<1x16x16xf32, #tpu.memory_space<vmem>>, vector<1x16x16xf32>
    %10 = vector.shape_cast %9 : vector<1x16x16xf32> to vector<16x16xf32>
    %11 = arith.truncf %10 : vector<16x16xf32> to vector<16x16xbf16>
    %c0_12 = arith.constant 0 : index
    %c0_13 = arith.constant 0 : index
    %12 = vector.load %arg6[%c0_12, %c0_13] : memref<16x256xbf16, #tpu.memory_space<vmem>>, vector<16x256xbf16>
    %cst_14 = arith.constant dense<0.000000e+00> : vector<16x256xf32>
    %13 = tpu.matmul %11, %12, %cst_14 {dimension_numbers = #tpu.dot_dimension_numbers<[1], [0], [0], [1], [0, 0, 1, 1], [], []>} : vector<16x16xbf16>, vector<16x256xbf16>, vector<16x256xf32> -> vector<16x256xf32>
    %c0_15 = arith.constant 0 : index
    %c0_16 = arith.constant 0 : index
    %c0_17 = arith.constant 0 : index
    %14 = vector.load %arg4[%c0_15, %c0_16, %c0_17] : memref<1x16x8xf32, #tpu.memory_space<vmem>>, vector<1x16x8xf32>
    %15 = vector.shape_cast %14 : vector<1x16x8xf32> to vector<16x8xf32>
    %16 = arith.truncf %15 : vector<16x8xf32> to vector<16x8xbf16>
    %c0_18 = arith.constant 0 : index
    %c0_19 = arith.constant 0 : index
    %17 = vector.load %arg7[%c0_18, %c0_19] : memref<8x256xbf16, #tpu.memory_space<vmem>>, vector<8x256xbf16>
    %cst_20 = arith.constant dense<0.000000e+00> : vector<16x256xf32>
    %18 = tpu.matmul %16, %17, %cst_20 {dimension_numbers = #tpu.dot_dimension_numbers<[1], [0], [0], [1], [0, 0, 1, 1], [], []>} : vector<16x8xbf16>, vector<8x256xbf16>, vector<16x256xf32> -> vector<16x256xf32>
    %19 = vector.extract_strided_slice %18 {offsets = [0, 0], sizes = [8, 256], strides = [1, 1]} : vector<16x256xf32> to vector<8x256xf32>
    %20 = vector.extract_strided_slice %13 {offsets = [0, 0], sizes = [8, 256], strides = [1, 1]} : vector<16x256xf32> to vector<8x256xf32>
    %21 = tpu.concatenate %19, %20 in 0 : vector<8x256xf32>, vector<8x256xf32> -> vector<16x256xf32>
    %c17_i32 = arith.constant 17 : i32
    %22 = tpu.dynamic_rotate %21 by %c17_i32 dim 1 : vector<16x256xf32>, i32 -> vector<16x256xf32>
    %23 = vector.extract_strided_slice %1 {offsets = [0, 0], sizes = [1, 256], strides = [1, 1]} : vector<9x256xf32> to vector<1x256xf32>
    %24 = vector.broadcast %23 : vector<1x256xf32> to vector<16x256xf32>
    %25 = arith.mulf %22, %24 : vector<16x256xf32>
    %c16_i32 = arith.constant 16 : i32
    %26 = tpu.dynamic_rotate %21 by %c16_i32 dim 1 : vector<16x256xf32>, i32 -> vector<16x256xf32>
    %27 = vector.extract_strided_slice %1 {offsets = [1, 0], sizes = [1, 256], strides = [1, 1]} : vector<9x256xf32> to vector<1x256xf32>
    %28 = vector.broadcast %27 : vector<1x256xf32> to vector<16x256xf32>
    %29 = arith.mulf %26, %28 : vector<16x256xf32>
    %c15_i32 = arith.constant 15 : i32
    %30 = tpu.dynamic_rotate %21 by %c15_i32 dim 1 : vector<16x256xf32>, i32 -> vector<16x256xf32>
    %31 = vector.extract_strided_slice %1 {offsets = [2, 0], sizes = [1, 256], strides = [1, 1]} : vector<9x256xf32> to vector<1x256xf32>
    %32 = vector.broadcast %31 : vector<1x256xf32> to vector<16x256xf32>
    %33 = arith.mulf %30, %32 : vector<16x256xf32>
    %c1_i32 = arith.constant 1 : i32
    %34 = tpu.dynamic_rotate %21 by %c1_i32 dim 1 : vector<16x256xf32>, i32 -> vector<16x256xf32>
    %35 = vector.extract_strided_slice %1 {offsets = [3, 0], sizes = [1, 256], strides = [1, 1]} : vector<9x256xf32> to vector<1x256xf32>
    %36 = vector.broadcast %35 : vector<1x256xf32> to vector<16x256xf32>
    %37 = arith.mulf %34, %36 : vector<16x256xf32>
    %c255_i32 = arith.constant 255 : i32
    %38 = tpu.dynamic_rotate %21 by %c255_i32 dim 1 : vector<16x256xf32>, i32 -> vector<16x256xf32>
    %39 = vector.extract_strided_slice %1 {offsets = [5, 0], sizes = [1, 256], strides = [1, 1]} : vector<9x256xf32> to vector<1x256xf32>
    %40 = vector.broadcast %39 : vector<1x256xf32> to vector<16x256xf32>
    %41 = arith.mulf %38, %40 : vector<16x256xf32>
    %c241_i32 = arith.constant 241 : i32
    %42 = tpu.dynamic_rotate %21 by %c241_i32 dim 1 : vector<16x256xf32>, i32 -> vector<16x256xf32>
    %43 = vector.extract_strided_slice %1 {offsets = [6, 0], sizes = [1, 256], strides = [1, 1]} : vector<9x256xf32> to vector<1x256xf32>
    %44 = vector.broadcast %43 : vector<1x256xf32> to vector<16x256xf32>
    %45 = arith.mulf %42, %44 : vector<16x256xf32>
    %c240_i32 = arith.constant 240 : i32
    %46 = tpu.dynamic_rotate %21 by %c240_i32 dim 1 : vector<16x256xf32>, i32 -> vector<16x256xf32>
    %47 = vector.extract_strided_slice %1 {offsets = [7, 0], sizes = [1, 256], strides = [1, 1]} : vector<9x256xf32> to vector<1x256xf32>
    %48 = vector.broadcast %47 : vector<1x256xf32> to vector<16x256xf32>
    %49 = arith.mulf %46, %48 : vector<16x256xf32>
    %c239_i32 = arith.constant 239 : i32
    %50 = tpu.dynamic_rotate %21 by %c239_i32 dim 1 : vector<16x256xf32>, i32 -> vector<16x256xf32>
    %51 = vector.extract_strided_slice %1 {offsets = [8, 0], sizes = [1, 256], strides = [1, 1]} : vector<9x256xf32> to vector<1x256xf32>
    %52 = vector.broadcast %51 : vector<1x256xf32> to vector<16x256xf32>
    %53 = arith.mulf %50, %52 : vector<16x256xf32>
    %54 = tpu.concatenate %25, %29, %33, %37, %21, %41, %45, %49, %53 in 0 : vector<16x256xf32>, vector<16x256xf32>, vector<16x256xf32>, vector<16x256xf32>, vector<16x256xf32>, vector<16x256xf32>, vector<16x256xf32>, vector<16x256xf32>, vector<16x256xf32> -> vector<144x256xf32>
    %55 = arith.truncf %54 : vector<144x256xf32> to vector<144x256xbf16>
    %c0_21 = arith.constant 0 : index
    %c0_22 = arith.constant 0 : index
    %56 = vector.load %arg10[%c0_21, %c0_22] : memref<8x144xbf16, #tpu.memory_space<vmem>>, vector<8x144xbf16>
    %cst_23 = arith.constant dense<0.000000e+00> : vector<8x256xf32>
    %57 = tpu.matmul %56, %55, %cst_23 {dimension_numbers = #tpu.dot_dimension_numbers<[1], [0], [0], [1], [0, 0, 1, 1], [], []>} : vector<8x144xbf16>, vector<144x256xbf16>, vector<8x256xf32> -> vector<8x256xf32>
    %c0_24 = arith.constant 0 : index
    %c0_25 = arith.constant 0 : index
    %58 = vector.load %arg11[%c0_24, %c0_25] : memref<8x1xf32, #tpu.memory_space<vmem>>, vector<8x1xf32>
    %59 = vector.broadcast %58 : vector<8x1xf32> to vector<8x256xf32>
    %60 = arith.addf %57, %59 : vector<8x256xf32>
    %cst_26 = arith.constant 0.000000e+00 : f32
    %61 = vector.broadcast %cst_26 : f32 to vector<8x256xf32>
    %62 = arith.maximumf %60, %61 : vector<8x256xf32>
    %63 = vector.extract_strided_slice %8 {offsets = [0, 0], sizes = [8, 256], strides = [1, 1]} : vector<16x256xf32> to vector<8x256xf32>
    %64 = tpu.concatenate %62, %63 in 0 : vector<8x256xf32>, vector<8x256xf32> -> vector<16x256xf32>
    %c17_i32_27 = arith.constant 17 : i32
    %65 = tpu.dynamic_rotate %64 by %c17_i32_27 dim 1 : vector<16x256xf32>, i32 -> vector<16x256xf32>
    %66 = vector.extract_strided_slice %1 {offsets = [0, 0], sizes = [1, 256], strides = [1, 1]} : vector<9x256xf32> to vector<1x256xf32>
    %67 = vector.broadcast %66 : vector<1x256xf32> to vector<16x256xf32>
    %68 = arith.mulf %65, %67 : vector<16x256xf32>
    %c16_i32_28 = arith.constant 16 : i32
    %69 = tpu.dynamic_rotate %64 by %c16_i32_28 dim 1 : vector<16x256xf32>, i32 -> vector<16x256xf32>
    %70 = vector.extract_strided_slice %1 {offsets = [1, 0], sizes = [1, 256], strides = [1, 1]} : vector<9x256xf32> to vector<1x256xf32>
    %71 = vector.broadcast %70 : vector<1x256xf32> to vector<16x256xf32>
    %72 = arith.mulf %69, %71 : vector<16x256xf32>
    %c15_i32_29 = arith.constant 15 : i32
    %73 = tpu.dynamic_rotate %64 by %c15_i32_29 dim 1 : vector<16x256xf32>, i32 -> vector<16x256xf32>
    %74 = vector.extract_strided_slice %1 {offsets = [2, 0], sizes = [1, 256], strides = [1, 1]} : vector<9x256xf32> to vector<1x256xf32>
    %75 = vector.broadcast %74 : vector<1x256xf32> to vector<16x256xf32>
    %76 = arith.mulf %73, %75 : vector<16x256xf32>
    %c1_i32_30 = arith.constant 1 : i32
    %77 = tpu.dynamic_rotate %64 by %c1_i32_30 dim 1 : vector<16x256xf32>, i32 -> vector<16x256xf32>
    %78 = vector.extract_strided_slice %1 {offsets = [3, 0], sizes = [1, 256], strides = [1, 1]} : vector<9x256xf32> to vector<1x256xf32>
    %79 = vector.broadcast %78 : vector<1x256xf32> to vector<16x256xf32>
    %80 = arith.mulf %77, %79 : vector<16x256xf32>
    %c255_i32_31 = arith.constant 255 : i32
    %81 = tpu.dynamic_rotate %64 by %c255_i32_31 dim 1 : vector<16x256xf32>, i32 -> vector<16x256xf32>
    %82 = vector.extract_strided_slice %1 {offsets = [5, 0], sizes = [1, 256], strides = [1, 1]} : vector<9x256xf32> to vector<1x256xf32>
    %83 = vector.broadcast %82 : vector<1x256xf32> to vector<16x256xf32>
    %84 = arith.mulf %81, %83 : vector<16x256xf32>
    %c241_i32_32 = arith.constant 241 : i32
    %85 = tpu.dynamic_rotate %64 by %c241_i32_32 dim 1 : vector<16x256xf32>, i32 -> vector<16x256xf32>
    %86 = vector.extract_strided_slice %1 {offsets = [6, 0], sizes = [1, 256], strides = [1, 1]} : vector<9x256xf32> to vector<1x256xf32>
    %87 = vector.broadcast %86 : vector<1x256xf32> to vector<16x256xf32>
    %88 = arith.mulf %85, %87 : vector<16x256xf32>
    %c240_i32_33 = arith.constant 240 : i32
    %89 = tpu.dynamic_rotate %64 by %c240_i32_33 dim 1 : vector<16x256xf32>, i32 -> vector<16x256xf32>
    %90 = vector.extract_strided_slice %1 {offsets = [7, 0], sizes = [1, 256], strides = [1, 1]} : vector<9x256xf32> to vector<1x256xf32>
    %91 = vector.broadcast %90 : vector<1x256xf32> to vector<16x256xf32>
    %92 = arith.mulf %89, %91 : vector<16x256xf32>
    %c239_i32_34 = arith.constant 239 : i32
    %93 = tpu.dynamic_rotate %64 by %c239_i32_34 dim 1 : vector<16x256xf32>, i32 -> vector<16x256xf32>
    %94 = vector.extract_strided_slice %1 {offsets = [8, 0], sizes = [1, 256], strides = [1, 1]} : vector<9x256xf32> to vector<1x256xf32>
    %95 = vector.broadcast %94 : vector<1x256xf32> to vector<16x256xf32>
    %96 = arith.mulf %93, %95 : vector<16x256xf32>
    %97 = tpu.concatenate %68, %72, %76, %80, %64, %84, %88, %92, %96 in 0 : vector<16x256xf32>, vector<16x256xf32>, vector<16x256xf32>, vector<16x256xf32>, vector<16x256xf32>, vector<16x256xf32>, vector<16x256xf32>, vector<16x256xf32>, vector<16x256xf32> -> vector<144x256xf32>
    %98 = arith.truncf %97 : vector<144x256xf32> to vector<144x256xbf16>
    %c0_35 = arith.constant 0 : index
    %c0_36 = arith.constant 0 : index
    %99 = vector.load %arg12[%c0_35, %c0_36] : memref<8x144xbf16, #tpu.memory_space<vmem>>, vector<8x144xbf16>
    %cst_37 = arith.constant dense<0.000000e+00> : vector<8x256xf32>
    %100 = tpu.matmul %99, %98, %cst_37 {dimension_numbers = #tpu.dot_dimension_numbers<[1], [0], [0], [1], [0, 0, 1, 1], [], []>} : vector<8x144xbf16>, vector<144x256xbf16>, vector<8x256xf32> -> vector<8x256xf32>
    %c0_38 = arith.constant 0 : index
    %c0_39 = arith.constant 0 : index
    %101 = vector.load %arg13[%c0_38, %c0_39] : memref<8x1xf32, #tpu.memory_space<vmem>>, vector<8x1xf32>
    %102 = vector.broadcast %101 : vector<8x1xf32> to vector<8x256xf32>
    %103 = arith.addf %100, %102 : vector<8x256xf32>
    %cst_40 = arith.constant 0.000000e+00 : f32
    %104 = vector.broadcast %cst_40 : f32 to vector<8x256xf32>
    %105 = arith.maximumf %103, %104 : vector<8x256xf32>
    %106 = vector.extract_strided_slice %3 {offsets = [0, 0], sizes = [8, 256], strides = [1, 1]} : vector<16x256xf32> to vector<8x256xf32>
    %107 = tpu.concatenate %105, %106 in 0 : vector<8x256xf32>, vector<8x256xf32> -> vector<16x256xf32>
    %c17_i32_41 = arith.constant 17 : i32
    %108 = tpu.dynamic_rotate %107 by %c17_i32_41 dim 1 : vector<16x256xf32>, i32 -> vector<16x256xf32>
    %109 = vector.extract_strided_slice %1 {offsets = [0, 0], sizes = [1, 256], strides = [1, 1]} : vector<9x256xf32> to vector<1x256xf32>
    %110 = vector.broadcast %109 : vector<1x256xf32> to vector<16x256xf32>
    %111 = arith.mulf %108, %110 : vector<16x256xf32>
    %c16_i32_42 = arith.constant 16 : i32
    %112 = tpu.dynamic_rotate %107 by %c16_i32_42 dim 1 : vector<16x256xf32>, i32 -> vector<16x256xf32>
    %113 = vector.extract_strided_slice %1 {offsets = [1, 0], sizes = [1, 256], strides = [1, 1]} : vector<9x256xf32> to vector<1x256xf32>
    %114 = vector.broadcast %113 : vector<1x256xf32> to vector<16x256xf32>
    %115 = arith.mulf %112, %114 : vector<16x256xf32>
    %c15_i32_43 = arith.constant 15 : i32
    %116 = tpu.dynamic_rotate %107 by %c15_i32_43 dim 1 : vector<16x256xf32>, i32 -> vector<16x256xf32>
    %117 = vector.extract_strided_slice %1 {offsets = [2, 0], sizes = [1, 256], strides = [1, 1]} : vector<9x256xf32> to vector<1x256xf32>
    %118 = vector.broadcast %117 : vector<1x256xf32> to vector<16x256xf32>
    %119 = arith.mulf %116, %118 : vector<16x256xf32>
    %c1_i32_44 = arith.constant 1 : i32
    %120 = tpu.dynamic_rotate %107 by %c1_i32_44 dim 1 : vector<16x256xf32>, i32 -> vector<16x256xf32>
    %121 = vector.extract_strided_slice %1 {offsets = [3, 0], sizes = [1, 256], strides = [1, 1]} : vector<9x256xf32> to vector<1x256xf32>
    %122 = vector.broadcast %121 : vector<1x256xf32> to vector<16x256xf32>
    %123 = arith.mulf %120, %122 : vector<16x256xf32>
    %c255_i32_45 = arith.constant 255 : i32
    %124 = tpu.dynamic_rotate %107 by %c255_i32_45 dim 1 : vector<16x256xf32>, i32 -> vector<16x256xf32>
    %125 = vector.extract_strided_slice %1 {offsets = [5, 0], sizes = [1, 256], strides = [1, 1]} : vector<9x256xf32> to vector<1x256xf32>
    %126 = vector.broadcast %125 : vector<1x256xf32> to vector<16x256xf32>
    %127 = arith.mulf %124, %126 : vector<16x256xf32>
    %c241_i32_46 = arith.constant 241 : i32
    %128 = tpu.dynamic_rotate %107 by %c241_i32_46 dim 1 : vector<16x256xf32>, i32 -> vector<16x256xf32>
    %129 = vector.extract_strided_slice %1 {offsets = [6, 0], sizes = [1, 256], strides = [1, 1]} : vector<9x256xf32> to vector<1x256xf32>
    %130 = vector.broadcast %129 : vector<1x256xf32> to vector<16x256xf32>
    %131 = arith.mulf %128, %130 : vector<16x256xf32>
    %c240_i32_47 = arith.constant 240 : i32
    %132 = tpu.dynamic_rotate %107 by %c240_i32_47 dim 1 : vector<16x256xf32>, i32 -> vector<16x256xf32>
    %133 = vector.extract_strided_slice %1 {offsets = [7, 0], sizes = [1, 256], strides = [1, 1]} : vector<9x256xf32> to vector<1x256xf32>
    %134 = vector.broadcast %133 : vector<1x256xf32> to vector<16x256xf32>
    %135 = arith.mulf %132, %134 : vector<16x256xf32>
    %c239_i32_48 = arith.constant 239 : i32
    %136 = tpu.dynamic_rotate %107 by %c239_i32_48 dim 1 : vector<16x256xf32>, i32 -> vector<16x256xf32>
    %137 = vector.extract_strided_slice %1 {offsets = [8, 0], sizes = [1, 256], strides = [1, 1]} : vector<9x256xf32> to vector<1x256xf32>
    %138 = vector.broadcast %137 : vector<1x256xf32> to vector<16x256xf32>
    %139 = arith.mulf %136, %138 : vector<16x256xf32>
    %140 = tpu.concatenate %111, %115, %119, %123, %107, %127, %131, %135, %139 in 0 : vector<16x256xf32>, vector<16x256xf32>, vector<16x256xf32>, vector<16x256xf32>, vector<16x256xf32>, vector<16x256xf32>, vector<16x256xf32>, vector<16x256xf32>, vector<16x256xf32> -> vector<144x256xf32>
    %141 = arith.truncf %140 : vector<144x256xf32> to vector<144x256xbf16>
    %c0_49 = arith.constant 0 : index
    %c0_50 = arith.constant 0 : index
    %142 = vector.load %arg14[%c0_49, %c0_50] : memref<8x144xbf16, #tpu.memory_space<vmem>>, vector<8x144xbf16>
    %cst_51 = arith.constant dense<0.000000e+00> : vector<8x256xf32>
    %143 = tpu.matmul %142, %141, %cst_51 {dimension_numbers = #tpu.dot_dimension_numbers<[1], [0], [0], [1], [0, 0, 1, 1], [], []>} : vector<8x144xbf16>, vector<144x256xbf16>, vector<8x256xf32> -> vector<8x256xf32>
    %c0_52 = arith.constant 0 : index
    %c0_53 = arith.constant 0 : index
    %144 = vector.load %arg15[%c0_52, %c0_53] : memref<8x1xf32, #tpu.memory_space<vmem>>, vector<8x1xf32>
    %145 = vector.broadcast %144 : vector<8x1xf32> to vector<8x256xf32>
    %146 = arith.addf %143, %145 : vector<8x256xf32>
    %cst_54 = arith.constant 0.000000e+00 : f32
    %147 = vector.broadcast %cst_54 : f32 to vector<8x256xf32>
    %148 = arith.maximumf %146, %147 : vector<8x256xf32>
    %c17_i32_55 = arith.constant 17 : i32
    %149 = tpu.dynamic_rotate %148 by %c17_i32_55 dim 1 : vector<8x256xf32>, i32 -> vector<8x256xf32>
    %150 = vector.extract_strided_slice %1 {offsets = [0, 0], sizes = [1, 256], strides = [1, 1]} : vector<9x256xf32> to vector<1x256xf32>
    %151 = vector.broadcast %150 : vector<1x256xf32> to vector<8x256xf32>
    %152 = arith.mulf %149, %151 : vector<8x256xf32>
    %c16_i32_56 = arith.constant 16 : i32
    %153 = tpu.dynamic_rotate %148 by %c16_i32_56 dim 1 : vector<8x256xf32>, i32 -> vector<8x256xf32>
    %154 = vector.extract_strided_slice %1 {offsets = [1, 0], sizes = [1, 256], strides = [1, 1]} : vector<9x256xf32> to vector<1x256xf32>
    %155 = vector.broadcast %154 : vector<1x256xf32> to vector<8x256xf32>
    %156 = arith.mulf %153, %155 : vector<8x256xf32>
    %c15_i32_57 = arith.constant 15 : i32
    %157 = tpu.dynamic_rotate %148 by %c15_i32_57 dim 1 : vector<8x256xf32>, i32 -> vector<8x256xf32>
    %158 = vector.extract_strided_slice %1 {offsets = [2, 0], sizes = [1, 256], strides = [1, 1]} : vector<9x256xf32> to vector<1x256xf32>
    %159 = vector.broadcast %158 : vector<1x256xf32> to vector<8x256xf32>
    %160 = arith.mulf %157, %159 : vector<8x256xf32>
    %c1_i32_58 = arith.constant 1 : i32
    %161 = tpu.dynamic_rotate %148 by %c1_i32_58 dim 1 : vector<8x256xf32>, i32 -> vector<8x256xf32>
    %162 = vector.extract_strided_slice %1 {offsets = [3, 0], sizes = [1, 256], strides = [1, 1]} : vector<9x256xf32> to vector<1x256xf32>
    %163 = vector.broadcast %162 : vector<1x256xf32> to vector<8x256xf32>
    %164 = arith.mulf %161, %163 : vector<8x256xf32>
    %c255_i32_59 = arith.constant 255 : i32
    %165 = tpu.dynamic_rotate %148 by %c255_i32_59 dim 1 : vector<8x256xf32>, i32 -> vector<8x256xf32>
    %166 = vector.extract_strided_slice %1 {offsets = [5, 0], sizes = [1, 256], strides = [1, 1]} : vector<9x256xf32> to vector<1x256xf32>
    %167 = vector.broadcast %166 : vector<1x256xf32> to vector<8x256xf32>
    %168 = arith.mulf %165, %167 : vector<8x256xf32>
    %c241_i32_60 = arith.constant 241 : i32
    %169 = tpu.dynamic_rotate %148 by %c241_i32_60 dim 1 : vector<8x256xf32>, i32 -> vector<8x256xf32>
    %170 = vector.extract_strided_slice %1 {offsets = [6, 0], sizes = [1, 256], strides = [1, 1]} : vector<9x256xf32> to vector<1x256xf32>
    %171 = vector.broadcast %170 : vector<1x256xf32> to vector<8x256xf32>
    %172 = arith.mulf %169, %171 : vector<8x256xf32>
    %c240_i32_61 = arith.constant 240 : i32
    %173 = tpu.dynamic_rotate %148 by %c240_i32_61 dim 1 : vector<8x256xf32>, i32 -> vector<8x256xf32>
    %174 = vector.extract_strided_slice %1 {offsets = [7, 0], sizes = [1, 256], strides = [1, 1]} : vector<9x256xf32> to vector<1x256xf32>
    %175 = vector.broadcast %174 : vector<1x256xf32> to vector<8x256xf32>
    %176 = arith.mulf %173, %175 : vector<8x256xf32>
    %c239_i32_62 = arith.constant 239 : i32
    %177 = tpu.dynamic_rotate %148 by %c239_i32_62 dim 1 : vector<8x256xf32>, i32 -> vector<8x256xf32>
    %178 = vector.extract_strided_slice %1 {offsets = [8, 0], sizes = [1, 256], strides = [1, 1]} : vector<9x256xf32> to vector<1x256xf32>
    %179 = vector.broadcast %178 : vector<1x256xf32> to vector<8x256xf32>
    %180 = arith.mulf %177, %179 : vector<8x256xf32>
    %181 = tpu.concatenate %152, %156, %160, %164, %148, %168, %172, %176, %180 in 0 : vector<8x256xf32>, vector<8x256xf32>, vector<8x256xf32>, vector<8x256xf32>, vector<8x256xf32>, vector<8x256xf32>, vector<8x256xf32>, vector<8x256xf32>, vector<8x256xf32> -> vector<72x256xf32>
    %182 = arith.truncf %181 : vector<72x256xf32> to vector<72x256xbf16>
    %c0_63 = arith.constant 0 : index
    %c0_64 = arith.constant 0 : index
    %183 = vector.load %arg16[%c0_63, %c0_64] : memref<16x72xbf16, #tpu.memory_space<vmem>>, vector<16x72xbf16>
    %cst_65 = arith.constant dense<0.000000e+00> : vector<16x256xf32>
    %184 = tpu.matmul %183, %182, %cst_65 {dimension_numbers = #tpu.dot_dimension_numbers<[1], [0], [0], [1], [0, 0, 1, 1], [], []>} : vector<16x72xbf16>, vector<72x256xbf16>, vector<16x256xf32> -> vector<16x256xf32>
    %c0_66 = arith.constant 0 : index
    %c0_67 = arith.constant 0 : index
    %185 = vector.load %arg17[%c0_66, %c0_67] : memref<16x1xf32, #tpu.memory_space<vmem>>, vector<16x1xf32>
    %186 = vector.broadcast %185 : vector<16x1xf32> to vector<16x256xf32>
    %187 = arith.addf %184, %186 : vector<16x256xf32>
    %c17_i32_68 = arith.constant 17 : i32
    %188 = tpu.dynamic_rotate %187 by %c17_i32_68 dim 1 : vector<16x256xf32>, i32 -> vector<16x256xf32>
    %189 = vector.extract_strided_slice %1 {offsets = [0, 0], sizes = [1, 256], strides = [1, 1]} : vector<9x256xf32> to vector<1x256xf32>
    %190 = vector.broadcast %189 : vector<1x256xf32> to vector<16x256xf32>
    %191 = arith.mulf %188, %190 : vector<16x256xf32>
    %c16_i32_69 = arith.constant 16 : i32
    %192 = tpu.dynamic_rotate %187 by %c16_i32_69 dim 1 : vector<16x256xf32>, i32 -> vector<16x256xf32>
    %193 = vector.extract_strided_slice %1 {offsets = [1, 0], sizes = [1, 256], strides = [1, 1]} : vector<9x256xf32> to vector<1x256xf32>
    %194 = vector.broadcast %193 : vector<1x256xf32> to vector<16x256xf32>
    %195 = arith.mulf %192, %194 : vector<16x256xf32>
    %c15_i32_70 = arith.constant 15 : i32
    %196 = tpu.dynamic_rotate %187 by %c15_i32_70 dim 1 : vector<16x256xf32>, i32 -> vector<16x256xf32>
    %197 = vector.extract_strided_slice %1 {offsets = [2, 0], sizes = [1, 256], strides = [1, 1]} : vector<9x256xf32> to vector<1x256xf32>
    %198 = vector.broadcast %197 : vector<1x256xf32> to vector<16x256xf32>
    %199 = arith.mulf %196, %198 : vector<16x256xf32>
    %c1_i32_71 = arith.constant 1 : i32
    %200 = tpu.dynamic_rotate %187 by %c1_i32_71 dim 1 : vector<16x256xf32>, i32 -> vector<16x256xf32>
    %201 = vector.extract_strided_slice %1 {offsets = [3, 0], sizes = [1, 256], strides = [1, 1]} : vector<9x256xf32> to vector<1x256xf32>
    %202 = vector.broadcast %201 : vector<1x256xf32> to vector<16x256xf32>
    %203 = arith.mulf %200, %202 : vector<16x256xf32>
    %c255_i32_72 = arith.constant 255 : i32
    %204 = tpu.dynamic_rotate %187 by %c255_i32_72 dim 1 : vector<16x256xf32>, i32 -> vector<16x256xf32>
    %205 = vector.extract_strided_slice %1 {offsets = [5, 0], sizes = [1, 256], strides = [1, 1]} : vector<9x256xf32> to vector<1x256xf32>
    %206 = vector.broadcast %205 : vector<1x256xf32> to vector<16x256xf32>
    %207 = arith.mulf %204, %206 : vector<16x256xf32>
    %c241_i32_73 = arith.constant 241 : i32
    %208 = tpu.dynamic_rotate %187 by %c241_i32_73 dim 1 : vector<16x256xf32>, i32 -> vector<16x256xf32>
    %209 = vector.extract_strided_slice %1 {offsets = [6, 0], sizes = [1, 256], strides = [1, 1]} : vector<9x256xf32> to vector<1x256xf32>
    %210 = vector.broadcast %209 : vector<1x256xf32> to vector<16x256xf32>
    %211 = arith.mulf %208, %210 : vector<16x256xf32>
    %c240_i32_74 = arith.constant 240 : i32
    %212 = tpu.dynamic_rotate %187 by %c240_i32_74 dim 1 : vector<16x256xf32>, i32 -> vector<16x256xf32>
    %213 = vector.extract_strided_slice %1 {offsets = [7, 0], sizes = [1, 256], strides = [1, 1]} : vector<9x256xf32> to vector<1x256xf32>
    %214 = vector.broadcast %213 : vector<1x256xf32> to vector<16x256xf32>
    %215 = arith.mulf %212, %214 : vector<16x256xf32>
    %c239_i32_75 = arith.constant 239 : i32
    %216 = tpu.dynamic_rotate %187 by %c239_i32_75 dim 1 : vector<16x256xf32>, i32 -> vector<16x256xf32>
    %217 = vector.extract_strided_slice %1 {offsets = [8, 0], sizes = [1, 256], strides = [1, 1]} : vector<9x256xf32> to vector<1x256xf32>
    %218 = vector.broadcast %217 : vector<1x256xf32> to vector<16x256xf32>
    %219 = arith.mulf %216, %218 : vector<16x256xf32>
    %220 = tpu.concatenate %191, %195, %199, %203, %187, %207, %211, %215, %219 in 0 : vector<16x256xf32>, vector<16x256xf32>, vector<16x256xf32>, vector<16x256xf32>, vector<16x256xf32>, vector<16x256xf32>, vector<16x256xf32>, vector<16x256xf32>, vector<16x256xf32> -> vector<144x256xf32>
    %221 = arith.truncf %220 : vector<144x256xf32> to vector<144x256xbf16>
    %c0_76 = arith.constant 0 : index
    %c0_77 = arith.constant 0 : index
    %222 = vector.load %arg18[%c0_76, %c0_77] : memref<8x144xbf16, #tpu.memory_space<vmem>>, vector<8x144xbf16>
    %cst_78 = arith.constant dense<0.000000e+00> : vector<8x256xf32>
    %223 = tpu.matmul %222, %221, %cst_78 {dimension_numbers = #tpu.dot_dimension_numbers<[1], [0], [0], [1], [0, 0, 1, 1], [], []>} : vector<8x144xbf16>, vector<144x256xbf16>, vector<8x256xf32> -> vector<8x256xf32>
    %c0_79 = arith.constant 0 : index
    %c0_80 = arith.constant 0 : index
    %224 = vector.load %arg19[%c0_79, %c0_80] : memref<8x1xf32, #tpu.memory_space<vmem>>, vector<8x1xf32>
    %225 = vector.broadcast %224 : vector<8x1xf32> to vector<8x256xf32>
    %226 = arith.addf %223, %225 : vector<8x256xf32>
    %c17_i32_81 = arith.constant 17 : i32
    %227 = tpu.dynamic_rotate %226 by %c17_i32_81 dim 1 : vector<8x256xf32>, i32 -> vector<8x256xf32>
    %228 = vector.extract_strided_slice %1 {offsets = [0, 0], sizes = [1, 256], strides = [1, 1]} : vector<9x256xf32> to vector<1x256xf32>
    %229 = vector.broadcast %228 : vector<1x256xf32> to vector<8x256xf32>
    %230 = arith.mulf %227, %229 : vector<8x256xf32>
    %c16_i32_82 = arith.constant 16 : i32
    %231 = tpu.dynamic_rotate %226 by %c16_i32_82 dim 1 : vector<8x256xf32>, i32 -> vector<8x256xf32>
    %232 = vector.extract_strided_slice %1 {offsets = [1, 0], sizes = [1, 256], strides = [1, 1]} : vector<9x256xf32> to vector<1x256xf32>
    %233 = vector.broadcast %232 : vector<1x256xf32> to vector<8x256xf32>
    %234 = arith.mulf %231, %233 : vector<8x256xf32>
    %c15_i32_83 = arith.constant 15 : i32
    %235 = tpu.dynamic_rotate %226 by %c15_i32_83 dim 1 : vector<8x256xf32>, i32 -> vector<8x256xf32>
    %236 = vector.extract_strided_slice %1 {offsets = [2, 0], sizes = [1, 256], strides = [1, 1]} : vector<9x256xf32> to vector<1x256xf32>
    %237 = vector.broadcast %236 : vector<1x256xf32> to vector<8x256xf32>
    %238 = arith.mulf %235, %237 : vector<8x256xf32>
    %c1_i32_84 = arith.constant 1 : i32
    %239 = tpu.dynamic_rotate %226 by %c1_i32_84 dim 1 : vector<8x256xf32>, i32 -> vector<8x256xf32>
    %240 = vector.extract_strided_slice %1 {offsets = [3, 0], sizes = [1, 256], strides = [1, 1]} : vector<9x256xf32> to vector<1x256xf32>
    %241 = vector.broadcast %240 : vector<1x256xf32> to vector<8x256xf32>
    %242 = arith.mulf %239, %241 : vector<8x256xf32>
    %c255_i32_85 = arith.constant 255 : i32
    %243 = tpu.dynamic_rotate %226 by %c255_i32_85 dim 1 : vector<8x256xf32>, i32 -> vector<8x256xf32>
    %244 = vector.extract_strided_slice %1 {offsets = [5, 0], sizes = [1, 256], strides = [1, 1]} : vector<9x256xf32> to vector<1x256xf32>
    %245 = vector.broadcast %244 : vector<1x256xf32> to vector<8x256xf32>
    %246 = arith.mulf %243, %245 : vector<8x256xf32>
    %c241_i32_86 = arith.constant 241 : i32
    %247 = tpu.dynamic_rotate %226 by %c241_i32_86 dim 1 : vector<8x256xf32>, i32 -> vector<8x256xf32>
    %248 = vector.extract_strided_slice %1 {offsets = [6, 0], sizes = [1, 256], strides = [1, 1]} : vector<9x256xf32> to vector<1x256xf32>
    %249 = vector.broadcast %248 : vector<1x256xf32> to vector<8x256xf32>
    %250 = arith.mulf %247, %249 : vector<8x256xf32>
    %c240_i32_87 = arith.constant 240 : i32
    %251 = tpu.dynamic_rotate %226 by %c240_i32_87 dim 1 : vector<8x256xf32>, i32 -> vector<8x256xf32>
    %252 = vector.extract_strided_slice %1 {offsets = [7, 0], sizes = [1, 256], strides = [1, 1]} : vector<9x256xf32> to vector<1x256xf32>
    %253 = vector.broadcast %252 : vector<1x256xf32> to vector<8x256xf32>
    %254 = arith.mulf %251, %253 : vector<8x256xf32>
    %c239_i32_88 = arith.constant 239 : i32
    %255 = tpu.dynamic_rotate %226 by %c239_i32_88 dim 1 : vector<8x256xf32>, i32 -> vector<8x256xf32>
    %256 = vector.extract_strided_slice %1 {offsets = [8, 0], sizes = [1, 256], strides = [1, 1]} : vector<9x256xf32> to vector<1x256xf32>
    %257 = vector.broadcast %256 : vector<1x256xf32> to vector<8x256xf32>
    %258 = arith.mulf %255, %257 : vector<8x256xf32>
    %259 = tpu.concatenate %230, %234, %238, %242, %226, %246, %250, %254, %258 in 0 : vector<8x256xf32>, vector<8x256xf32>, vector<8x256xf32>, vector<8x256xf32>, vector<8x256xf32>, vector<8x256xf32>, vector<8x256xf32>, vector<8x256xf32>, vector<8x256xf32> -> vector<72x256xf32>
    %260 = arith.truncf %259 : vector<72x256xf32> to vector<72x256xbf16>
    %c0_89 = arith.constant 0 : index
    %c0_90 = arith.constant 0 : index
    %261 = vector.load %arg20[%c0_89, %c0_90] : memref<8x72xbf16, #tpu.memory_space<vmem>>, vector<8x72xbf16>
    %cst_91 = arith.constant dense<0.000000e+00> : vector<8x256xf32>
    %262 = tpu.matmul %261, %260, %cst_91 {dimension_numbers = #tpu.dot_dimension_numbers<[1], [0], [0], [1], [0, 0, 1, 1], [], []>} : vector<8x72xbf16>, vector<72x256xbf16>, vector<8x256xf32> -> vector<8x256xf32>
    %c0_92 = arith.constant 0 : index
    %c0_93 = arith.constant 0 : index
    %263 = vector.load %arg21[%c0_92, %c0_93] : memref<8x1xf32, #tpu.memory_space<vmem>>, vector<8x1xf32>
    %264 = vector.broadcast %263 : vector<8x1xf32> to vector<8x256xf32>
    %265 = arith.addf %262, %264 : vector<8x256xf32>
    %266 = vector.extract_strided_slice %18 {offsets = [8, 0], sizes = [8, 256], strides = [1, 1]} : vector<16x256xf32> to vector<8x256xf32>
    %267 = vector.extract_strided_slice %13 {offsets = [8, 0], sizes = [8, 256], strides = [1, 1]} : vector<16x256xf32> to vector<8x256xf32>
    %268 = tpu.concatenate %266, %267 in 0 : vector<8x256xf32>, vector<8x256xf32> -> vector<16x256xf32>
    %c17_i32_94 = arith.constant 17 : i32
    %269 = tpu.dynamic_rotate %268 by %c17_i32_94 dim 1 : vector<16x256xf32>, i32 -> vector<16x256xf32>
    %270 = vector.extract_strided_slice %1 {offsets = [0, 0], sizes = [1, 256], strides = [1, 1]} : vector<9x256xf32> to vector<1x256xf32>
    %271 = vector.broadcast %270 : vector<1x256xf32> to vector<16x256xf32>
    %272 = arith.mulf %269, %271 : vector<16x256xf32>
    %c16_i32_95 = arith.constant 16 : i32
    %273 = tpu.dynamic_rotate %268 by %c16_i32_95 dim 1 : vector<16x256xf32>, i32 -> vector<16x256xf32>
    %274 = vector.extract_strided_slice %1 {offsets = [1, 0], sizes = [1, 256], strides = [1, 1]} : vector<9x256xf32> to vector<1x256xf32>
    %275 = vector.broadcast %274 : vector<1x256xf32> to vector<16x256xf32>
    %276 = arith.mulf %273, %275 : vector<16x256xf32>
    %c15_i32_96 = arith.constant 15 : i32
    %277 = tpu.dynamic_rotate %268 by %c15_i32_96 dim 1 : vector<16x256xf32>, i32 -> vector<16x256xf32>
    %278 = vector.extract_strided_slice %1 {offsets = [2, 0], sizes = [1, 256], strides = [1, 1]} : vector<9x256xf32> to vector<1x256xf32>
    %279 = vector.broadcast %278 : vector<1x256xf32> to vector<16x256xf32>
    %280 = arith.mulf %277, %279 : vector<16x256xf32>
    %c1_i32_97 = arith.constant 1 : i32
    %281 = tpu.dynamic_rotate %268 by %c1_i32_97 dim 1 : vector<16x256xf32>, i32 -> vector<16x256xf32>
    %282 = vector.extract_strided_slice %1 {offsets = [3, 0], sizes = [1, 256], strides = [1, 1]} : vector<9x256xf32> to vector<1x256xf32>
    %283 = vector.broadcast %282 : vector<1x256xf32> to vector<16x256xf32>
    %284 = arith.mulf %281, %283 : vector<16x256xf32>
    %c255_i32_98 = arith.constant 255 : i32
    %285 = tpu.dynamic_rotate %268 by %c255_i32_98 dim 1 : vector<16x256xf32>, i32 -> vector<16x256xf32>
    %286 = vector.extract_strided_slice %1 {offsets = [5, 0], sizes = [1, 256], strides = [1, 1]} : vector<9x256xf32> to vector<1x256xf32>
    %287 = vector.broadcast %286 : vector<1x256xf32> to vector<16x256xf32>
    %288 = arith.mulf %285, %287 : vector<16x256xf32>
    %c241_i32_99 = arith.constant 241 : i32
    %289 = tpu.dynamic_rotate %268 by %c241_i32_99 dim 1 : vector<16x256xf32>, i32 -> vector<16x256xf32>
    %290 = vector.extract_strided_slice %1 {offsets = [6, 0], sizes = [1, 256], strides = [1, 1]} : vector<9x256xf32> to vector<1x256xf32>
    %291 = vector.broadcast %290 : vector<1x256xf32> to vector<16x256xf32>
    %292 = arith.mulf %289, %291 : vector<16x256xf32>
    %c240_i32_100 = arith.constant 240 : i32
    %293 = tpu.dynamic_rotate %268 by %c240_i32_100 dim 1 : vector<16x256xf32>, i32 -> vector<16x256xf32>
    %294 = vector.extract_strided_slice %1 {offsets = [7, 0], sizes = [1, 256], strides = [1, 1]} : vector<9x256xf32> to vector<1x256xf32>
    %295 = vector.broadcast %294 : vector<1x256xf32> to vector<16x256xf32>
    %296 = arith.mulf %293, %295 : vector<16x256xf32>
    %c239_i32_101 = arith.constant 239 : i32
    %297 = tpu.dynamic_rotate %268 by %c239_i32_101 dim 1 : vector<16x256xf32>, i32 -> vector<16x256xf32>
    %298 = vector.extract_strided_slice %1 {offsets = [8, 0], sizes = [1, 256], strides = [1, 1]} : vector<9x256xf32> to vector<1x256xf32>
    %299 = vector.broadcast %298 : vector<1x256xf32> to vector<16x256xf32>
    %300 = arith.mulf %297, %299 : vector<16x256xf32>
    %301 = tpu.concatenate %272, %276, %280, %284, %268, %288, %292, %296, %300 in 0 : vector<16x256xf32>, vector<16x256xf32>, vector<16x256xf32>, vector<16x256xf32>, vector<16x256xf32>, vector<16x256xf32>, vector<16x256xf32>, vector<16x256xf32>, vector<16x256xf32> -> vector<144x256xf32>
    %302 = arith.truncf %301 : vector<144x256xf32> to vector<144x256xbf16>
    %c0_102 = arith.constant 0 : index
    %c0_103 = arith.constant 0 : index
    %303 = vector.load %arg10[%c0_102, %c0_103] : memref<8x144xbf16, #tpu.memory_space<vmem>>, vector<8x144xbf16>
    %cst_104 = arith.constant dense<0.000000e+00> : vector<8x256xf32>
    %304 = tpu.matmul %303, %302, %cst_104 {dimension_numbers = #tpu.dot_dimension_numbers<[1], [0], [0], [1], [0, 0, 1, 1], [], []>} : vector<8x144xbf16>, vector<144x256xbf16>, vector<8x256xf32> -> vector<8x256xf32>
    %c0_105 = arith.constant 0 : index
    %c0_106 = arith.constant 0 : index
    %305 = vector.load %arg11[%c0_105, %c0_106] : memref<8x1xf32, #tpu.memory_space<vmem>>, vector<8x1xf32>
    %306 = vector.broadcast %305 : vector<8x1xf32> to vector<8x256xf32>
    %307 = arith.addf %304, %306 : vector<8x256xf32>
    %cst_107 = arith.constant 0.000000e+00 : f32
    %308 = vector.broadcast %cst_107 : f32 to vector<8x256xf32>
    %309 = arith.maximumf %307, %308 : vector<8x256xf32>
    %310 = vector.extract_strided_slice %8 {offsets = [8, 0], sizes = [8, 256], strides = [1, 1]} : vector<16x256xf32> to vector<8x256xf32>
    %311 = tpu.concatenate %309, %310 in 0 : vector<8x256xf32>, vector<8x256xf32> -> vector<16x256xf32>
    %c17_i32_108 = arith.constant 17 : i32
    %312 = tpu.dynamic_rotate %311 by %c17_i32_108 dim 1 : vector<16x256xf32>, i32 -> vector<16x256xf32>
    %313 = vector.extract_strided_slice %1 {offsets = [0, 0], sizes = [1, 256], strides = [1, 1]} : vector<9x256xf32> to vector<1x256xf32>
    %314 = vector.broadcast %313 : vector<1x256xf32> to vector<16x256xf32>
    %315 = arith.mulf %312, %314 : vector<16x256xf32>
    %c16_i32_109 = arith.constant 16 : i32
    %316 = tpu.dynamic_rotate %311 by %c16_i32_109 dim 1 : vector<16x256xf32>, i32 -> vector<16x256xf32>
    %317 = vector.extract_strided_slice %1 {offsets = [1, 0], sizes = [1, 256], strides = [1, 1]} : vector<9x256xf32> to vector<1x256xf32>
    %318 = vector.broadcast %317 : vector<1x256xf32> to vector<16x256xf32>
    %319 = arith.mulf %316, %318 : vector<16x256xf32>
    %c15_i32_110 = arith.constant 15 : i32
    %320 = tpu.dynamic_rotate %311 by %c15_i32_110 dim 1 : vector<16x256xf32>, i32 -> vector<16x256xf32>
    %321 = vector.extract_strided_slice %1 {offsets = [2, 0], sizes = [1, 256], strides = [1, 1]} : vector<9x256xf32> to vector<1x256xf32>
    %322 = vector.broadcast %321 : vector<1x256xf32> to vector<16x256xf32>
    %323 = arith.mulf %320, %322 : vector<16x256xf32>
    %c1_i32_111 = arith.constant 1 : i32
    %324 = tpu.dynamic_rotate %311 by %c1_i32_111 dim 1 : vector<16x256xf32>, i32 -> vector<16x256xf32>
    %325 = vector.extract_strided_slice %1 {offsets = [3, 0], sizes = [1, 256], strides = [1, 1]} : vector<9x256xf32> to vector<1x256xf32>
    %326 = vector.broadcast %325 : vector<1x256xf32> to vector<16x256xf32>
    %327 = arith.mulf %324, %326 : vector<16x256xf32>
    %c255_i32_112 = arith.constant 255 : i32
    %328 = tpu.dynamic_rotate %311 by %c255_i32_112 dim 1 : vector<16x256xf32>, i32 -> vector<16x256xf32>
    %329 = vector.extract_strided_slice %1 {offsets = [5, 0], sizes = [1, 256], strides = [1, 1]} : vector<9x256xf32> to vector<1x256xf32>
    %330 = vector.broadcast %329 : vector<1x256xf32> to vector<16x256xf32>
    %331 = arith.mulf %328, %330 : vector<16x256xf32>
    %c241_i32_113 = arith.constant 241 : i32
    %332 = tpu.dynamic_rotate %311 by %c241_i32_113 dim 1 : vector<16x256xf32>, i32 -> vector<16x256xf32>
    %333 = vector.extract_strided_slice %1 {offsets = [6, 0], sizes = [1, 256], strides = [1, 1]} : vector<9x256xf32> to vector<1x256xf32>
    %334 = vector.broadcast %333 : vector<1x256xf32> to vector<16x256xf32>
    %335 = arith.mulf %332, %334 : vector<16x256xf32>
    %c240_i32_114 = arith.constant 240 : i32
    %336 = tpu.dynamic_rotate %311 by %c240_i32_114 dim 1 : vector<16x256xf32>, i32 -> vector<16x256xf32>
    %337 = vector.extract_strided_slice %1 {offsets = [7, 0], sizes = [1, 256], strides = [1, 1]} : vector<9x256xf32> to vector<1x256xf32>
    %338 = vector.broadcast %337 : vector<1x256xf32> to vector<16x256xf32>
    %339 = arith.mulf %336, %338 : vector<16x256xf32>
    %c239_i32_115 = arith.constant 239 : i32
    %340 = tpu.dynamic_rotate %311 by %c239_i32_115 dim 1 : vector<16x256xf32>, i32 -> vector<16x256xf32>
    %341 = vector.extract_strided_slice %1 {offsets = [8, 0], sizes = [1, 256], strides = [1, 1]} : vector<9x256xf32> to vector<1x256xf32>
    %342 = vector.broadcast %341 : vector<1x256xf32> to vector<16x256xf32>
    %343 = arith.mulf %340, %342 : vector<16x256xf32>
    %344 = tpu.concatenate %315, %319, %323, %327, %311, %331, %335, %339, %343 in 0 : vector<16x256xf32>, vector<16x256xf32>, vector<16x256xf32>, vector<16x256xf32>, vector<16x256xf32>, vector<16x256xf32>, vector<16x256xf32>, vector<16x256xf32>, vector<16x256xf32> -> vector<144x256xf32>
    %345 = arith.truncf %344 : vector<144x256xf32> to vector<144x256xbf16>
    %c0_116 = arith.constant 0 : index
    %c0_117 = arith.constant 0 : index
    %346 = vector.load %arg12[%c0_116, %c0_117] : memref<8x144xbf16, #tpu.memory_space<vmem>>, vector<8x144xbf16>
    %cst_118 = arith.constant dense<0.000000e+00> : vector<8x256xf32>
    %347 = tpu.matmul %346, %345, %cst_118 {dimension_numbers = #tpu.dot_dimension_numbers<[1], [0], [0], [1], [0, 0, 1, 1], [], []>} : vector<8x144xbf16>, vector<144x256xbf16>, vector<8x256xf32> -> vector<8x256xf32>
    %c0_119 = arith.constant 0 : index
    %c0_120 = arith.constant 0 : index
    %348 = vector.load %arg13[%c0_119, %c0_120] : memref<8x1xf32, #tpu.memory_space<vmem>>, vector<8x1xf32>
    %349 = vector.broadcast %348 : vector<8x1xf32> to vector<8x256xf32>
    %350 = arith.addf %347, %349 : vector<8x256xf32>
    %cst_121 = arith.constant 0.000000e+00 : f32
    %351 = vector.broadcast %cst_121 : f32 to vector<8x256xf32>
    %352 = arith.maximumf %350, %351 : vector<8x256xf32>
    %353 = vector.extract_strided_slice %3 {offsets = [8, 0], sizes = [8, 256], strides = [1, 1]} : vector<16x256xf32> to vector<8x256xf32>
    %354 = tpu.concatenate %352, %353 in 0 : vector<8x256xf32>, vector<8x256xf32> -> vector<16x256xf32>
    %c17_i32_122 = arith.constant 17 : i32
    %355 = tpu.dynamic_rotate %354 by %c17_i32_122 dim 1 : vector<16x256xf32>, i32 -> vector<16x256xf32>
    %356 = vector.extract_strided_slice %1 {offsets = [0, 0], sizes = [1, 256], strides = [1, 1]} : vector<9x256xf32> to vector<1x256xf32>
    %357 = vector.broadcast %356 : vector<1x256xf32> to vector<16x256xf32>
    %358 = arith.mulf %355, %357 : vector<16x256xf32>
    %c16_i32_123 = arith.constant 16 : i32
    %359 = tpu.dynamic_rotate %354 by %c16_i32_123 dim 1 : vector<16x256xf32>, i32 -> vector<16x256xf32>
    %360 = vector.extract_strided_slice %1 {offsets = [1, 0], sizes = [1, 256], strides = [1, 1]} : vector<9x256xf32> to vector<1x256xf32>
    %361 = vector.broadcast %360 : vector<1x256xf32> to vector<16x256xf32>
    %362 = arith.mulf %359, %361 : vector<16x256xf32>
    %c15_i32_124 = arith.constant 15 : i32
    %363 = tpu.dynamic_rotate %354 by %c15_i32_124 dim 1 : vector<16x256xf32>, i32 -> vector<16x256xf32>
    %364 = vector.extract_strided_slice %1 {offsets = [2, 0], sizes = [1, 256], strides = [1, 1]} : vector<9x256xf32> to vector<1x256xf32>
    %365 = vector.broadcast %364 : vector<1x256xf32> to vector<16x256xf32>
    %366 = arith.mulf %363, %365 : vector<16x256xf32>
    %c1_i32_125 = arith.constant 1 : i32
    %367 = tpu.dynamic_rotate %354 by %c1_i32_125 dim 1 : vector<16x256xf32>, i32 -> vector<16x256xf32>
    %368 = vector.extract_strided_slice %1 {offsets = [3, 0], sizes = [1, 256], strides = [1, 1]} : vector<9x256xf32> to vector<1x256xf32>
    %369 = vector.broadcast %368 : vector<1x256xf32> to vector<16x256xf32>
    %370 = arith.mulf %367, %369 : vector<16x256xf32>
    %c255_i32_126 = arith.constant 255 : i32
    %371 = tpu.dynamic_rotate %354 by %c255_i32_126 dim 1 : vector<16x256xf32>, i32 -> vector<16x256xf32>
    %372 = vector.extract_strided_slice %1 {offsets = [5, 0], sizes = [1, 256], strides = [1, 1]} : vector<9x256xf32> to vector<1x256xf32>
    %373 = vector.broadcast %372 : vector<1x256xf32> to vector<16x256xf32>
    %374 = arith.mulf %371, %373 : vector<16x256xf32>
    %c241_i32_127 = arith.constant 241 : i32
    %375 = tpu.dynamic_rotate %354 by %c241_i32_127 dim 1 : vector<16x256xf32>, i32 -> vector<16x256xf32>
    %376 = vector.extract_strided_slice %1 {offsets = [6, 0], sizes = [1, 256], strides = [1, 1]} : vector<9x256xf32> to vector<1x256xf32>
    %377 = vector.broadcast %376 : vector<1x256xf32> to vector<16x256xf32>
    %378 = arith.mulf %375, %377 : vector<16x256xf32>
    %c240_i32_128 = arith.constant 240 : i32
    %379 = tpu.dynamic_rotate %354 by %c240_i32_128 dim 1 : vector<16x256xf32>, i32 -> vector<16x256xf32>
    %380 = vector.extract_strided_slice %1 {offsets = [7, 0], sizes = [1, 256], strides = [1, 1]} : vector<9x256xf32> to vector<1x256xf32>
    %381 = vector.broadcast %380 : vector<1x256xf32> to vector<16x256xf32>
    %382 = arith.mulf %379, %381 : vector<16x256xf32>
    %c239_i32_129 = arith.constant 239 : i32
    %383 = tpu.dynamic_rotate %354 by %c239_i32_129 dim 1 : vector<16x256xf32>, i32 -> vector<16x256xf32>
    %384 = vector.extract_strided_slice %1 {offsets = [8, 0], sizes = [1, 256], strides = [1, 1]} : vector<9x256xf32> to vector<1x256xf32>
    %385 = vector.broadcast %384 : vector<1x256xf32> to vector<16x256xf32>
    %386 = arith.mulf %383, %385 : vector<16x256xf32>
    %387 = tpu.concatenate %358, %362, %366, %370, %354, %374, %378, %382, %386 in 0 : vector<16x256xf32>, vector<16x256xf32>, vector<16x256xf32>, vector<16x256xf32>, vector<16x256xf32>, vector<16x256xf32>, vector<16x256xf32>, vector<16x256xf32>, vector<16x256xf32> -> vector<144x256xf32>
    %388 = arith.truncf %387 : vector<144x256xf32> to vector<144x256xbf16>
    %c0_130 = arith.constant 0 : index
    %c0_131 = arith.constant 0 : index
    %389 = vector.load %arg14[%c0_130, %c0_131] : memref<8x144xbf16, #tpu.memory_space<vmem>>, vector<8x144xbf16>
    %cst_132 = arith.constant dense<0.000000e+00> : vector<8x256xf32>
    %390 = tpu.matmul %389, %388, %cst_132 {dimension_numbers = #tpu.dot_dimension_numbers<[1], [0], [0], [1], [0, 0, 1, 1], [], []>} : vector<8x144xbf16>, vector<144x256xbf16>, vector<8x256xf32> -> vector<8x256xf32>
    %c0_133 = arith.constant 0 : index
    %c0_134 = arith.constant 0 : index
    %391 = vector.load %arg15[%c0_133, %c0_134] : memref<8x1xf32, #tpu.memory_space<vmem>>, vector<8x1xf32>
    %392 = vector.broadcast %391 : vector<8x1xf32> to vector<8x256xf32>
    %393 = arith.addf %390, %392 : vector<8x256xf32>
    %cst_135 = arith.constant 0.000000e+00 : f32
    %394 = vector.broadcast %cst_135 : f32 to vector<8x256xf32>
    %395 = arith.maximumf %393, %394 : vector<8x256xf32>
    %c17_i32_136 = arith.constant 17 : i32
    %396 = tpu.dynamic_rotate %395 by %c17_i32_136 dim 1 : vector<8x256xf32>, i32 -> vector<8x256xf32>
    %397 = vector.extract_strided_slice %1 {offsets = [0, 0], sizes = [1, 256], strides = [1, 1]} : vector<9x256xf32> to vector<1x256xf32>
    %398 = vector.broadcast %397 : vector<1x256xf32> to vector<8x256xf32>
    %399 = arith.mulf %396, %398 : vector<8x256xf32>
    %c16_i32_137 = arith.constant 16 : i32
    %400 = tpu.dynamic_rotate %395 by %c16_i32_137 dim 1 : vector<8x256xf32>, i32 -> vector<8x256xf32>
    %401 = vector.extract_strided_slice %1 {offsets = [1, 0], sizes = [1, 256], strides = [1, 1]} : vector<9x256xf32> to vector<1x256xf32>
    %402 = vector.broadcast %401 : vector<1x256xf32> to vector<8x256xf32>
    %403 = arith.mulf %400, %402 : vector<8x256xf32>
    %c15_i32_138 = arith.constant 15 : i32
    %404 = tpu.dynamic_rotate %395 by %c15_i32_138 dim 1 : vector<8x256xf32>, i32 -> vector<8x256xf32>
    %405 = vector.extract_strided_slice %1 {offsets = [2, 0], sizes = [1, 256], strides = [1, 1]} : vector<9x256xf32> to vector<1x256xf32>
    %406 = vector.broadcast %405 : vector<1x256xf32> to vector<8x256xf32>
    %407 = arith.mulf %404, %406 : vector<8x256xf32>
    %c1_i32_139 = arith.constant 1 : i32
    %408 = tpu.dynamic_rotate %395 by %c1_i32_139 dim 1 : vector<8x256xf32>, i32 -> vector<8x256xf32>
    %409 = vector.extract_strided_slice %1 {offsets = [3, 0], sizes = [1, 256], strides = [1, 1]} : vector<9x256xf32> to vector<1x256xf32>
    %410 = vector.broadcast %409 : vector<1x256xf32> to vector<8x256xf32>
    %411 = arith.mulf %408, %410 : vector<8x256xf32>
    %c255_i32_140 = arith.constant 255 : i32
    %412 = tpu.dynamic_rotate %395 by %c255_i32_140 dim 1 : vector<8x256xf32>, i32 -> vector<8x256xf32>
    %413 = vector.extract_strided_slice %1 {offsets = [5, 0], sizes = [1, 256], strides = [1, 1]} : vector<9x256xf32> to vector<1x256xf32>
    %414 = vector.broadcast %413 : vector<1x256xf32> to vector<8x256xf32>
    %415 = arith.mulf %412, %414 : vector<8x256xf32>
    %c241_i32_141 = arith.constant 241 : i32
    %416 = tpu.dynamic_rotate %395 by %c241_i32_141 dim 1 : vector<8x256xf32>, i32 -> vector<8x256xf32>
    %417 = vector.extract_strided_slice %1 {offsets = [6, 0], sizes = [1, 256], strides = [1, 1]} : vector<9x256xf32> to vector<1x256xf32>
    %418 = vector.broadcast %417 : vector<1x256xf32> to vector<8x256xf32>
    %419 = arith.mulf %416, %418 : vector<8x256xf32>
    %c240_i32_142 = arith.constant 240 : i32
    %420 = tpu.dynamic_rotate %395 by %c240_i32_142 dim 1 : vector<8x256xf32>, i32 -> vector<8x256xf32>
    %421 = vector.extract_strided_slice %1 {offsets = [7, 0], sizes = [1, 256], strides = [1, 1]} : vector<9x256xf32> to vector<1x256xf32>
    %422 = vector.broadcast %421 : vector<1x256xf32> to vector<8x256xf32>
    %423 = arith.mulf %420, %422 : vector<8x256xf32>
    %c239_i32_143 = arith.constant 239 : i32
    %424 = tpu.dynamic_rotate %395 by %c239_i32_143 dim 1 : vector<8x256xf32>, i32 -> vector<8x256xf32>
    %425 = vector.extract_strided_slice %1 {offsets = [8, 0], sizes = [1, 256], strides = [1, 1]} : vector<9x256xf32> to vector<1x256xf32>
    %426 = vector.broadcast %425 : vector<1x256xf32> to vector<8x256xf32>
    %427 = arith.mulf %424, %426 : vector<8x256xf32>
    %428 = tpu.concatenate %399, %403, %407, %411, %395, %415, %419, %423, %427 in 0 : vector<8x256xf32>, vector<8x256xf32>, vector<8x256xf32>, vector<8x256xf32>, vector<8x256xf32>, vector<8x256xf32>, vector<8x256xf32>, vector<8x256xf32>, vector<8x256xf32> -> vector<72x256xf32>
    %429 = arith.truncf %428 : vector<72x256xf32> to vector<72x256xbf16>
    %c0_144 = arith.constant 0 : index
    %c0_145 = arith.constant 0 : index
    %430 = vector.load %arg16[%c0_144, %c0_145] : memref<16x72xbf16, #tpu.memory_space<vmem>>, vector<16x72xbf16>
    %cst_146 = arith.constant dense<0.000000e+00> : vector<16x256xf32>
    %431 = tpu.matmul %430, %429, %cst_146 {dimension_numbers = #tpu.dot_dimension_numbers<[1], [0], [0], [1], [0, 0, 1, 1], [], []>} : vector<16x72xbf16>, vector<72x256xbf16>, vector<16x256xf32> -> vector<16x256xf32>
    %c0_147 = arith.constant 0 : index
    %c0_148 = arith.constant 0 : index
    %432 = vector.load %arg17[%c0_147, %c0_148] : memref<16x1xf32, #tpu.memory_space<vmem>>, vector<16x1xf32>
    %433 = vector.broadcast %432 : vector<16x1xf32> to vector<16x256xf32>
    %434 = arith.addf %431, %433 : vector<16x256xf32>
    %c17_i32_149 = arith.constant 17 : i32
    %435 = tpu.dynamic_rotate %434 by %c17_i32_149 dim 1 : vector<16x256xf32>, i32 -> vector<16x256xf32>
    %436 = vector.extract_strided_slice %1 {offsets = [0, 0], sizes = [1, 256], strides = [1, 1]} : vector<9x256xf32> to vector<1x256xf32>
    %437 = vector.broadcast %436 : vector<1x256xf32> to vector<16x256xf32>
    %438 = arith.mulf %435, %437 : vector<16x256xf32>
    %c16_i32_150 = arith.constant 16 : i32
    %439 = tpu.dynamic_rotate %434 by %c16_i32_150 dim 1 : vector<16x256xf32>, i32 -> vector<16x256xf32>
    %440 = vector.extract_strided_slice %1 {offsets = [1, 0], sizes = [1, 256], strides = [1, 1]} : vector<9x256xf32> to vector<1x256xf32>
    %441 = vector.broadcast %440 : vector<1x256xf32> to vector<16x256xf32>
    %442 = arith.mulf %439, %441 : vector<16x256xf32>
    %c15_i32_151 = arith.constant 15 : i32
    %443 = tpu.dynamic_rotate %434 by %c15_i32_151 dim 1 : vector<16x256xf32>, i32 -> vector<16x256xf32>
    %444 = vector.extract_strided_slice %1 {offsets = [2, 0], sizes = [1, 256], strides = [1, 1]} : vector<9x256xf32> to vector<1x256xf32>
    %445 = vector.broadcast %444 : vector<1x256xf32> to vector<16x256xf32>
    %446 = arith.mulf %443, %445 : vector<16x256xf32>
    %c1_i32_152 = arith.constant 1 : i32
    %447 = tpu.dynamic_rotate %434 by %c1_i32_152 dim 1 : vector<16x256xf32>, i32 -> vector<16x256xf32>
    %448 = vector.extract_strided_slice %1 {offsets = [3, 0], sizes = [1, 256], strides = [1, 1]} : vector<9x256xf32> to vector<1x256xf32>
    %449 = vector.broadcast %448 : vector<1x256xf32> to vector<16x256xf32>
    %450 = arith.mulf %447, %449 : vector<16x256xf32>
    %c255_i32_153 = arith.constant 255 : i32
    %451 = tpu.dynamic_rotate %434 by %c255_i32_153 dim 1 : vector<16x256xf32>, i32 -> vector<16x256xf32>
    %452 = vector.extract_strided_slice %1 {offsets = [5, 0], sizes = [1, 256], strides = [1, 1]} : vector<9x256xf32> to vector<1x256xf32>
    %453 = vector.broadcast %452 : vector<1x256xf32> to vector<16x256xf32>
    %454 = arith.mulf %451, %453 : vector<16x256xf32>
    %c241_i32_154 = arith.constant 241 : i32
    %455 = tpu.dynamic_rotate %434 by %c241_i32_154 dim 1 : vector<16x256xf32>, i32 -> vector<16x256xf32>
    %456 = vector.extract_strided_slice %1 {offsets = [6, 0], sizes = [1, 256], strides = [1, 1]} : vector<9x256xf32> to vector<1x256xf32>
    %457 = vector.broadcast %456 : vector<1x256xf32> to vector<16x256xf32>
    %458 = arith.mulf %455, %457 : vector<16x256xf32>
    %c240_i32_155 = arith.constant 240 : i32
    %459 = tpu.dynamic_rotate %434 by %c240_i32_155 dim 1 : vector<16x256xf32>, i32 -> vector<16x256xf32>
    %460 = vector.extract_strided_slice %1 {offsets = [7, 0], sizes = [1, 256], strides = [1, 1]} : vector<9x256xf32> to vector<1x256xf32>
    %461 = vector.broadcast %460 : vector<1x256xf32> to vector<16x256xf32>
    %462 = arith.mulf %459, %461 : vector<16x256xf32>
    %c239_i32_156 = arith.constant 239 : i32
    %463 = tpu.dynamic_rotate %434 by %c239_i32_156 dim 1 : vector<16x256xf32>, i32 -> vector<16x256xf32>
    %464 = vector.extract_strided_slice %1 {offsets = [8, 0], sizes = [1, 256], strides = [1, 1]} : vector<9x256xf32> to vector<1x256xf32>
    %465 = vector.broadcast %464 : vector<1x256xf32> to vector<16x256xf32>
    %466 = arith.mulf %463, %465 : vector<16x256xf32>
    %467 = tpu.concatenate %438, %442, %446, %450, %434, %454, %458, %462, %466 in 0 : vector<16x256xf32>, vector<16x256xf32>, vector<16x256xf32>, vector<16x256xf32>, vector<16x256xf32>, vector<16x256xf32>, vector<16x256xf32>, vector<16x256xf32>, vector<16x256xf32> -> vector<144x256xf32>
    %468 = arith.truncf %467 : vector<144x256xf32> to vector<144x256xbf16>
    %c0_157 = arith.constant 0 : index
    %c0_158 = arith.constant 0 : index
    %469 = vector.load %arg18[%c0_157, %c0_158] : memref<8x144xbf16, #tpu.memory_space<vmem>>, vector<8x144xbf16>
    %cst_159 = arith.constant dense<0.000000e+00> : vector<8x256xf32>
    %470 = tpu.matmul %469, %468, %cst_159 {dimension_numbers = #tpu.dot_dimension_numbers<[1], [0], [0], [1], [0, 0, 1, 1], [], []>} : vector<8x144xbf16>, vector<144x256xbf16>, vector<8x256xf32> -> vector<8x256xf32>
    %c0_160 = arith.constant 0 : index
    %c0_161 = arith.constant 0 : index
    %471 = vector.load %arg19[%c0_160, %c0_161] : memref<8x1xf32, #tpu.memory_space<vmem>>, vector<8x1xf32>
    %472 = vector.broadcast %471 : vector<8x1xf32> to vector<8x256xf32>
    %473 = arith.addf %470, %472 : vector<8x256xf32>
    %c17_i32_162 = arith.constant 17 : i32
    %474 = tpu.dynamic_rotate %473 by %c17_i32_162 dim 1 : vector<8x256xf32>, i32 -> vector<8x256xf32>
    %475 = vector.extract_strided_slice %1 {offsets = [0, 0], sizes = [1, 256], strides = [1, 1]} : vector<9x256xf32> to vector<1x256xf32>
    %476 = vector.broadcast %475 : vector<1x256xf32> to vector<8x256xf32>
    %477 = arith.mulf %474, %476 : vector<8x256xf32>
    %c16_i32_163 = arith.constant 16 : i32
    %478 = tpu.dynamic_rotate %473 by %c16_i32_163 dim 1 : vector<8x256xf32>, i32 -> vector<8x256xf32>
    %479 = vector.extract_strided_slice %1 {offsets = [1, 0], sizes = [1, 256], strides = [1, 1]} : vector<9x256xf32> to vector<1x256xf32>
    %480 = vector.broadcast %479 : vector<1x256xf32> to vector<8x256xf32>
    %481 = arith.mulf %478, %480 : vector<8x256xf32>
    %c15_i32_164 = arith.constant 15 : i32
    %482 = tpu.dynamic_rotate %473 by %c15_i32_164 dim 1 : vector<8x256xf32>, i32 -> vector<8x256xf32>
    %483 = vector.extract_strided_slice %1 {offsets = [2, 0], sizes = [1, 256], strides = [1, 1]} : vector<9x256xf32> to vector<1x256xf32>
    %484 = vector.broadcast %483 : vector<1x256xf32> to vector<8x256xf32>
    %485 = arith.mulf %482, %484 : vector<8x256xf32>
    %c1_i32_165 = arith.constant 1 : i32
    %486 = tpu.dynamic_rotate %473 by %c1_i32_165 dim 1 : vector<8x256xf32>, i32 -> vector<8x256xf32>
    %487 = vector.extract_strided_slice %1 {offsets = [3, 0], sizes = [1, 256], strides = [1, 1]} : vector<9x256xf32> to vector<1x256xf32>
    %488 = vector.broadcast %487 : vector<1x256xf32> to vector<8x256xf32>
    %489 = arith.mulf %486, %488 : vector<8x256xf32>
    %c255_i32_166 = arith.constant 255 : i32
    %490 = tpu.dynamic_rotate %473 by %c255_i32_166 dim 1 : vector<8x256xf32>, i32 -> vector<8x256xf32>
    %491 = vector.extract_strided_slice %1 {offsets = [5, 0], sizes = [1, 256], strides = [1, 1]} : vector<9x256xf32> to vector<1x256xf32>
    %492 = vector.broadcast %491 : vector<1x256xf32> to vector<8x256xf32>
    %493 = arith.mulf %490, %492 : vector<8x256xf32>
    %c241_i32_167 = arith.constant 241 : i32
    %494 = tpu.dynamic_rotate %473 by %c241_i32_167 dim 1 : vector<8x256xf32>, i32 -> vector<8x256xf32>
    %495 = vector.extract_strided_slice %1 {offsets = [6, 0], sizes = [1, 256], strides = [1, 1]} : vector<9x256xf32> to vector<1x256xf32>
    %496 = vector.broadcast %495 : vector<1x256xf32> to vector<8x256xf32>
    %497 = arith.mulf %494, %496 : vector<8x256xf32>
    %c240_i32_168 = arith.constant 240 : i32
    %498 = tpu.dynamic_rotate %473 by %c240_i32_168 dim 1 : vector<8x256xf32>, i32 -> vector<8x256xf32>
    %499 = vector.extract_strided_slice %1 {offsets = [7, 0], sizes = [1, 256], strides = [1, 1]} : vector<9x256xf32> to vector<1x256xf32>
    %500 = vector.broadcast %499 : vector<1x256xf32> to vector<8x256xf32>
    %501 = arith.mulf %498, %500 : vector<8x256xf32>
    %c239_i32_169 = arith.constant 239 : i32
    %502 = tpu.dynamic_rotate %473 by %c239_i32_169 dim 1 : vector<8x256xf32>, i32 -> vector<8x256xf32>
    %503 = vector.extract_strided_slice %1 {offsets = [8, 0], sizes = [1, 256], strides = [1, 1]} : vector<9x256xf32> to vector<1x256xf32>
    %504 = vector.broadcast %503 : vector<1x256xf32> to vector<8x256xf32>
    %505 = arith.mulf %502, %504 : vector<8x256xf32>
    %506 = tpu.concatenate %477, %481, %485, %489, %473, %493, %497, %501, %505 in 0 : vector<8x256xf32>, vector<8x256xf32>, vector<8x256xf32>, vector<8x256xf32>, vector<8x256xf32>, vector<8x256xf32>, vector<8x256xf32>, vector<8x256xf32>, vector<8x256xf32> -> vector<72x256xf32>
    %507 = arith.truncf %506 : vector<72x256xf32> to vector<72x256xbf16>
    %c0_170 = arith.constant 0 : index
    %c0_171 = arith.constant 0 : index
    %508 = vector.load %arg20[%c0_170, %c0_171] : memref<8x72xbf16, #tpu.memory_space<vmem>>, vector<8x72xbf16>
    %cst_172 = arith.constant dense<0.000000e+00> : vector<8x256xf32>
    %509 = tpu.matmul %508, %507, %cst_172 {dimension_numbers = #tpu.dot_dimension_numbers<[1], [0], [0], [1], [0, 0, 1, 1], [], []>} : vector<8x72xbf16>, vector<72x256xbf16>, vector<8x256xf32> -> vector<8x256xf32>
    %c0_173 = arith.constant 0 : index
    %c0_174 = arith.constant 0 : index
    %510 = vector.load %arg21[%c0_173, %c0_174] : memref<8x1xf32, #tpu.memory_space<vmem>>, vector<8x1xf32>
    %511 = vector.broadcast %510 : vector<8x1xf32> to vector<8x256xf32>
    %512 = arith.addf %509, %511 : vector<8x256xf32>
    %513 = tpu.concatenate %265, %512 in 0 : vector<8x256xf32>, vector<8x256xf32> -> vector<16x256xf32>
    %514 = arith.truncf %513 : vector<16x256xf32> to vector<16x256xbf16>
    %c0_175 = arith.constant 0 : index
    %c0_176 = arith.constant 0 : index
    %515 = vector.load %arg8[%c0_175, %c0_176] : memref<256x256xbf16, #tpu.memory_space<vmem>>, vector<256x256xbf16>
    %cst_177 = arith.constant dense<0.000000e+00> : vector<16x256xf32>
    %516 = tpu.matmul %514, %515, %cst_177 {dimension_numbers = #tpu.dot_dimension_numbers<[1], [0], [0], [1], [0, 0, 1, 1], [], []>} : vector<16x256xbf16>, vector<256x256xbf16>, vector<16x256xf32> -> vector<16x256xf32>
    %c0_178 = arith.constant 0 : index
    %c0_179 = arith.constant 0 : index
    %c0_180 = arith.constant 0 : index
    %517 = vector.load %arg22[%c0_178, %c0_179, %c0_180] : memref<1x16x256xf32, #tpu.memory_space<vmem>>, vector<1x16x256xf32>
    %518 = vector.shape_cast %517 : vector<1x16x256xf32> to vector<16x256xf32>
    %519 = vector.shape_cast %516 : vector<16x256xf32> to vector<1x16x256xf32>
    tpu.vector_store %arg22[%c0_178, %c0_179, %c0_180], %519 {strides = array<i32>} : memref<1x16x256xf32, #tpu.memory_space<vmem>>, vector<1x16x256xf32>,
    return
  }
  func.func @transform_0(%arg0: i32) -> (i32, i32, i32) {
    %c0_i32 = arith.constant 0 : i32
    %c0_i32_0 = arith.constant 0 : i32
    %c0_i32_1 = arith.constant 0 : i32
    return %arg0, %c0_i32, %c0_i32_0 : i32, i32, i32
  }
  func.func @transform_1(%arg0: i32) -> (i32, i32, i32) {
    %c0_i32 = arith.constant 0 : i32
    %c0_i32_0 = arith.constant 0 : i32
    %c0_i32_1 = arith.constant 0 : i32
    return %arg0, %c0_i32, %c0_i32_0 : i32, i32, i32
  }
  func.func @transform_2(%arg0: i32) -> (i32, i32, i32) {
    %c0_i32 = arith.constant 0 : i32
    %c0_i32_0 = arith.constant 0 : i32
    %c0_i32_1 = arith.constant 0 : i32
    return %arg0, %c0_i32, %c0_i32_0 : i32, i32, i32
  }
  func.func @transform_3(%arg0: i32) -> (i32, i32, i32) {
    %c0_i32 = arith.constant 0 : i32
    %c0_i32_0 = arith.constant 0 : i32
    %c0_i32_1 = arith.constant 0 : i32
    return %arg0, %c0_i32, %c0_i32_0 : i32, i32, i32
  }
  func.func @transform_4(%arg0: i32) -> (i32, i32) {
    %c0_i32 = arith.constant 0 : i32
    %c0_i32_0 = arith.constant 0 : i32
    %c0_i32_1 = arith.constant 0 : i32
    return %c0_i32, %c0_i32_0 : i32, i32
  }
  func.func @transform_5(%arg0: i32) -> (i32, i32) {
    %c0_i32 = arith.constant 0 : i32
    %c0_i32_0 = arith.constant 0 : i32
    %c0_i32_1 = arith.constant 0 : i32
    return %c0_i32, %c0_i32_0 : i32, i32
  }
  func.func @transform_6(%arg0: i32) -> (i32, i32) {
    %c0_i32 = arith.constant 0 : i32
    %c0_i32_0 = arith.constant 0 : i32
    %c0_i32_1 = arith.constant 0 : i32
    return %c0_i32, %c0_i32_0 : i32, i32
  }
  func.func @transform_7(%arg0: i32) -> (i32, i32) {
    %c0_i32 = arith.constant 0 : i32
    %c0_i32_0 = arith.constant 0 : i32
    %c0_i32_1 = arith.constant 0 : i32
    return %c0_i32, %c0_i32_0 : i32, i32
  }
  func.func @transform_8(%arg0: i32) -> (i32, i32) {
    %c0_i32 = arith.constant 0 : i32
    %c0_i32_0 = arith.constant 0 : i32
    %c0_i32_1 = arith.constant 0 : i32
    return %c0_i32, %c0_i32_0 : i32, i32
  }
  func.func @transform_9(%arg0: i32) -> (i32, i32) {
    %c0_i32 = arith.constant 0 : i32
    %c0_i32_0 = arith.constant 0 : i32
    %c0_i32_1 = arith.constant 0 : i32
    return %c0_i32, %c0_i32_0 : i32, i32
  }
  func.func @transform_10(%arg0: i32) -> (i32, i32) {
    %c0_i32 = arith.constant 0 : i32
    %c0_i32_0 = arith.constant 0 : i32
    %c0_i32_1 = arith.constant 0 : i32
    return %c0_i32, %c0_i32_0 : i32, i32
  }
  func.func @transform_11(%arg0: i32) -> (i32, i32) {
    %c0_i32 = arith.constant 0 : i32
    %c0_i32_0 = arith.constant 0 : i32
    %c0_i32_1 = arith.constant 0 : i32
    return %c0_i32, %c0_i32_0 : i32, i32
  }
  func.func @transform_12(%arg0: i32) -> (i32, i32) {
    %c0_i32 = arith.constant 0 : i32
    %c0_i32_0 = arith.constant 0 : i32
    %c0_i32_1 = arith.constant 0 : i32
    return %c0_i32, %c0_i32_0 : i32, i32
  }
  func.func @transform_13(%arg0: i32) -> (i32, i32) {
    %c0_i32 = arith.constant 0 : i32
    %c0_i32_0 = arith.constant 0 : i32
    %c0_i32_1 = arith.constant 0 : i32
    return %c0_i32, %c0_i32_0 : i32, i32
  }
  func.func @transform_14(%arg0: i32) -> (i32, i32) {
    %c0_i32 = arith.constant 0 : i32
    %c0_i32_0 = arith.constant 0 : i32
    %c0_i32_1 = arith.constant 0 : i32
    return %c0_i32, %c0_i32_0 : i32, i32
  }
  func.func @transform_15(%arg0: i32) -> (i32, i32) {
    %c0_i32 = arith.constant 0 : i32
    %c0_i32_0 = arith.constant 0 : i32
    %c0_i32_1 = arith.constant 0 : i32
    return %c0_i32, %c0_i32_0 : i32, i32
  }
  func.func @transform_16(%arg0: i32) -> (i32, i32) {
    %c0_i32 = arith.constant 0 : i32
    %c0_i32_0 = arith.constant 0 : i32
    %c0_i32_1 = arith.constant 0 : i32
    return %c0_i32, %c0_i32_0 : i32, i32
  }
  func.func @transform_17(%arg0: i32) -> (i32, i32) {
    %c0_i32 = arith.constant 0 : i32
    %c0_i32_0 = arith.constant 0 : i32
    %c0_i32_1 = arith.constant 0 : i32
    return %c0_i32, %c0_i32_0 : i32, i32
  }
  func.func @transform_18(%arg0: i32) -> (i32, i32) {
    %c0_i32 = arith.constant 0 : i32
    %c0_i32_0 = arith.constant 0 : i32
    %c0_i32_1 = arith.constant 0 : i32
    return %c0_i32, %c0_i32_0 : i32, i32
  }
  func.func @transform_19(%arg0: i32) -> (i32, i32) {
    %c0_i32 = arith.constant 0 : i32
    %c0_i32_0 = arith.constant 0 : i32
    %c0_i32_1 = arith.constant 0 : i32
    return %c0_i32, %c0_i32_0 : i32, i32
  }
  func.func @transform_20(%arg0: i32) -> (i32, i32) {
    %c0_i32 = arith.constant 0 : i32
    %c0_i32_0 = arith.constant 0 : i32
    %c0_i32_1 = arith.constant 0 : i32
    return %c0_i32, %c0_i32_0 : i32, i32
  }
  func.func @transform_21(%arg0: i32) -> (i32, i32, i32) {
    %c0_i32 = arith.constant 0 : i32
    %c0_i32_0 = arith.constant 0 : i32
    %c0_i32_1 = arith.constant 0 : i32
    return %arg0, %c0_i32, %c0_i32_0 : i32, i32, i32
  }
}

</mosaic_0001>

<llo_original>
// kernel: simple_decoder_forward.1
$region0: #{simple_decoder_forward.1}
  #allocation0 [shape = 'u32[]', space=smem, size = 0x4, offset = 0x4, fixed_abs, tag = 'smem constant byte address 0x4 - core index']
  #allocation1 [shape = 'u32[72,128]{1,0:T(1,128)}', space=vmem, size = 0x9000, scoped, tag = 'internal scratch']
  %s0 = inlined_call_operand.vmem [shape: f32[1,16,256], index: 0, kind: input, shape index: {}]
  %s1 = inlined_call_operand.vmem [shape: f32[1,16,64], index: 1, kind: input, shape index: {}]
  %s2 = inlined_call_operand.vmem [shape: f32[1,16,16], index: 2, kind: input, shape index: {}]
  %s3 = inlined_call_operand.vmem [shape: f32[1,16,8], index: 3, kind: input, shape index: {}]
  %s4 = inlined_call_operand.vmem [shape: bf16[64,256], index: 4, kind: input, shape index: {}]
  %s5 = inlined_call_operand.vmem [shape: bf16[16,256], index: 5, kind: input, shape index: {}]
  %s6 = inlined_call_operand.vmem [shape: bf16[8,256], index: 6, kind: input, shape index: {}]
  %s7 = inlined_call_operand.vmem [shape: bf16[256,256], index: 7, kind: input, shape index: {}]
  %s8 = inlined_call_operand.vmem [shape: bf16[9,256], index: 8, kind: input, shape index: {}]
  %s9 = inlined_call_operand.vmem [shape: bf16[8,144], index: 9, kind: input, shape index: {}]
  %s10 = inlined_call_operand.vmem [shape: f32[8,1], index: 10, kind: input, shape index: {}]
  %s11 = inlined_call_operand.vmem [shape: bf16[8,144], index: 11, kind: input, shape index: {}]
  %s12 = inlined_call_operand.vmem [shape: f32[8,1], index: 12, kind: input, shape index: {}]
  %s13 = inlined_call_operand.vmem [shape: bf16[8,144], index: 13, kind: input, shape index: {}]
  %s14 = inlined_call_operand.vmem [shape: f32[8,1], index: 14, kind: input, shape index: {}]
  %s15 = inlined_call_operand.vmem [shape: bf16[16,72], index: 15, kind: input, shape index: {}]
  %s16 = inlined_call_operand.vmem [shape: f32[16,1], index: 16, kind: input, shape index: {}]
  %s17 = inlined_call_operand.vmem [shape: bf16[8,144], index: 17, kind: input, shape index: {}]
  %s18 = inlined_call_operand.vmem [shape: f32[8,1], index: 18, kind: input, shape index: {}]
  %s19 = inlined_call_operand.vmem [shape: bf16[8,72], index: 19, kind: input, shape index: {}]
  %s20 = inlined_call_operand.vmem [shape: f32[8,1], index: 20, kind: input, shape index: {}]
  %s21 = inlined_call_operand.vmem [shape: f32[1,16,256], index: 21, kind: output, shape index: {}]
  %s22 = sld [smem:[#allocation0]]
  $region94: #{simple_decoder_forward.1} parent=0
    _
  %s24 = ssub.s32 1, %s22
  %s25 = scalar_select 0, %s24, %s22
  // Predicated region
  $region2: #{simple_decoder_forward.1} parent=0 // pred_check
    _
  $region3: #{simple_decoder_forward.1} parent=0 // pred_check_branch
    %27 = sbr.rel (0) target = $region5
  $region4: #{simple_decoder_forward.1} parent=0 // pred_region
    _
  $region5: #{simple_decoder_forward.1} parent=0 // pred_fallthru
    _
  // Predicated region
  $region6: #{simple_decoder_forward.1} parent=0 // pred_check
    _
  $region7: #{simple_decoder_forward.1} parent=0 // pred_check_branch
    %29 = sbr.rel (0) target = $region9
  $region8: #{simple_decoder_forward.1} parent=0 // pred_region
    _
  $region9: #{simple_decoder_forward.1} parent=0 // pred_fallthru
    _
  // Predicated region
  $region10: #{simple_decoder_forward.1} parent=0 // pred_check
    _
  $region11: #{simple_decoder_forward.1} parent=0 // pred_check_branch
    %31 = sbr.rel (0) target = $region13
  $region12: #{simple_decoder_forward.1} parent=0 // pred_region
    _
  $region13: #{simple_decoder_forward.1} parent=0 // pred_fallthru
    _
  // Predicated region
  $region14: #{simple_decoder_forward.1} parent=0 // pred_check
    _
  $region15: #{simple_decoder_forward.1} parent=0 // pred_check_branch
    %33 = sbr.rel (0) target = $region17
  $region16: #{simple_decoder_forward.1} parent=0 // pred_region
    _
  $region17: #{simple_decoder_forward.1} parent=0 // pred_fallthru
    _
  // Predicated region
  $region18: #{simple_decoder_forward.1} parent=0 // pred_check
    _
  $region19: #{simple_decoder_forward.1} parent=0 // pred_check_branch
    %35 = sbr.rel (0) target = $region21
  $region20: #{simple_decoder_forward.1} parent=0 // pred_region
    _
  $region21: #{simple_decoder_forward.1} parent=0 // pred_fallthru
    _
  // Predicated region
  $region22: #{simple_decoder_forward.1} parent=0 // pred_check
    _
  $region23: #{simple_decoder_forward.1} parent=0 // pred_check_branch
    %37 = sbr.rel (0) target = $region25
  $region24: #{simple_decoder_forward.1} parent=0 // pred_region
    _
  $region25: #{simple_decoder_forward.1} parent=0 // pred_fallthru
    _
  // Predicated region
  $region26: #{simple_decoder_forward.1} parent=0 // pred_check
    _
  $region27: #{simple_decoder_forward.1} parent=0 // pred_check_branch
    %39 = sbr.rel (0) target = $region29
  $region28: #{simple_decoder_forward.1} parent=0 // pred_region
    _
  $region29: #{simple_decoder_forward.1} parent=0 // pred_fallthru
    _
  // Predicated region
  $region30: #{simple_decoder_forward.1} parent=0 // pred_check
    _
  $region31: #{simple_decoder_forward.1} parent=0 // pred_check_branch
    %41 = sbr.rel (0) target = $region33
  $region32: #{simple_decoder_forward.1} parent=0 // pred_region
    _
  $region33: #{simple_decoder_forward.1} parent=0 // pred_fallthru
    _
  // Predicated region
  $region34: #{simple_decoder_forward.1} parent=0 // pred_check
    _
  $region35: #{simple_decoder_forward.1} parent=0 // pred_check_branch
    %43 = sbr.rel (0) target = $region37
  $region36: #{simple_decoder_forward.1} parent=0 // pred_region
    _
  $region37: #{simple_decoder_forward.1} parent=0 // pred_fallthru
    _
  // Predicated region
  $region38: #{simple_decoder_forward.1} parent=0 // pred_check
    _
  $region39: #{simple_decoder_forward.1} parent=0 // pred_check_branch
    %45 = sbr.rel (0) target = $region41
  $region40: #{simple_decoder_forward.1} parent=0 // pred_region
    _
  $region41: #{simple_decoder_forward.1} parent=0 // pred_fallthru
    _
  // Predicated region
  $region42: #{simple_decoder_forward.1} parent=0 // pred_check
    _
  $region43: #{simple_decoder_forward.1} parent=0 // pred_check_branch
    %47 = sbr.rel (0) target = $region45
  $region44: #{simple_decoder_forward.1} parent=0 // pred_region
    _
  $region45: #{simple_decoder_forward.1} parent=0 // pred_fallthru
    _
  // Predicated region
  $region46: #{simple_decoder_forward.1} parent=0 // pred_check
    _
  $region47: #{simple_decoder_forward.1} parent=0 // pred_check_branch
    %49 = sbr.rel (0) target = $region49
  $region48: #{simple_decoder_forward.1} parent=0 // pred_region
    _
  $region49: #{simple_decoder_forward.1} parent=0 // pred_fallthru
    _
  // Predicated region
  $region50: #{simple_decoder_forward.1} parent=0 // pred_check
    _
  $region51: #{simple_decoder_forward.1} parent=0 // pred_check_branch
    %51 = sbr.rel (0) target = $region53
  $region52: #{simple_decoder_forward.1} parent=0 // pred_region
    _
  $region53: #{simple_decoder_forward.1} parent=0 // pred_fallthru
    _
  // Predicated region
  $region54: #{simple_decoder_forward.1} parent=0 // pred_check
    _
  $region55: #{simple_decoder_forward.1} parent=0 // pred_check_branch
    %53 = sbr.rel (0) target = $region57
  $region56: #{simple_decoder_forward.1} parent=0 // pred_region
    _
  $region57: #{simple_decoder_forward.1} parent=0 // pred_fallthru
    _
  // Predicated region
  $region58: #{simple_decoder_forward.1} parent=0 // pred_check
    _
  $region59: #{simple_decoder_forward.1} parent=0 // pred_check_branch
    %55 = sbr.rel (0) target = $region61
  $region60: #{simple_decoder_forward.1} parent=0 // pred_region
    _
  $region61: #{simple_decoder_forward.1} parent=0 // pred_fallthru
    _
  // Predicated region
  $region62: #{simple_decoder_forward.1} parent=0 // pred_check
    _
  $region63: #{simple_decoder_forward.1} parent=0 // pred_check_branch
    %57 = sbr.rel (0) target = $region65
  $region64: #{simple_decoder_forward.1} parent=0 // pred_region
    _
  $region65: #{simple_decoder_forward.1} parent=0 // pred_fallthru
    _
  // Predicated region
  $region66: #{simple_decoder_forward.1} parent=0 // pred_check
    _
  $region67: #{simple_decoder_forward.1} parent=0 // pred_check_branch
    %59 = sbr.rel (0) target = $region69
  $region68: #{simple_decoder_forward.1} parent=0 // pred_region
    _
  $region69: #{simple_decoder_forward.1} parent=0 // pred_fallthru
    _
  // Predicated region
  $region70: #{simple_decoder_forward.1} parent=0 // pred_check
    _
  $region71: #{simple_decoder_forward.1} parent=0 // pred_check_branch
    %61 = sbr.rel (0) target = $region73
  $region72: #{simple_decoder_forward.1} parent=0 // pred_region
    _
  $region73: #{simple_decoder_forward.1} parent=0 // pred_fallthru
    _
  // Predicated region
  $region74: #{simple_decoder_forward.1} parent=0 // pred_check
    _
  $region75: #{simple_decoder_forward.1} parent=0 // pred_check_branch
    %63 = sbr.rel (0) target = $region77
  $region76: #{simple_decoder_forward.1} parent=0 // pred_region
    _
  $region77: #{simple_decoder_forward.1} parent=0 // pred_fallthru
    _
  // Predicated region
  $region78: #{simple_decoder_forward.1} parent=0 // pred_check
    _
  $region79: #{simple_decoder_forward.1} parent=0 // pred_check_branch
    %65 = sbr.rel (0) target = $region81
  $region80: #{simple_decoder_forward.1} parent=0 // pred_region
    _
  $region81: #{simple_decoder_forward.1} parent=0 // pred_fallthru
    _
  // Predicated region
  $region82: #{simple_decoder_forward.1} parent=0 // pred_check
    _
  $region83: #{simple_decoder_forward.1} parent=0 // pred_check_branch
    %67 = sbr.rel (0) target = $region85
  $region84: #{simple_decoder_forward.1} parent=0 // pred_region
    _
  $region85: #{simple_decoder_forward.1} parent=0 // pred_fallthru
    _
  %v69 = vld [vmem:[%s8] sm:$0xff]
  %v70 = vld [vmem:[%s8 + $0x8] sm:$0x11]
  %v71 = vunpack.c.l.bf16 %v69
  %v72 = vunpack.c.h.bf16 %v69
  %v73 = vunpack.c.l.bf16 %v70
  %v74 = vunpack.c.h.bf16 %v70
  %v75 = vld [vmem:[%s0] sm:$0xff]
  %v76 = vld [vmem:[%s0 + $0x8] sm:$0xff]
  %v77 = vld [vmem:[%s0 + $0x10] sm:$0xff]
  %v78 = vld [vmem:[%s0 + $0x18] sm:$0xff]
  %v79 = vld [vmem:[%s1] sm:$0xff]
  %v80 = vld [vmem:[%s1 + $0x8] sm:$0xff]
  %v81 = vpack.c.bf16 %v80, %v79
  %v82 = vld [vmem:[%s4] sm:$0xff]
  %v83 = vld [vmem:[%s4 + $0x8] sm:$0xff]
  %v84 = vld [vmem:[%s4 + $0x10] sm:$0xff]
  %v85 = vld [vmem:[%s4 + $0x18] sm:$0xff]
  %v86 = vld [vmem:[%s4 + $0x20] sm:$0xff]
  %v87 = vld [vmem:[%s4 + $0x28] sm:$0xff]
  %v88 = vld [vmem:[%s4 + $0x30] sm:$0xff]
  %v89 = vld [vmem:[%s4 + $0x38] sm:$0xff]
  %v98 = vunpack.c.l.b16 %v82
  %v99 = vunpack.c.h.b16 %v82
  %v100 = vunpack.c.l.b16 %v83
  %v101 = vunpack.c.h.b16 %v83
  %v102 = vunpack.c.l.b16 %v84
  %v103 = vunpack.c.h.b16 %v84
  %v104 = vunpack.c.l.b16 %v85
  %v105 = vunpack.c.h.b16 %v85
  %v106 = vunpack.c.l.b16 %v86
  %v107 = vunpack.c.h.b16 %v86
  %v108 = vunpack.c.l.b16 %v87
  %v109 = vunpack.c.h.b16 %v87
  %v110 = vunpack.c.l.b16 %v88
  %v111 = vunpack.c.h.b16 %v88
  %v112 = vunpack.c.l.b16 %v89
  %v113 = vunpack.c.h.b16 %v89
  %v114 = vpack.c.b16 %v100, %v98
  %v115 = vpack.c.b16 %v101, %v99
  %v116 = vpack.c.b16 %v104, %v102
  %v117 = vpack.c.b16 %v105, %v103
  %v118 = vpack.c.b16 %v108, %v106
  %v119 = vpack.c.b16 %v109, %v107
  %v120 = vpack.c.b16 %v112, %v110
  %v121 = vpack.c.b16 %v113, %v111
  %vm130 = vcmask 523264
  %v132 = vsel %vm130, %v81, 0
  %134 = vmatpush.bf16.msra.mxu0 0
  %135 = vmatpush.bf16.msra.mxu0 0
  %136 = vmatpush.bf16.msra.mxu0 0
  %137 = vmatpush.bf16.msra.mxu0 0
  %138 = vmatpush.bf16.msra.mxu0 %v120
  %139 = vmatpush.bf16.msra.mxu0 %v118
  %140 = vmatpush.bf16.msra.mxu0 %v116
  %141 = vmatpush.bf16.msra.mxu0 %v114
  %142 = vmatmul.bf16.gmra.mxu0 %v132
  %v143 = vpop.f32.mrf.mxu0
  %v144 = vadd.f32 0.0, %v143
  %v145 = vpop.f32.mrf.mxu0
  %v146 = vadd.f32 0.0, %v145
  %147 = vdwg.mxu0
  %148 = vmatpush.bf16.msra.mxu0 0
  %149 = vmatpush.bf16.msra.mxu0 0
  %150 = vmatpush.bf16.msra.mxu0 0
  %151 = vmatpush.bf16.msra.mxu0 0
  %152 = vmatpush.bf16.msra.mxu0 %v121
  %153 = vmatpush.bf16.msra.mxu0 %v119
  %154 = vmatpush.bf16.msra.mxu0 %v117
  %155 = vmatpush.bf16.msra.mxu0 %v115
  %156 = vmatmul.bf16.gmra.mxu0 %v132
  %v157 = vpop.f32.mrf.mxu0
  %v158 = vadd.f32 0.0, %v157
  %v159 = vpop.f32.mrf.mxu0
  %v160 = vadd.f32 0.0, %v159
  %161 = vdwg.mxu0
  %v162 = vld [vmem:[%s2] sm:$0xff]
  %v163 = vld [vmem:[%s2 + $0x8] sm:$0xff]
  %v164 = vpack.c.bf16 %v163, %v162
  %v165 = vld [vmem:[%s5] sm:$0xff]
  %v166 = vld [vmem:[%s5 + $0x8] sm:$0xff]
  %v169 = vunpack.c.l.b16 %v165
  %v170 = vunpack.c.h.b16 %v165
  %v171 = vunpack.c.l.b16 %v166
  %v172 = vunpack.c.h.b16 %v166
  %v173 = vpack.c.b16 %v171, %v169
  %v174 = vpack.c.b16 %v172, %v170
  %vm177 = vcmask 130048
  %v179 = vsel %vm177, %v164, 0
  %181 = vmatpush.bf16.msra.mxu0 0
  %182 = vmatpush.bf16.msra.mxu0 0
  %183 = vmatpush.bf16.msra.mxu0 0
  %184 = vmatpush.bf16.msra.mxu0 0
  %185 = vmatpush.bf16.msra.mxu0 0
  %186 = vmatpush.bf16.msra.mxu0 0
  %187 = vmatpush.bf16.msra.mxu0 0
  %188 = vmatpush.bf16.msra.mxu0 %v173
  %189 = vmatmul.bf16.gmra.mxu0 %v179
  %v190 = vpop.f32.mrf.mxu0
  %v191 = vadd.f32 0.0, %v190
  %v192 = vpop.f32.mrf.mxu0
  %v193 = vadd.f32 0.0, %v192
  %194 = vdwg.mxu0
  %195 = vmatpush.bf16.msra.mxu0 0
  %196 = vmatpush.bf16.msra.mxu0 0
  %197 = vmatpush.bf16.msra.mxu0 0
  %198 = vmatpush.bf16.msra.mxu0 0
  %199 = vmatpush.bf16.msra.mxu0 0
  %200 = vmatpush.bf16.msra.mxu0 0
  %201 = vmatpush.bf16.msra.mxu0 0
  %202 = vmatpush.bf16.msra.mxu0 %v174
  %203 = vmatmul.bf16.gmra.mxu0 %v179
  %v204 = vpop.f32.mrf.mxu0
  %v205 = vadd.f32 0.0, %v204
  %v206 = vpop.f32.mrf.mxu0
  %v207 = vadd.f32 0.0, %v206
  %208 = vdwg.mxu0
  %v209 = vld [vmem:[%s3] sm:$0xff]
  %v210 = vld [vmem:[%s3 + $0x8] sm:$0xff]
  %v211 = vpack.c.bf16 %v210, %v209
  %v212 = vld [vmem:[%s6] sm:$0xff]
  %v214 = vunpack.c.l.b16 %v212
  %v215 = vunpack.c.h.b16 %v212
  %v216 = vpack.c.b16 %v214, %v214
  %v217 = vpack.c.b16 %v215, %v215
  %vm218 = vcmask 64512
  %v220 = vsel %vm218, %v211, 0
  %vm222 = vcmask 1043456
  %v224 = vsel %vm222, %v216, 0
  %v227 = vsel %vm222, %v217, 0
  %229 = vmatpush.bf16.msra.mxu0 0
  %230 = vmatpush.bf16.msra.mxu0 0
  %231 = vmatpush.bf16.msra.mxu0 0
  %232 = vmatpush.bf16.msra.mxu0 0
  %233 = vmatpush.bf16.msra.mxu0 0
  %234 = vmatpush.bf16.msra.mxu0 0
  %235 = vmatpush.bf16.msra.mxu0 0
  %236 = vmatpush.bf16.msra.mxu0 %v224
  %237 = vmatmul.bf16.gmra.mxu0 %v220
  %v238 = vpop.f32.mrf.mxu0
  %v239 = vadd.f32 0.0, %v238
  %v240 = vpop.f32.mrf.mxu0
  %v241 = vadd.f32 0.0, %v240
  %242 = vdwg.mxu0
  %243 = vmatpush.bf16.msra.mxu0 0
  %244 = vmatpush.bf16.msra.mxu0 0
  %245 = vmatpush.bf16.msra.mxu0 0
  %246 = vmatpush.bf16.msra.mxu0 0
  %247 = vmatpush.bf16.msra.mxu0 0
  %248 = vmatpush.bf16.msra.mxu0 0
  %249 = vmatpush.bf16.msra.mxu0 0
  %250 = vmatpush.bf16.msra.mxu0 %v227
  %251 = vmatmul.bf16.gmra.mxu0 %v220
  %v252 = vpop.f32.mrf.mxu0
  %v253 = vadd.f32 0.0, %v252
  %v254 = vpop.f32.mrf.mxu0
  %v255 = vadd.f32 0.0, %v254
  %256 = vdwg.mxu0
  %257 = vrot.lane.b32.xlu0 %v239, 17
  %v258 = vpop.permute.xlu0 %257
  %259 = vrot.lane.b32.xlu0 %v191, 17
  %v260 = vpop.permute.xlu0 %259
  %261 = vrot.lane.b32.xlu0 %v253, 17
  %v262 = vpop.permute.xlu0 %261
  %263 = vrot.lane.b32.xlu0 %v205, 17
  %v264 = vpop.permute.xlu0 %263
  %v265 = vlaneseq
  %v266 = vand.u32 %v265, 127
  %vm267 = vcmp.lt.s32.totalorder %v266, 17
  %v268 = vsel %vm267, %v258, %v262
  %v269 = vsel %vm267, %v260, %v264
  %v270 = vsel %vm267, %v262, %v258
  %v271 = vsel %vm267, %v264, %v260
  %v272 = vperm.slane %v71, 0
  %v273 = vperm.slane %v72, 0
  %v274 = vmul.f32 %v270, %v272
  %v275 = vmul.f32 %v268, %v273
  %v276 = vmul.f32 %v271, %v272
  %v277 = vmul.f32 %v269, %v273
  %278 = vrot.lane.b32.xlu0 %v239, 16
  %v279 = vpop.permute.xlu0 %278
  %280 = vrot.lane.b32.xlu0 %v191, 16
  %v281 = vpop.permute.xlu0 %280
  %282 = vrot.lane.b32.xlu0 %v253, 16
  %v283 = vpop.permute.xlu0 %282
  %284 = vrot.lane.b32.xlu0 %v205, 16
  %v285 = vpop.permute.xlu0 %284
  %vm286 = vcmp.lt.s32.totalorder %v266, 16
  %v287 = vsel %vm286, %v279, %v283
  %v288 = vsel %vm286, %v281, %v285
  %v289 = vsel %vm286, %v283, %v279
  %v290 = vsel %vm286, %v285, %v281
  %v291 = vperm.slane %v71, 1
  %v292 = vperm.slane %v72, 1
  %v293 = vmul.f32 %v289, %v291
  %v294 = vmul.f32 %v287, %v292
  %v295 = vmul.f32 %v290, %v291
  %v296 = vmul.f32 %v288, %v292
  %297 = vrot.lane.b32.xlu0 %v239, 15
  %v298 = vpop.permute.xlu0 %297
  %299 = vrot.lane.b32.xlu0 %v191, 15
  %v300 = vpop.permute.xlu0 %299
  %301 = vrot.lane.b32.xlu0 %v253, 15
  %v302 = vpop.permute.xlu0 %301
  %303 = vrot.lane.b32.xlu0 %v205, 15
  %v304 = vpop.permute.xlu0 %303
  %vm305 = vcmp.lt.s32.totalorder %v266, 15
  %v306 = vsel %vm305, %v298, %v302
  %v307 = vsel %vm305, %v300, %v304
  %v308 = vsel %vm305, %v302, %v298
  %v309 = vsel %vm305, %v304, %v300
  %v310 = vperm.slane %v71, 2
  %v311 = vperm.slane %v72, 2
  %v312 = vmul.f32 %v308, %v310
  %v313 = vmul.f32 %v306, %v311
  %v314 = vmul.f32 %v309, %v310
  %v315 = vmul.f32 %v307, %v311
  %316 = vrot.lane.b32.xlu0 %v239, 1
  %v317 = vpop.permute.xlu0 %316
  %318 = vrot.lane.b32.xlu0 %v191, 1
  %v319 = vpop.permute.xlu0 %318
  %320 = vrot.lane.b32.xlu0 %v253, 1
  %v321 = vpop.permute.xlu0 %320
  %322 = vrot.lane.b32.xlu0 %v205, 1
  %v323 = vpop.permute.xlu0 %322
  %vm324 = vcmp.lt.s32.totalorder %v266, 1
  %v325 = vsel %vm324, %v317, %v321
  %v326 = vsel %vm324, %v319, %v323
  %v327 = vsel %vm324, %v321, %v317
  %v328 = vsel %vm324, %v323, %v319
  %v329 = vperm.slane %v71, 3
  %v330 = vperm.slane %v72, 3
  %v331 = vmul.f32 %v327, %v329
  %v332 = vmul.f32 %v325, %v330
  %v333 = vmul.f32 %v328, %v329
  %v334 = vmul.f32 %v326, %v330
  %335 = vrot.lane.b32.xlu0 %v239, 127
  %v336 = vpop.permute.xlu0 %335
  %337 = vrot.lane.b32.xlu0 %v191, 127
  %v338 = vpop.permute.xlu0 %337
  %339 = vrot.lane.b32.xlu0 %v253, 127
  %v340 = vpop.permute.xlu0 %339
  %341 = vrot.lane.b32.xlu0 %v205, 127
  %v342 = vpop.permute.xlu0 %341
  %vm343 = vcmp.lt.s32.totalorder %v266, 127
  %v344 = vsel %vm343, %v336, %v340
  %v345 = vsel %vm343, %v338, %v342
  %v346 = vsel %vm343, %v340, %v336
  %v347 = vsel %vm343, %v342, %v338
  %v348 = vperm.slane %v71, 5
  %v349 = vperm.slane %v72, 5
  %v350 = vmul.f32 %v344, %v348
  %v351 = vmul.f32 %v346, %v349
  %v352 = vmul.f32 %v345, %v348
  %v353 = vmul.f32 %v347, %v349
  %354 = vrot.lane.b32.xlu0 %v239, 113
  %v355 = vpop.permute.xlu0 %354
  %356 = vrot.lane.b32.xlu0 %v191, 113
  %v357 = vpop.permute.xlu0 %356
  %358 = vrot.lane.b32.xlu0 %v253, 113
  %v359 = vpop.permute.xlu0 %358
  %360 = vrot.lane.b32.xlu0 %v205, 113
  %v361 = vpop.permute.xlu0 %360
  %vm362 = vcmp.lt.s32.totalorder %v266, 113
  %v363 = vsel %vm362, %v355, %v359
  %v364 = vsel %vm362, %v357, %v361
  %v365 = vsel %vm362, %v359, %v355
  %v366 = vsel %vm362, %v361, %v357
  %v367 = vperm.slane %v71, 6
  %v368 = vperm.slane %v72, 6
  %v369 = vmul.f32 %v363, %v367
  %v370 = vmul.f32 %v365, %v368
  %v371 = vmul.f32 %v364, %v367
  %v372 = vmul.f32 %v366, %v368
  %373 = vrot.lane.b32.xlu0 %v239, 112
  %v374 = vpop.permute.xlu0 %373
  %375 = vrot.lane.b32.xlu0 %v191, 112
  %v376 = vpop.permute.xlu0 %375
  %377 = vrot.lane.b32.xlu0 %v253, 112
  %v378 = vpop.permute.xlu0 %377
  %379 = vrot.lane.b32.xlu0 %v205, 112
  %v380 = vpop.permute.xlu0 %379
  %vm381 = vcmp.lt.s32.totalorder %v266, 112
  %v382 = vsel %vm381, %v374, %v378
  %v383 = vsel %vm381, %v376, %v380
  %v384 = vsel %vm381, %v378, %v374
  %v385 = vsel %vm381, %v380, %v376
  %v386 = vperm.slane %v71, 7
  %v387 = vperm.slane %v72, 7
  %v388 = vmul.f32 %v382, %v386
  %v389 = vmul.f32 %v384, %v387
  %v390 = vmul.f32 %v383, %v386
  %v391 = vmul.f32 %v385, %v387
  %392 = vrot.lane.b32.xlu0 %v239, 111
  %v393 = vpop.permute.xlu0 %392
  %394 = vrot.lane.b32.xlu0 %v191, 111
  %v395 = vpop.permute.xlu0 %394
  %396 = vrot.lane.b32.xlu0 %v253, 111
  %v397 = vpop.permute.xlu0 %396
  %398 = vrot.lane.b32.xlu0 %v205, 111
  %v399 = vpop.permute.xlu0 %398
  %vm400 = vcmp.lt.s32.totalorder %v266, 111
  %v401 = vsel %vm400, %v393, %v397
  %v402 = vsel %vm400, %v395, %v399
  %v403 = vsel %vm400, %v397, %v393
  %v404 = vsel %vm400, %v399, %v395
  %v405 = vperm.slane %v73, 0
  %v406 = vperm.slane %v74, 0
  %v407 = vmul.f32 %v401, %v405
  %v408 = vmul.f32 %v403, %v406
  %v409 = vmul.f32 %v402, %v405
  %v410 = vmul.f32 %v404, %v406
  %v411 = vpack.c.bf16 %v276, %v274
  %v412 = vpack.c.bf16 %v277, %v275
  %v413 = vpack.c.bf16 %v295, %v293
  %v414 = vpack.c.bf16 %v296, %v294
  %v415 = vpack.c.bf16 %v314, %v312
  %v416 = vpack.c.bf16 %v315, %v313
  %v417 = vpack.c.bf16 %v333, %v331
  %v418 = vpack.c.bf16 %v334, %v332
  %v419 = vpack.c.bf16 %v191, %v239
  %v420 = vpack.c.bf16 %v205, %v253
  %v421 = vpack.c.bf16 %v352, %v350
  %v422 = vpack.c.bf16 %v353, %v351
  %v423 = vpack.c.bf16 %v371, %v369
  %v424 = vpack.c.bf16 %v372, %v370
  %v425 = vpack.c.bf16 %v390, %v388
  %v426 = vpack.c.bf16 %v391, %v389
  %v427 = vpack.c.bf16 %v409, %v407
  %v428 = vpack.c.bf16 %v410, %v408
  %v429 = vld [vmem:[%s9] sm:$0xff]
  %v430 = vld [vmem:[%s10] sm:$0xff]
  %432 = vset.pattern.permute.xlu0 0
  %433 = vperm.xlu0 %432, %v430
  %v434 = vpop.permute.xlu0 %433
  %v437 = vunpack.c.l.b16 %v429
  %v438 = vunpack.c.h.b16 %v429
  %v439 = vpack.c.b16 %v437, %v437
  %v440 = vpack.c.b16 %v438, %v438
  %v443 = vsel %vm177, %v440, 0
  %445 = vmatpush.bf16.msra.mxu0 %v425
  %446 = vmatpush.bf16.msra.mxu0 %v423
  %447 = vmatpush.bf16.msra.mxu0 %v421
  %448 = vmatpush.bf16.msra.mxu0 %v419
  %449 = vmatpush.bf16.msra.mxu0 %v417
  %450 = vmatpush.bf16.msra.mxu0 %v415
  %451 = vmatpush.bf16.msra.mxu0 %v413
  %452 = vmatpush.bf16.msra.mxu0 %v411
  %453 = vmatmul.bf16.gmra.mxu0 %v439
  %v454 = vpop.f32.mrf.mxu0
  %v455 = vadd.f32 %v434, %v454
  %v456 = vpop.f32.mrf.mxu0
  %457 = vdwg.mxu0
  %458 = vmatpush.bf16.msra.mxu0 0
  %459 = vmatpush.bf16.msra.mxu0 0
  %460 = vmatpush.bf16.msra.mxu0 0
  %461 = vmatpush.bf16.msra.mxu0 0
  %462 = vmatpush.bf16.msra.mxu0 0
  %463 = vmatpush.bf16.msra.mxu0 0
  %464 = vmatpush.bf16.msra.mxu0 0
  %465 = vmatpush.bf16.msra.mxu0 %v427
  %466 = vmatmul.bf16.gmra.mxu0 %v443
  %v467 = vpop.f32.mrf.mxu0
  %v468 = vadd.f32 %v455, %v467
  %v469 = vpop.f32.mrf.mxu0
  %470 = vdwg.mxu0
  %471 = vmatpush.bf16.msra.mxu0 %v426
  %472 = vmatpush.bf16.msra.mxu0 %v424
  %473 = vmatpush.bf16.msra.mxu0 %v422
  %474 = vmatpush.bf16.msra.mxu0 %v420
  %475 = vmatpush.bf16.msra.mxu0 %v418
  %476 = vmatpush.bf16.msra.mxu0 %v416
  %477 = vmatpush.bf16.msra.mxu0 %v414
  %478 = vmatpush.bf16.msra.mxu0 %v412
  %479 = vmatmul.bf16.gmra.mxu0 %v439
  %v480 = vpop.f32.mrf.mxu0
  %v481 = vadd.f32 %v434, %v480
  %v482 = vpop.f32.mrf.mxu0
  %483 = vdwg.mxu0
  %484 = vmatpush.bf16.msra.mxu0 0
  %485 = vmatpush.bf16.msra.mxu0 0
  %486 = vmatpush.bf16.msra.mxu0 0
  %487 = vmatpush.bf16.msra.mxu0 0
  %488 = vmatpush.bf16.msra.mxu0 0
  %489 = vmatpush.bf16.msra.mxu0 0
  %490 = vmatpush.bf16.msra.mxu0 0
  %491 = vmatpush.bf16.msra.mxu0 %v428
  %492 = vmatmul.bf16.gmra.mxu0 %v443
  %v493 = vpop.f32.mrf.mxu0
  %v494 = vadd.f32 %v481, %v493
  %v495 = vpop.f32.mrf.mxu0
  %496 = vdwg.mxu0
  %v497 = vmax.f32 %v468, 0.0
  %v498 = vmax.f32 %v494, 0.0
  %499 = vrot.lane.b32.xlu0 %v497, 17
  %v500 = vpop.permute.xlu0 %499
  %501 = vrot.lane.b32.xlu0 %v144, 17
  %v502 = vpop.permute.xlu0 %501
  %503 = vrot.lane.b32.xlu0 %v498, 17
  %v504 = vpop.permute.xlu0 %503
  %505 = vrot.lane.b32.xlu0 %v158, 17
  %v506 = vpop.permute.xlu0 %505
  %v507 = vsel %vm267, %v500, %v504
  %v508 = vsel %vm267, %v502, %v506
  %v509 = vsel %vm267, %v504, %v500
  %v510 = vsel %vm267, %v506, %v502
  %v511 = vmul.f32 %v509, %v272
  %v512 = vmul.f32 %v507, %v273
  %v513 = vmul.f32 %v510, %v272
  %v514 = vmul.f32 %v508, %v273
  %515 = vrot.lane.b32.xlu0 %v497, 16
  %v516 = vpop.permute.xlu0 %515
  %517 = vrot.lane.b32.xlu0 %v144, 16
  %v518 = vpop.permute.xlu0 %517
  %519 = vrot.lane.b32.xlu0 %v498, 16
  %v520 = vpop.permute.xlu0 %519
  %521 = vrot.lane.b32.xlu0 %v158, 16
  %v522 = vpop.permute.xlu0 %521
  %v523 = vsel %vm286, %v516, %v520
  %v524 = vsel %vm286, %v518, %v522
  %v525 = vsel %vm286, %v520, %v516
  %v526 = vsel %vm286, %v522, %v518
  %v527 = vmul.f32 %v525, %v291
  %v528 = vmul.f32 %v523, %v292
  %v529 = vmul.f32 %v526, %v291
  %v530 = vmul.f32 %v524, %v292
  %531 = vrot.lane.b32.xlu0 %v497, 15
  %v532 = vpop.permute.xlu0 %531
  %533 = vrot.lane.b32.xlu0 %v144, 15
  %v534 = vpop.permute.xlu0 %533
  %535 = vrot.lane.b32.xlu0 %v498, 15
  %v536 = vpop.permute.xlu0 %535
  %537 = vrot.lane.b32.xlu0 %v158, 15
  %v538 = vpop.permute.xlu0 %537
  %v539 = vsel %vm305, %v532, %v536
  %v540 = vsel %vm305, %v534, %v538
  %v541 = vsel %vm305, %v536, %v532
  %v542 = vsel %vm305, %v538, %v534
  %v543 = vmul.f32 %v541, %v310
  %v544 = vmul.f32 %v539, %v311
  %v545 = vmul.f32 %v542, %v310
  %v546 = vmul.f32 %v540, %v311
  %547 = vrot.lane.b32.xlu0 %v497, 1
  %v548 = vpop.permute.xlu0 %547
  %549 = vrot.lane.b32.xlu0 %v144, 1
  %v550 = vpop.permute.xlu0 %549
  %551 = vrot.lane.b32.xlu0 %v498, 1
  %v552 = vpop.permute.xlu0 %551
  %553 = vrot.lane.b32.xlu0 %v158, 1
  %v554 = vpop.permute.xlu0 %553
  %v555 = vsel %vm324, %v548, %v552
  %v556 = vsel %vm324, %v550, %v554
  %v557 = vsel %vm324, %v552, %v548
  %v558 = vsel %vm324, %v554, %v550
  %v559 = vmul.f32 %v557, %v329
  %v560 = vmul.f32 %v555, %v330
  %v561 = vmul.f32 %v558, %v329
  %v562 = vmul.f32 %v556, %v330
  %563 = vrot.lane.b32.xlu0 %v497, 127
  %v564 = vpop.permute.xlu0 %563
  %565 = vrot.lane.b32.xlu0 %v144, 127
  %v566 = vpop.permute.xlu0 %565
  %567 = vrot.lane.b32.xlu0 %v498, 127
  %v568 = vpop.permute.xlu0 %567
  %569 = vrot.lane.b32.xlu0 %v158, 127
  %v570 = vpop.permute.xlu0 %569
  %v571 = vsel %vm343, %v564, %v568
  %v572 = vsel %vm343, %v566, %v570
  %v573 = vsel %vm343, %v568, %v564
  %v574 = vsel %vm343, %v570, %v566
  %v575 = vmul.f32 %v571, %v348
  %v576 = vmul.f32 %v573, %v349
  %v577 = vmul.f32 %v572, %v348
  %v578 = vmul.f32 %v574, %v349
  %579 = vrot.lane.b32.xlu0 %v497, 113
  %v580 = vpop.permute.xlu0 %579
  %581 = vrot.lane.b32.xlu0 %v144, 113
  %v582 = vpop.permute.xlu0 %581
  %583 = vrot.lane.b32.xlu0 %v498, 113
  %v584 = vpop.permute.xlu0 %583
  %585 = vrot.lane.b32.xlu0 %v158, 113
  %v586 = vpop.permute.xlu0 %585
  %v587 = vsel %vm362, %v580, %v584
  %v588 = vsel %vm362, %v582, %v586
  %v589 = vsel %vm362, %v584, %v580
  %v590 = vsel %vm362, %v586, %v582
  %v591 = vmul.f32 %v587, %v367
  %v592 = vmul.f32 %v589, %v368
  %v593 = vmul.f32 %v588, %v367
  %v594 = vmul.f32 %v590, %v368
  %595 = vrot.lane.b32.xlu0 %v497, 112
  %v596 = vpop.permute.xlu0 %595
  %597 = vrot.lane.b32.xlu0 %v144, 112
  %v598 = vpop.permute.xlu0 %597
  %599 = vrot.lane.b32.xlu0 %v498, 112
  %v600 = vpop.permute.xlu0 %599
  %601 = vrot.lane.b32.xlu0 %v158, 112
  %v602 = vpop.permute.xlu0 %601
  %v603 = vsel %vm381, %v596, %v600
  %v604 = vsel %vm381, %v598, %v602
  %v605 = vsel %vm381, %v600, %v596
  %v606 = vsel %vm381, %v602, %v598
  %v607 = vmul.f32 %v603, %v386
  %v608 = vmul.f32 %v605, %v387
  %v609 = vmul.f32 %v604, %v386
  %v610 = vmul.f32 %v606, %v387
  %611 = vrot.lane.b32.xlu0 %v497, 111
  %v612 = vpop.permute.xlu0 %611
  %613 = vrot.lane.b32.xlu0 %v144, 111
  %v614 = vpop.permute.xlu0 %613
  %615 = vrot.lane.b32.xlu0 %v498, 111
  %v616 = vpop.permute.xlu0 %615
  %617 = vrot.lane.b32.xlu0 %v158, 111
  %v618 = vpop.permute.xlu0 %617
  %v619 = vsel %vm400, %v612, %v616
  %v620 = vsel %vm400, %v614, %v618
  %v621 = vsel %vm400, %v616, %v612
  %v622 = vsel %vm400, %v618, %v614
  %v623 = vmul.f32 %v619, %v405
  %v624 = vmul.f32 %v621, %v406
  %v625 = vmul.f32 %v620, %v405
  %v626 = vmul.f32 %v622, %v406
  %v627 = vpack.c.bf16 %v513, %v511
  %v628 = vpack.c.bf16 %v514, %v512
  %v629 = vpack.c.bf16 %v529, %v527
  %v630 = vpack.c.bf16 %v530, %v528
  %v631 = vpack.c.bf16 %v545, %v543
  %v632 = vpack.c.bf16 %v546, %v544
  %v633 = vpack.c.bf16 %v561, %v559
  %v634 = vpack.c.bf16 %v562, %v560
  %v635 = vpack.c.bf16 %v144, %v497
  %v636 = vpack.c.bf16 %v158, %v498
  %v637 = vpack.c.bf16 %v577, %v575
  %v638 = vpack.c.bf16 %v578, %v576
  %v639 = vpack.c.bf16 %v593, %v591
  %v640 = vpack.c.bf16 %v594, %v592
  %v641 = vpack.c.bf16 %v609, %v607
  %v642 = vpack.c.bf16 %v610, %v608
  %v643 = vpack.c.bf16 %v625, %v623
  %v644 = vpack.c.bf16 %v626, %v624
  %v645 = vld [vmem:[%s11] sm:$0xff]
  %v646 = vld [vmem:[%s12] sm:$0xff]
  %648 = vset.pattern.permute.xlu0 0
  %649 = vperm.xlu0 %648, %v646
  %v650 = vpop.permute.xlu0 %649
  %v653 = vunpack.c.l.b16 %v645
  %v654 = vunpack.c.h.b16 %v645
  %v655 = vpack.c.b16 %v653, %v653
  %v656 = vpack.c.b16 %v654, %v654
  %v659 = vsel %vm177, %v656, 0
  %661 = vmatpush.bf16.msra.mxu0 %v641
  %662 = vmatpush.bf16.msra.mxu0 %v639
  %663 = vmatpush.bf16.msra.mxu0 %v637
  %664 = vmatpush.bf16.msra.mxu0 %v635
  %665 = vmatpush.bf16.msra.mxu0 %v633
  %666 = vmatpush.bf16.msra.mxu0 %v631
  %667 = vmatpush.bf16.msra.mxu0 %v629
  %668 = vmatpush.bf16.msra.mxu0 %v627
  %669 = vmatmul.bf16.gmra.mxu0 %v655
  %v670 = vpop.f32.mrf.mxu0
  %v671 = vadd.f32 %v650, %v670
  %v672 = vpop.f32.mrf.mxu0
  %673 = vdwg.mxu0
  %674 = vmatpush.bf16.msra.mxu0 0
  %675 = vmatpush.bf16.msra.mxu0 0
  %676 = vmatpush.bf16.msra.mxu0 0
  %677 = vmatpush.bf16.msra.mxu0 0
  %678 = vmatpush.bf16.msra.mxu0 0
  %679 = vmatpush.bf16.msra.mxu0 0
  %680 = vmatpush.bf16.msra.mxu0 0
  %681 = vmatpush.bf16.msra.mxu0 %v643
  %682 = vmatmul.bf16.gmra.mxu0 %v659
  %v683 = vpop.f32.mrf.mxu0
  %v684 = vadd.f32 %v671, %v683
  %v685 = vpop.f32.mrf.mxu0
  %686 = vdwg.mxu0
  %687 = vmatpush.bf16.msra.mxu0 %v642
  %688 = vmatpush.bf16.msra.mxu0 %v640
  %689 = vmatpush.bf16.msra.mxu0 %v638
  %690 = vmatpush.bf16.msra.mxu0 %v636
  %691 = vmatpush.bf16.msra.mxu0 %v634
  %692 = vmatpush.bf16.msra.mxu0 %v632
  %693 = vmatpush.bf16.msra.mxu0 %v630
  %694 = vmatpush.bf16.msra.mxu0 %v628
  %695 = vmatmul.bf16.gmra.mxu0 %v655
  %v696 = vpop.f32.mrf.mxu0
  %v697 = vadd.f32 %v650, %v696
  %v698 = vpop.f32.mrf.mxu0
  %699 = vdwg.mxu0
  %700 = vmatpush.bf16.msra.mxu0 0
  %701 = vmatpush.bf16.msra.mxu0 0
  %702 = vmatpush.bf16.msra.mxu0 0
  %703 = vmatpush.bf16.msra.mxu0 0
  %704 = vmatpush.bf16.msra.mxu0 0
  %705 = vmatpush.bf16.msra.mxu0 0
  %706 = vmatpush.bf16.msra.mxu0 0
  %707 = vmatpush.bf16.msra.mxu0 %v644
  %708 = vmatmul.bf16.gmra.mxu0 %v659
  %v709 = vpop.f32.mrf.mxu0
  %v710 = vadd.f32 %v697, %v709
  %v711 = vpop.f32.mrf.mxu0
  %712 = vdwg.mxu0
  %v713 = vmax.f32 %v684, 0.0
  %v714 = vmax.f32 %v710, 0.0
  %715 = vrot.lane.b32.xlu0 %v713, 17
  %v716 = vpop.permute.xlu0 %715
  %717 = vrot.lane.b32.xlu0 %v75, 17
  %v718 = vpop.permute.xlu0 %717
  %719 = vrot.lane.b32.xlu0 %v714, 17
  %v720 = vpop.permute.xlu0 %719
  %721 = vrot.lane.b32.xlu0 %v76, 17
  %v722 = vpop.permute.xlu0 %721
  %v723 = vsel %vm267, %v716, %v720
  %v724 = vsel %vm267, %v718, %v722
  %v725 = vsel %vm267, %v720, %v716
  %v726 = vsel %vm267, %v722, %v718
  %v727 = vmul.f32 %v725, %v272
  %v728 = vmul.f32 %v723, %v273
  %v729 = vmul.f32 %v726, %v272
  %v730 = vmul.f32 %v724, %v273
  %731 = vrot.lane.b32.xlu0 %v713, 16
  %v732 = vpop.permute.xlu0 %731
  %733 = vrot.lane.b32.xlu0 %v75, 16
  %v734 = vpop.permute.xlu0 %733
  %735 = vrot.lane.b32.xlu0 %v714, 16
  %v736 = vpop.permute.xlu0 %735
  %737 = vrot.lane.b32.xlu0 %v76, 16
  %v738 = vpop.permute.xlu0 %737
  %v739 = vsel %vm286, %v732, %v736
  %v740 = vsel %vm286, %v734, %v738
  %v741 = vsel %vm286, %v736, %v732
  %v742 = vsel %vm286, %v738, %v734
  %v743 = vmul.f32 %v741, %v291
  %v744 = vmul.f32 %v739, %v292
  %v745 = vmul.f32 %v742, %v291
  %v746 = vmul.f32 %v740, %v292
  %747 = vrot.lane.b32.xlu0 %v713, 15
  %v748 = vpop.permute.xlu0 %747
  %749 = vrot.lane.b32.xlu0 %v75, 15
  %v750 = vpop.permute.xlu0 %749
  %751 = vrot.lane.b32.xlu0 %v714, 15
  %v752 = vpop.permute.xlu0 %751
  %753 = vrot.lane.b32.xlu0 %v76, 15
  %v754 = vpop.permute.xlu0 %753
  %v755 = vsel %vm305, %v748, %v752
  %v756 = vsel %vm305, %v750, %v754
  %v757 = vsel %vm305, %v752, %v748
  %v758 = vsel %vm305, %v754, %v750
  %v759 = vmul.f32 %v757, %v310
  %v760 = vmul.f32 %v755, %v311
  %v761 = vmul.f32 %v758, %v310
  %v762 = vmul.f32 %v756, %v311
  %763 = vrot.lane.b32.xlu0 %v713, 1
  %v764 = vpop.permute.xlu0 %763
  %765 = vrot.lane.b32.xlu0 %v75, 1
  %v766 = vpop.permute.xlu0 %765
  %767 = vrot.lane.b32.xlu0 %v714, 1
  %v768 = vpop.permute.xlu0 %767
  %769 = vrot.lane.b32.xlu0 %v76, 1
  %v770 = vpop.permute.xlu0 %769
  %v771 = vsel %vm324, %v764, %v768
  %v772 = vsel %vm324, %v766, %v770
  %v773 = vsel %vm324, %v768, %v764
  %v774 = vsel %vm324, %v770, %v766
  %v775 = vmul.f32 %v773, %v329
  %v776 = vmul.f32 %v771, %v330
  %v777 = vmul.f32 %v774, %v329
  %v778 = vmul.f32 %v772, %v330
  %779 = vrot.lane.b32.xlu0 %v713, 127
  %v780 = vpop.permute.xlu0 %779
  %781 = vrot.lane.b32.xlu0 %v75, 127
  %v782 = vpop.permute.xlu0 %781
  %783 = vrot.lane.b32.xlu0 %v714, 127
  %v784 = vpop.permute.xlu0 %783
  %785 = vrot.lane.b32.xlu0 %v76, 127
  %v786 = vpop.permute.xlu0 %785
  %v787 = vsel %vm343, %v780, %v784
  %v788 = vsel %vm343, %v782, %v786
  %v789 = vsel %vm343, %v784, %v780
  %v790 = vsel %vm343, %v786, %v782
  %v791 = vmul.f32 %v787, %v348
  %v792 = vmul.f32 %v789, %v349
  %v793 = vmul.f32 %v788, %v348
  %v794 = vmul.f32 %v790, %v349
  %795 = vrot.lane.b32.xlu0 %v713, 113
  %v796 = vpop.permute.xlu0 %795
  %797 = vrot.lane.b32.xlu0 %v75, 113
  %v798 = vpop.permute.xlu0 %797
  %799 = vrot.lane.b32.xlu0 %v714, 113
  %v800 = vpop.permute.xlu0 %799
  %801 = vrot.lane.b32.xlu0 %v76, 113
  %v802 = vpop.permute.xlu0 %801
  %v803 = vsel %vm362, %v796, %v800
  %v804 = vsel %vm362, %v798, %v802
  %v805 = vsel %vm362, %v800, %v796
  %v806 = vsel %vm362, %v802, %v798
  %v807 = vmul.f32 %v803, %v367
  %v808 = vmul.f32 %v805, %v368
  %v809 = vmul.f32 %v804, %v367
  %v810 = vmul.f32 %v806, %v368
  %811 = vrot.lane.b32.xlu0 %v713, 112
  %v812 = vpop.permute.xlu0 %811
  %813 = vrot.lane.b32.xlu0 %v75, 112
  %v814 = vpop.permute.xlu0 %813
  %815 = vrot.lane.b32.xlu0 %v714, 112
  %v816 = vpop.permute.xlu0 %815
  %817 = vrot.lane.b32.xlu0 %v76, 112
  %v818 = vpop.permute.xlu0 %817
  %v819 = vsel %vm381, %v812, %v816
  %v820 = vsel %vm381, %v814, %v818
  %v821 = vsel %vm381, %v816, %v812
  %v822 = vsel %vm381, %v818, %v814
  %v823 = vmul.f32 %v819, %v386
  %v824 = vmul.f32 %v821, %v387
  %v825 = vmul.f32 %v820, %v386
  %v826 = vmul.f32 %v822, %v387
  %827 = vrot.lane.b32.xlu0 %v713, 111
  %v828 = vpop.permute.xlu0 %827
  %829 = vrot.lane.b32.xlu0 %v75, 111
  %v830 = vpop.permute.xlu0 %829
  %831 = vrot.lane.b32.xlu0 %v714, 111
  %v832 = vpop.permute.xlu0 %831
  %833 = vrot.lane.b32.xlu0 %v76, 111
  %v834 = vpop.permute.xlu0 %833
  %v835 = vsel %vm400, %v828, %v832
  %v836 = vsel %vm400, %v830, %v834
  %v837 = vsel %vm400, %v832, %v828
  %v838 = vsel %vm400, %v834, %v830
  %v839 = vmul.f32 %v835, %v405
  %v840 = vmul.f32 %v837, %v406
  %v841 = vmul.f32 %v836, %v405
  %v842 = vmul.f32 %v838, %v406
  %v843 = vpack.c.bf16 %v729, %v727
  %v844 = vpack.c.bf16 %v730, %v728
  %v845 = vpack.c.bf16 %v745, %v743
  %v846 = vpack.c.bf16 %v746, %v744
  %v847 = vpack.c.bf16 %v761, %v759
  %v848 = vpack.c.bf16 %v762, %v760
  %v849 = vpack.c.bf16 %v777, %v775
  %v850 = vpack.c.bf16 %v778, %v776
  %v851 = vpack.c.bf16 %v75, %v713
  %v852 = vpack.c.bf16 %v76, %v714
  %v853 = vpack.c.bf16 %v793, %v791
  %v854 = vpack.c.bf16 %v794, %v792
  %v855 = vpack.c.bf16 %v809, %v807
  %v856 = vpack.c.bf16 %v810, %v808
  %v857 = vpack.c.bf16 %v825, %v823
  %v858 = vpack.c.bf16 %v826, %v824
  %v859 = vpack.c.bf16 %v841, %v839
  %v860 = vpack.c.bf16 %v842, %v840
  %v861 = vld [vmem:[%s13] sm:$0xff]
  %v862 = vld [vmem:[%s14] sm:$0xff]
  %864 = vset.pattern.permute.xlu0 0
  %865 = vperm.xlu0 %864, %v862
  %v866 = vpop.permute.xlu0 %865
  %v869 = vunpack.c.l.b16 %v861
  %v870 = vunpack.c.h.b16 %v861
  %v871 = vpack.c.b16 %v869, %v869
  %v872 = vpack.c.b16 %v870, %v870
  %v875 = vsel %vm177, %v872, 0
  %877 = vmatpush.bf16.msra.mxu0 %v857
  %878 = vmatpush.bf16.msra.mxu0 %v855
  %879 = vmatpush.bf16.msra.mxu0 %v853
  %880 = vmatpush.bf16.msra.mxu0 %v851
  %881 = vmatpush.bf16.msra.mxu0 %v849
  %882 = vmatpush.bf16.msra.mxu0 %v847
  %883 = vmatpush.bf16.msra.mxu0 %v845
  %884 = vmatpush.bf16.msra.mxu0 %v843
  %885 = vmatmul.bf16.gmra.mxu0 %v871
  %v886 = vpop.f32.mrf.mxu0
  %v887 = vadd.f32 %v866, %v886
  %v888 = vpop.f32.mrf.mxu0
  %889 = vdwg.mxu0
  %890 = vmatpush.bf16.msra.mxu0 0
  %891 = vmatpush.bf16.msra.mxu0 0
  %892 = vmatpush.bf16.msra.mxu0 0
  %893 = vmatpush.bf16.msra.mxu0 0
  %894 = vmatpush.bf16.msra.mxu0 0
  %895 = vmatpush.bf16.msra.mxu0 0
  %896 = vmatpush.bf16.msra.mxu0 0
  %897 = vmatpush.bf16.msra.mxu0 %v859
  %898 = vmatmul.bf16.gmra.mxu0 %v875
  %v899 = vpop.f32.mrf.mxu0
  %v900 = vadd.f32 %v887, %v899
  %v901 = vpop.f32.mrf.mxu0
  %902 = vdwg.mxu0
  %903 = vmatpush.bf16.msra.mxu0 %v858
  %904 = vmatpush.bf16.msra.mxu0 %v856
  %905 = vmatpush.bf16.msra.mxu0 %v854
  %906 = vmatpush.bf16.msra.mxu0 %v852
  %907 = vmatpush.bf16.msra.mxu0 %v850
  %908 = vmatpush.bf16.msra.mxu0 %v848
  %909 = vmatpush.bf16.msra.mxu0 %v846
  %910 = vmatpush.bf16.msra.mxu0 %v844
  %911 = vmatmul.bf16.gmra.mxu0 %v871
  %v912 = vpop.f32.mrf.mxu0
  %v913 = vadd.f32 %v866, %v912
  %v914 = vpop.f32.mrf.mxu0
  %915 = vdwg.mxu0
  %916 = vmatpush.bf16.msra.mxu0 0
  %917 = vmatpush.bf16.msra.mxu0 0
  %918 = vmatpush.bf16.msra.mxu0 0
  %919 = vmatpush.bf16.msra.mxu0 0
  %920 = vmatpush.bf16.msra.mxu0 0
  %921 = vmatpush.bf16.msra.mxu0 0
  %922 = vmatpush.bf16.msra.mxu0 0
  %923 = vmatpush.bf16.msra.mxu0 %v860
  %924 = vmatmul.bf16.gmra.mxu0 %v875
  %v925 = vpop.f32.mrf.mxu0
  %v926 = vadd.f32 %v913, %v925
  %v927 = vpop.f32.mrf.mxu0
  %928 = vdwg.mxu0
  %v929 = vmax.f32 %v900, 0.0
  %v930 = vmax.f32 %v926, 0.0
  %931 = vrot.lane.b32.xlu0 %v929, 17
  %v932 = vpop.permute.xlu0 %931
  %933 = vrot.lane.b32.xlu0 %v930, 17
  %v934 = vpop.permute.xlu0 %933
  %v935 = vsel %vm267, %v932, %v934
  %v936 = vsel %vm267, %v934, %v932
  %v937 = vmul.f32 %v936, %v272
  %v938 = vmul.f32 %v935, %v273
  %939 = vrot.lane.b32.xlu0 %v929, 16
  %v940 = vpop.permute.xlu0 %939
  %941 = vrot.lane.b32.xlu0 %v930, 16
  %v942 = vpop.permute.xlu0 %941
  %v943 = vsel %vm286, %v940, %v942
  %v944 = vsel %vm286, %v942, %v940
  %v945 = vmul.f32 %v944, %v291
  %v946 = vmul.f32 %v943, %v292
  %947 = vrot.lane.b32.xlu0 %v929, 15
  %v948 = vpop.permute.xlu0 %947
  %949 = vrot.lane.b32.xlu0 %v930, 15
  %v950 = vpop.permute.xlu0 %949
  %v951 = vsel %vm305, %v948, %v950
  %v952 = vsel %vm305, %v950, %v948
  %v953 = vmul.f32 %v952, %v310
  %v954 = vmul.f32 %v951, %v311
  %955 = vrot.lane.b32.xlu0 %v929, 1
  %v956 = vpop.permute.xlu0 %955
  %957 = vrot.lane.b32.xlu0 %v930, 1
  %v958 = vpop.permute.xlu0 %957
  %v959 = vsel %vm324, %v956, %v958
  %v960 = vsel %vm324, %v958, %v956
  %v961 = vmul.f32 %v960, %v329
  %v962 = vmul.f32 %v959, %v330
  %963 = vrot.lane.b32.xlu0 %v929, 127
  %v964 = vpop.permute.xlu0 %963
  %965 = vrot.lane.b32.xlu0 %v930, 127
  %v966 = vpop.permute.xlu0 %965
  %v967 = vsel %vm343, %v964, %v966
  %v968 = vsel %vm343, %v966, %v964
  %v969 = vmul.f32 %v967, %v348
  %v970 = vmul.f32 %v968, %v349
  %971 = vrot.lane.b32.xlu0 %v929, 113
  %v972 = vpop.permute.xlu0 %971
  %973 = vrot.lane.b32.xlu0 %v930, 113
  %v974 = vpop.permute.xlu0 %973
  %v975 = vsel %vm362, %v972, %v974
  %v976 = vsel %vm362, %v974, %v972
  %v977 = vmul.f32 %v975, %v367
  %v978 = vmul.f32 %v976, %v368
  %979 = vrot.lane.b32.xlu0 %v929, 112
  %v980 = vpop.permute.xlu0 %979
  %981 = vrot.lane.b32.xlu0 %v930, 112
  %v982 = vpop.permute.xlu0 %981
  %v983 = vsel %vm381, %v980, %v982
  %v984 = vsel %vm381, %v982, %v980
  %v985 = vmul.f32 %v983, %v386
  %v986 = vmul.f32 %v984, %v387
  %987 = vrot.lane.b32.xlu0 %v929, 111
  %v988 = vpop.permute.xlu0 %987
  %989 = vrot.lane.b32.xlu0 %v930, 111
  %v990 = vpop.permute.xlu0 %989
  %v991 = vsel %vm400, %v988, %v990
  %v992 = vsel %vm400, %v990, %v988
  %v993 = vmul.f32 %v991, %v405
  %v994 = vmul.f32 %v992, %v406
  %v995 = vpack.c.bf16 %v945, %v937
  %v996 = vpack.c.bf16 %v946, %v938
  %v997 = vpack.c.bf16 %v961, %v953
  %v998 = vpack.c.bf16 %v962, %v954
  %v999 = vpack.c.bf16 %v969, %v929
  %v1000 = vpack.c.bf16 %v970, %v930
  %v1001 = vpack.c.bf16 %v985, %v977
  %v1002 = vpack.c.bf16 %v986, %v978
  %v1003 = vpack.c.bf16 %v993, %v993
  %v1004 = vpack.c.bf16 %v994, %v994
  %v1005 = vld [vmem:[%s15] sm:$0xf]
  %v1006 = vld [vmem:[%s15 + $0x4] sm:$0xf]
  %v1007 = vld [vmem:[%s16] sm:$0xff]
  %v1008 = vld [vmem:[%s16 + $0x8] sm:$0xff]
  %1010 = vset.pattern.permute.xlu0 0
  %1011 = vperm.xlu0 %1010, %v1007
  %v1012 = vpop.permute.xlu0 %1011
  %1015 = vset.pattern.permute.xlu0 0
  %1016 = vperm.xlu0 %1015, %v1008
  %v1017 = vpop.permute.xlu0 %1016
  %v1021 = vunpack.c.l.b16 %v1005
  %v1022 = vunpack.c.l.b16 %v1006
  %v1023 = vpack.c.b16 %v1022, %v1021
  %vm1024 = vcmask 588800
  %v1026 = vsel %vm1024, %v1023, 0
  %v1029 = vsel %vm222, %v1003, 0
  %v1032 = vsel %vm222, %v1004, 0
  %1034 = vmatpush.bf16.msra.mxu0 0
  %1035 = vmatpush.bf16.msra.mxu0 0
  %1036 = vmatpush.bf16.msra.mxu0 0
  %1037 = vmatpush.bf16.msra.mxu0 %v1029
  %1038 = vmatpush.bf16.msra.mxu0 %v1001
  %1039 = vmatpush.bf16.msra.mxu0 %v999
  %1040 = vmatpush.bf16.msra.mxu0 %v997
  %1041 = vmatpush.bf16.msra.mxu0 %v995
  %1042 = vmatmul.bf16.gmra.mxu0 %v1026
  %v1043 = vpop.f32.mrf.mxu0
  %v1044 = vadd.f32 %v1012, %v1043
  %v1045 = vpop.f32.mrf.mxu0
  %v1046 = vadd.f32 %v1017, %v1045
  %1047 = vdwg.mxu0
  %1048 = vmatpush.bf16.msra.mxu0 0
  %1049 = vmatpush.bf16.msra.mxu0 0
  %1050 = vmatpush.bf16.msra.mxu0 0
  %1051 = vmatpush.bf16.msra.mxu0 %v1032
  %1052 = vmatpush.bf16.msra.mxu0 %v1002
  %1053 = vmatpush.bf16.msra.mxu0 %v1000
  %1054 = vmatpush.bf16.msra.mxu0 %v998
  %1055 = vmatpush.bf16.msra.mxu0 %v996
  %1056 = vmatmul.bf16.gmra.mxu0 %v1026
  %v1057 = vpop.f32.mrf.mxu0
  %v1058 = vadd.f32 %v1012, %v1057
  %v1059 = vpop.f32.mrf.mxu0
  %v1060 = vadd.f32 %v1017, %v1059
  %1061 = vdwg.mxu0
  %1062 = vrot.lane.b32.xlu0 %v1044, 17
  %v1063 = vpop.permute.xlu0 %1062
  %1064 = vrot.lane.b32.xlu0 %v1046, 17
  %v1065 = vpop.permute.xlu0 %1064
  %1066 = vrot.lane.b32.xlu0 %v1058, 17
  %v1067 = vpop.permute.xlu0 %1066
  %1068 = vrot.lane.b32.xlu0 %v1060, 17
  %v1069 = vpop.permute.xlu0 %1068
  %v1070 = vsel %vm267, %v1063, %v1067
  %v1071 = vsel %vm267, %v1065, %v1069
  %v1072 = vsel %vm267, %v1067, %v1063
  %v1073 = vsel %vm267, %v1069, %v1065
  %v1074 = vmul.f32 %v1072, %v272
  %v1075 = vmul.f32 %v1070, %v273
  %v1076 = vmul.f32 %v1073, %v272
  %v1077 = vmul.f32 %v1071, %v273
  %1078 = vrot.lane.b32.xlu0 %v1044, 16
  %v1079 = vpop.permute.xlu0 %1078
  %1080 = vrot.lane.b32.xlu0 %v1046, 16
  %v1081 = vpop.permute.xlu0 %1080
  %1082 = vrot.lane.b32.xlu0 %v1058, 16
  %v1083 = vpop.permute.xlu0 %1082
  %1084 = vrot.lane.b32.xlu0 %v1060, 16
  %v1085 = vpop.permute.xlu0 %1084
  %v1086 = vsel %vm286, %v1079, %v1083
  %v1087 = vsel %vm286, %v1081, %v1085
  %v1088 = vsel %vm286, %v1083, %v1079
  %v1089 = vsel %vm286, %v1085, %v1081
  %v1090 = vmul.f32 %v1088, %v291
  %v1091 = vmul.f32 %v1086, %v292
  %v1092 = vmul.f32 %v1089, %v291
  %v1093 = vmul.f32 %v1087, %v292
  %1094 = vrot.lane.b32.xlu0 %v1044, 15
  %v1095 = vpop.permute.xlu0 %1094
  %1096 = vrot.lane.b32.xlu0 %v1046, 15
  %v1097 = vpop.permute.xlu0 %1096
  %1098 = vrot.lane.b32.xlu0 %v1058, 15
  %v1099 = vpop.permute.xlu0 %1098
  %1100 = vrot.lane.b32.xlu0 %v1060, 15
  %v1101 = vpop.permute.xlu0 %1100
  %v1102 = vsel %vm305, %v1095, %v1099
  %v1103 = vsel %vm305, %v1097, %v1101
  %v1104 = vsel %vm305, %v1099, %v1095
  %v1105 = vsel %vm305, %v1101, %v1097
  %v1106 = vmul.f32 %v1104, %v310
  %v1107 = vmul.f32 %v1102, %v311
  %v1108 = vmul.f32 %v1105, %v310
  %v1109 = vmul.f32 %v1103, %v311
  %1110 = vrot.lane.b32.xlu0 %v1044, 1
  %v1111 = vpop.permute.xlu0 %1110
  %1112 = vrot.lane.b32.xlu0 %v1046, 1
  %v1113 = vpop.permute.xlu0 %1112
  %1114 = vrot.lane.b32.xlu0 %v1058, 1
  %v1115 = vpop.permute.xlu0 %1114
  %1116 = vrot.lane.b32.xlu0 %v1060, 1
  %v1117 = vpop.permute.xlu0 %1116
  %v1118 = vsel %vm324, %v1111, %v1115
  %v1119 = vsel %vm324, %v1113, %v1117
  %v1120 = vsel %vm324, %v1115, %v1111
  %v1121 = vsel %vm324, %v1117, %v1113
  %v1122 = vmul.f32 %v1120, %v329
  %v1123 = vmul.f32 %v1118, %v330
  %v1124 = vmul.f32 %v1121, %v329
  %v1125 = vmul.f32 %v1119, %v330
  %1126 = vrot.lane.b32.xlu0 %v1044, 127
  %v1127 = vpop.permute.xlu0 %1126
  %1128 = vrot.lane.b32.xlu0 %v1046, 127
  %v1129 = vpop.permute.xlu0 %1128
  %1130 = vrot.lane.b32.xlu0 %v1058, 127
  %v1131 = vpop.permute.xlu0 %1130
  %1132 = vrot.lane.b32.xlu0 %v1060, 127
  %v1133 = vpop.permute.xlu0 %1132
  %v1134 = vsel %vm343, %v1127, %v1131
  %v1135 = vsel %vm343, %v1129, %v1133
  %v1136 = vsel %vm343, %v1131, %v1127
  %v1137 = vsel %vm343, %v1133, %v1129
  %v1138 = vmul.f32 %v1134, %v348
  %v1139 = vmul.f32 %v1136, %v349
  %v1140 = vmul.f32 %v1135, %v348
  %v1141 = vmul.f32 %v1137, %v349
  %1142 = vrot.lane.b32.xlu0 %v1044, 113
  %v1143 = vpop.permute.xlu0 %1142
  %1144 = vrot.lane.b32.xlu0 %v1046, 113
  %v1145 = vpop.permute.xlu0 %1144
  %1146 = vrot.lane.b32.xlu0 %v1058, 113
  %v1147 = vpop.permute.xlu0 %1146
  %1148 = vrot.lane.b32.xlu0 %v1060, 113
  %v1149 = vpop.permute.xlu0 %1148
  %v1150 = vsel %vm362, %v1143, %v1147
  %v1151 = vsel %vm362, %v1145, %v1149
  %v1152 = vsel %vm362, %v1147, %v1143
  %v1153 = vsel %vm362, %v1149, %v1145
  %v1154 = vmul.f32 %v1150, %v367
  %v1155 = vmul.f32 %v1152, %v368
  %v1156 = vmul.f32 %v1151, %v367
  %v1157 = vmul.f32 %v1153, %v368
  %1158 = vrot.lane.b32.xlu0 %v1044, 112
  %v1159 = vpop.permute.xlu0 %1158
  %1160 = vrot.lane.b32.xlu0 %v1046, 112
  %v1161 = vpop.permute.xlu0 %1160
  %1162 = vrot.lane.b32.xlu0 %v1058, 112
  %v1163 = vpop.permute.xlu0 %1162
  %1164 = vrot.lane.b32.xlu0 %v1060, 112
  %v1165 = vpop.permute.xlu0 %1164
  %v1166 = vsel %vm381, %v1159, %v1163
  %v1167 = vsel %vm381, %v1161, %v1165
  %v1168 = vsel %vm381, %v1163, %v1159
  %v1169 = vsel %vm381, %v1165, %v1161
  %v1170 = vmul.f32 %v1166, %v386
  %v1171 = vmul.f32 %v1168, %v387
  %v1172 = vmul.f32 %v1167, %v386
  %v1173 = vmul.f32 %v1169, %v387
  %1174 = vrot.lane.b32.xlu0 %v1044, 111
  %v1175 = vpop.permute.xlu0 %1174
  %1176 = vrot.lane.b32.xlu0 %v1046, 111
  %v1177 = vpop.permute.xlu0 %1176
  %1178 = vrot.lane.b32.xlu0 %v1058, 111
  %v1179 = vpop.permute.xlu0 %1178
  %1180 = vrot.lane.b32.xlu0 %v1060, 111
  %v1181 = vpop.permute.xlu0 %1180
  %v1182 = vsel %vm400, %v1175, %v1179
  %v1183 = vsel %vm400, %v1177, %v1181
  %v1184 = vsel %vm400, %v1179, %v1175
  %v1185 = vsel %vm400, %v1181, %v1177
  %v1186 = vmul.f32 %v1182, %v405
  %v1187 = vmul.f32 %v1184, %v406
  %v1188 = vmul.f32 %v1183, %v405
  %v1189 = vmul.f32 %v1185, %v406
  %v1190 = vpack.c.bf16 %v1076, %v1074
  %v1191 = vpack.c.bf16 %v1077, %v1075
  %v1192 = vpack.c.bf16 %v1092, %v1090
  %v1193 = vpack.c.bf16 %v1093, %v1091
  %v1194 = vpack.c.bf16 %v1108, %v1106
  %v1195 = vpack.c.bf16 %v1109, %v1107
  %v1196 = vpack.c.bf16 %v1124, %v1122
  %v1197 = vpack.c.bf16 %v1125, %v1123
  %v1198 = vpack.c.bf16 %v1046, %v1044
  %v1199 = vpack.c.bf16 %v1060, %v1058
  %v1200 = vpack.c.bf16 %v1140, %v1138
  %v1201 = vpack.c.bf16 %v1141, %v1139
  %v1202 = vpack.c.bf16 %v1156, %v1154
  %v1203 = vpack.c.bf16 %v1157, %v1155
  %v1204 = vpack.c.bf16 %v1172, %v1170
  %v1205 = vpack.c.bf16 %v1173, %v1171
  %v1206 = vpack.c.bf16 %v1188, %v1186
  %v1207 = vpack.c.bf16 %v1189, %v1187
  %v1208 = vld [vmem:[%s17] sm:$0xff]
  %v1209 = vld [vmem:[%s18] sm:$0xff]
  %1211 = vset.pattern.permute.xlu0 0
  %1212 = vperm.xlu0 %1211, %v1209
  %v1213 = vpop.permute.xlu0 %1212
  %v1216 = vunpack.c.l.b16 %v1208
  %v1217 = vunpack.c.h.b16 %v1208
  %v1218 = vpack.c.b16 %v1216, %v1216
  %v1219 = vpack.c.b16 %v1217, %v1217
  %v1222 = vsel %vm177, %v1219, 0
  %1224 = vmatpush.bf16.msra.mxu0 %v1204
  %1225 = vmatpush.bf16.msra.mxu0 %v1202
  %1226 = vmatpush.bf16.msra.mxu0 %v1200
  %1227 = vmatpush.bf16.msra.mxu0 %v1198
  %1228 = vmatpush.bf16.msra.mxu0 %v1196
  %1229 = vmatpush.bf16.msra.mxu0 %v1194
  %1230 = vmatpush.bf16.msra.mxu0 %v1192
  %1231 = vmatpush.bf16.msra.mxu0 %v1190
  %1232 = vmatmul.bf16.gmra.mxu0 %v1218
  %v1233 = vpop.f32.mrf.mxu0
  %v1234 = vadd.f32 %v1213, %v1233
  %v1235 = vpop.f32.mrf.mxu0
  %1236 = vdwg.mxu0
  %1237 = vmatpush.bf16.msra.mxu0 0
  %1238 = vmatpush.bf16.msra.mxu0 0
  %1239 = vmatpush.bf16.msra.mxu0 0
  %1240 = vmatpush.bf16.msra.mxu0 0
  %1241 = vmatpush.bf16.msra.mxu0 0
  %1242 = vmatpush.bf16.msra.mxu0 0
  %1243 = vmatpush.bf16.msra.mxu0 0
  %1244 = vmatpush.bf16.msra.mxu0 %v1206
  %1245 = vmatmul.bf16.gmra.mxu0 %v1222
  %v1246 = vpop.f32.mrf.mxu0
  %v1247 = vadd.f32 %v1234, %v1246
  %v1248 = vpop.f32.mrf.mxu0
  %1249 = vdwg.mxu0
  %1250 = vmatpush.bf16.msra.mxu0 %v1205
  %1251 = vmatpush.bf16.msra.mxu0 %v1203
  %1252 = vmatpush.bf16.msra.mxu0 %v1201
  %1253 = vmatpush.bf16.msra.mxu0 %v1199
  %1254 = vmatpush.bf16.msra.mxu0 %v1197
  %1255 = vmatpush.bf16.msra.mxu0 %v1195
  %1256 = vmatpush.bf16.msra.mxu0 %v1193
  %1257 = vmatpush.bf16.msra.mxu0 %v1191
  %1258 = vmatmul.bf16.gmra.mxu0 %v1218
  %v1259 = vpop.f32.mrf.mxu0
  %v1260 = vadd.f32 %v1213, %v1259
  %v1261 = vpop.f32.mrf.mxu0
  %1262 = vdwg.mxu0
  %1263 = vmatpush.bf16.msra.mxu0 0
  %1264 = vmatpush.bf16.msra.mxu0 0
  %1265 = vmatpush.bf16.msra.mxu0 0
  %1266 = vmatpush.bf16.msra.mxu0 0
  %1267 = vmatpush.bf16.msra.mxu0 0
  %1268 = vmatpush.bf16.msra.mxu0 0
  %1269 = vmatpush.bf16.msra.mxu0 0
  %1270 = vmatpush.bf16.msra.mxu0 %v1207
  %1271 = vmatmul.bf16.gmra.mxu0 %v1222
  %v1272 = vpop.f32.mrf.mxu0
  %v1273 = vadd.f32 %v1260, %v1272
  %v1274 = vpop.f32.mrf.mxu0
  %1275 = vdwg.mxu0
  %1276 = vrot.lane.b32.xlu0 %v1247, 17
  %v1277 = vpop.permute.xlu0 %1276
  %1278 = vrot.lane.b32.xlu0 %v1273, 17
  %v1279 = vpop.permute.xlu0 %1278
  %v1280 = vsel %vm267, %v1277, %v1279
  %v1281 = vsel %vm267, %v1279, %v1277
  %v1282 = vmul.f32 %v1281, %v272
  %v1283 = vmul.f32 %v1280, %v273
  %1284 = vrot.lane.b32.xlu0 %v1247, 16
  %v1285 = vpop.permute.xlu0 %1284
  %1286 = vrot.lane.b32.xlu0 %v1273, 16
  %v1287 = vpop.permute.xlu0 %1286
  %v1288 = vsel %vm286, %v1285, %v1287
  %v1289 = vsel %vm286, %v1287, %v1285
  %v1290 = vmul.f32 %v1289, %v291
  %v1291 = vmul.f32 %v1288, %v292
  %1292 = vrot.lane.b32.xlu0 %v1247, 15
  %v1293 = vpop.permute.xlu0 %1292
  %1294 = vrot.lane.b32.xlu0 %v1273, 15
  %v1295 = vpop.permute.xlu0 %1294
  %v1296 = vsel %vm305, %v1293, %v1295
  %v1297 = vsel %vm305, %v1295, %v1293
  %v1298 = vmul.f32 %v1297, %v310
  %v1299 = vmul.f32 %v1296, %v311
  %1300 = vrot.lane.b32.xlu0 %v1247, 1
  %v1301 = vpop.permute.xlu0 %1300
  %1302 = vrot.lane.b32.xlu0 %v1273, 1
  %v1303 = vpop.permute.xlu0 %1302
  %v1304 = vsel %vm324, %v1301, %v1303
  %v1305 = vsel %vm324, %v1303, %v1301
  %v1306 = vmul.f32 %v1305, %v329
  %v1307 = vmul.f32 %v1304, %v330
  %1308 = vrot.lane.b32.xlu0 %v1247, 127
  %v1309 = vpop.permute.xlu0 %1308
  %1310 = vrot.lane.b32.xlu0 %v1273, 127
  %v1311 = vpop.permute.xlu0 %1310
  %v1312 = vsel %vm343, %v1309, %v1311
  %v1313 = vsel %vm343, %v1311, %v1309
  %v1314 = vmul.f32 %v1312, %v348
  %v1315 = vmul.f32 %v1313, %v349
  %1316 = vrot.lane.b32.xlu0 %v1247, 113
  %v1317 = vpop.permute.xlu0 %1316
  %1318 = vrot.lane.b32.xlu0 %v1273, 113
  %v1319 = vpop.permute.xlu0 %1318
  %v1320 = vsel %vm362, %v1317, %v1319
  %v1321 = vsel %vm362, %v1319, %v1317
  %v1322 = vmul.f32 %v1320, %v367
  %v1323 = vmul.f32 %v1321, %v368
  %1324 = vrot.lane.b32.xlu0 %v1247, 112
  %v1325 = vpop.permute.xlu0 %1324
  %1326 = vrot.lane.b32.xlu0 %v1273, 112
  %v1327 = vpop.permute.xlu0 %1326
  %v1328 = vsel %vm381, %v1325, %v1327
  %v1329 = vsel %vm381, %v1327, %v1325
  %v1330 = vmul.f32 %v1328, %v386
  %v1331 = vmul.f32 %v1329, %v387
  %1332 = vrot.lane.b32.xlu0 %v1247, 111
  %v1333 = vpop.permute.xlu0 %1332
  %1334 = vrot.lane.b32.xlu0 %v1273, 111
  %v1335 = vpop.permute.xlu0 %1334
  %v1336 = vsel %vm400, %v1333, %v1335
  %v1337 = vsel %vm400, %v1335, %v1333
  %v1338 = vmul.f32 %v1336, %v405
  %v1339 = vmul.f32 %v1337, %v406
  %v1340 = vpack.c.bf16 %v1290, %v1282
  %v1341 = vpack.c.bf16 %v1291, %v1283
  %v1342 = vpack.c.bf16 %v1306, %v1298
  %v1343 = vpack.c.bf16 %v1307, %v1299
  %v1344 = vpack.c.bf16 %v1314, %v1247
  %v1345 = vpack.c.bf16 %v1315, %v1273
  %v1346 = vpack.c.bf16 %v1330, %v1322
  %v1347 = vpack.c.bf16 %v1331, %v1323
  %v1348 = vpack.c.bf16 %v1338, %v1338
  %v1349 = vpack.c.bf16 %v1339, %v1339
  %v1350 = vld [vmem:[%s19] sm:$0xf]
  %v1351 = vld [vmem:[%s20] sm:$0xff]
  %1353 = vset.pattern.permute.xlu0 0
  %1354 = vperm.xlu0 %1353, %v1351
  %v1355 = vpop.permute.xlu0 %1354
  %v1358 = vsel %vm1024, %v1350, 0
  %v1361 = vsel %vm222, %v1348, 0
  %v1364 = vsel %vm222, %v1349, 0
  %1366 = vmatpush.bf16.msra.mxu0 0
  %1367 = vmatpush.bf16.msra.mxu0 0
  %1368 = vmatpush.bf16.msra.mxu0 0
  %1369 = vmatpush.bf16.msra.mxu0 %v1361
  %1370 = vmatpush.bf16.msra.mxu0 %v1346
  %1371 = vmatpush.bf16.msra.mxu0 %v1344
  %1372 = vmatpush.bf16.msra.mxu0 %v1342
  %1373 = vmatpush.bf16.msra.mxu0 %v1340
  %1374 = vmatmul.bf16.gmra.mxu0 %v1358
  %v1375 = vpop.f32.mrf.mxu0
  %v1376 = vadd.f32 %v1355, %v1375
  %v1377 = vpop.f32.mrf.mxu0
  %1378 = vdwg.mxu0
  %1379 = vmatpush.bf16.msra.mxu0 0
  %1380 = vmatpush.bf16.msra.mxu0 0
  %1381 = vmatpush.bf16.msra.mxu0 0
  %1382 = vmatpush.bf16.msra.mxu0 %v1364
  %1383 = vmatpush.bf16.msra.mxu0 %v1347
  %1384 = vmatpush.bf16.msra.mxu0 %v1345
  %1385 = vmatpush.bf16.msra.mxu0 %v1343
  %1386 = vmatpush.bf16.msra.mxu0 %v1341
  %1387 = vmatmul.bf16.gmra.mxu0 %v1358
  %v1388 = vpop.f32.mrf.mxu0
  %v1389 = vadd.f32 %v1355, %v1388
  %v1390 = vpop.f32.mrf.mxu0
  %1391 = vdwg.mxu0
  %1392 = vrot.lane.b32.xlu0 %v241, 17
  %v1393 = vpop.permute.xlu0 %1392
  %1394 = vrot.lane.b32.xlu0 %v193, 17
  %v1395 = vpop.permute.xlu0 %1394
  %1396 = vrot.lane.b32.xlu0 %v255, 17
  %v1397 = vpop.permute.xlu0 %1396
  %1398 = vrot.lane.b32.xlu0 %v207, 17
  %v1399 = vpop.permute.xlu0 %1398
  %v1400 = vsel %vm267, %v1393, %v1397
  %v1401 = vsel %vm267, %v1395, %v1399
  %v1402 = vsel %vm267, %v1397, %v1393
  %v1403 = vsel %vm267, %v1399, %v1395
  %v1404 = vmul.f32 %v1402, %v272
  %v1405 = vmul.f32 %v1400, %v273
  %v1406 = vmul.f32 %v1403, %v272
  %v1407 = vmul.f32 %v1401, %v273
  %1408 = vrot.lane.b32.xlu0 %v241, 16
  %v1409 = vpop.permute.xlu0 %1408
  %1410 = vrot.lane.b32.xlu0 %v193, 16
  %v1411 = vpop.permute.xlu0 %1410
  %1412 = vrot.lane.b32.xlu0 %v255, 16
  %v1413 = vpop.permute.xlu0 %1412
  %1414 = vrot.lane.b32.xlu0 %v207, 16
  %v1415 = vpop.permute.xlu0 %1414
  %v1416 = vsel %vm286, %v1409, %v1413
  %v1417 = vsel %vm286, %v1411, %v1415
  %v1418 = vsel %vm286, %v1413, %v1409
  %v1419 = vsel %vm286, %v1415, %v1411
  %v1420 = vmul.f32 %v1418, %v291
  %v1421 = vmul.f32 %v1416, %v292
  %v1422 = vmul.f32 %v1419, %v291
  %v1423 = vmul.f32 %v1417, %v292
  %1424 = vrot.lane.b32.xlu0 %v241, 15
  %v1425 = vpop.permute.xlu0 %1424
  %1426 = vrot.lane.b32.xlu0 %v193, 15
  %v1427 = vpop.permute.xlu0 %1426
  %1428 = vrot.lane.b32.xlu0 %v255, 15
  %v1429 = vpop.permute.xlu0 %1428
  %1430 = vrot.lane.b32.xlu0 %v207, 15
  %v1431 = vpop.permute.xlu0 %1430
  %v1432 = vsel %vm305, %v1425, %v1429
  %v1433 = vsel %vm305, %v1427, %v1431
  %v1434 = vsel %vm305, %v1429, %v1425
  %v1435 = vsel %vm305, %v1431, %v1427
  %v1436 = vmul.f32 %v1434, %v310
  %v1437 = vmul.f32 %v1432, %v311
  %v1438 = vmul.f32 %v1435, %v310
  %v1439 = vmul.f32 %v1433, %v311
  %1440 = vrot.lane.b32.xlu0 %v241, 1
  %v1441 = vpop.permute.xlu0 %1440
  %1442 = vrot.lane.b32.xlu0 %v193, 1
  %v1443 = vpop.permute.xlu0 %1442
  %1444 = vrot.lane.b32.xlu0 %v255, 1
  %v1445 = vpop.permute.xlu0 %1444
  %1446 = vrot.lane.b32.xlu0 %v207, 1
  %v1447 = vpop.permute.xlu0 %1446
  %v1448 = vsel %vm324, %v1441, %v1445
  %v1449 = vsel %vm324, %v1443, %v1447
  %v1450 = vsel %vm324, %v1445, %v1441
  %v1451 = vsel %vm324, %v1447, %v1443
  %v1452 = vmul.f32 %v1450, %v329
  %v1453 = vmul.f32 %v1448, %v330
  %v1454 = vmul.f32 %v1451, %v329
  %v1455 = vmul.f32 %v1449, %v330
  %1456 = vrot.lane.b32.xlu0 %v241, 127
  %v1457 = vpop.permute.xlu0 %1456
  %1458 = vrot.lane.b32.xlu0 %v193, 127
  %v1459 = vpop.permute.xlu0 %1458
  %1460 = vrot.lane.b32.xlu0 %v255, 127
  %v1461 = vpop.permute.xlu0 %1460
  %1462 = vrot.lane.b32.xlu0 %v207, 127
  %v1463 = vpop.permute.xlu0 %1462
  %v1464 = vsel %vm343, %v1457, %v1461
  %v1465 = vsel %vm343, %v1459, %v1463
  %v1466 = vsel %vm343, %v1461, %v1457
  %v1467 = vsel %vm343, %v1463, %v1459
  %v1468 = vmul.f32 %v1464, %v348
  %v1469 = vmul.f32 %v1466, %v349
  %v1470 = vmul.f32 %v1465, %v348
  %v1471 = vmul.f32 %v1467, %v349
  %1472 = vrot.lane.b32.xlu0 %v241, 113
  %v1473 = vpop.permute.xlu0 %1472
  %1474 = vrot.lane.b32.xlu0 %v193, 113
  %v1475 = vpop.permute.xlu0 %1474
  %1476 = vrot.lane.b32.xlu0 %v255, 113
  %v1477 = vpop.permute.xlu0 %1476
  %1478 = vrot.lane.b32.xlu0 %v207, 113
  %v1479 = vpop.permute.xlu0 %1478
  %v1480 = vsel %vm362, %v1473, %v1477
  %v1481 = vsel %vm362, %v1475, %v1479
  %v1482 = vsel %vm362, %v1477, %v1473
  %v1483 = vsel %vm362, %v1479, %v1475
  %v1484 = vmul.f32 %v1480, %v367
  %v1485 = vmul.f32 %v1482, %v368
  %v1486 = vmul.f32 %v1481, %v367
  %v1487 = vmul.f32 %v1483, %v368
  %1488 = vrot.lane.b32.xlu0 %v241, 112
  %v1489 = vpop.permute.xlu0 %1488
  %1490 = vrot.lane.b32.xlu0 %v193, 112
  %v1491 = vpop.permute.xlu0 %1490
  %1492 = vrot.lane.b32.xlu0 %v255, 112
  %v1493 = vpop.permute.xlu0 %1492
  %1494 = vrot.lane.b32.xlu0 %v207, 112
  %v1495 = vpop.permute.xlu0 %1494
  %v1496 = vsel %vm381, %v1489, %v1493
  %v1497 = vsel %vm381, %v1491, %v1495
  %v1498 = vsel %vm381, %v1493, %v1489
  %v1499 = vsel %vm381, %v1495, %v1491
  %v1500 = vmul.f32 %v1496, %v386
  %v1501 = vmul.f32 %v1498, %v387
  %v1502 = vmul.f32 %v1497, %v386
  %v1503 = vmul.f32 %v1499, %v387
  %1504 = vrot.lane.b32.xlu0 %v241, 111
  %v1505 = vpop.permute.xlu0 %1504
  %1506 = vrot.lane.b32.xlu0 %v193, 111
  %v1507 = vpop.permute.xlu0 %1506
  %1508 = vrot.lane.b32.xlu0 %v255, 111
  %v1509 = vpop.permute.xlu0 %1508
  %1510 = vrot.lane.b32.xlu0 %v207, 111
  %v1511 = vpop.permute.xlu0 %1510
  %v1512 = vsel %vm400, %v1505, %v1509
  %v1513 = vsel %vm400, %v1507, %v1511
  %v1514 = vsel %vm400, %v1509, %v1505
  %v1515 = vsel %vm400, %v1511, %v1507
  %v1516 = vmul.f32 %v1512, %v405
  %v1517 = vmul.f32 %v1514, %v406
  %v1518 = vmul.f32 %v1513, %v405
  %v1519 = vmul.f32 %v1515, %v406
  %v1520 = vpack.c.bf16 %v1406, %v1404
  %v1521 = vpack.c.bf16 %v1407, %v1405
  %v1522 = vpack.c.bf16 %v1422, %v1420
  %v1523 = vpack.c.bf16 %v1423, %v1421
  %v1524 = vpack.c.bf16 %v1438, %v1436
  %v1525 = vpack.c.bf16 %v1439, %v1437
  %v1526 = vpack.c.bf16 %v1454, %v1452
  %v1527 = vpack.c.bf16 %v1455, %v1453
  %v1528 = vpack.c.bf16 %v193, %v241
  %v1529 = vpack.c.bf16 %v207, %v255
  %v1530 = vpack.c.bf16 %v1470, %v1468
  %v1531 = vpack.c.bf16 %v1471, %v1469
  %v1532 = vpack.c.bf16 %v1486, %v1484
  %v1533 = vpack.c.bf16 %v1487, %v1485
  %v1534 = vpack.c.bf16 %v1502, %v1500
  %v1535 = vpack.c.bf16 %v1503, %v1501
  %v1536 = vpack.c.bf16 %v1518, %v1516
  %v1537 = vpack.c.bf16 %v1519, %v1517
  %1538 = vmatpush.bf16.msra.mxu0 %v1534
  %1539 = vmatpush.bf16.msra.mxu0 %v1532
  %1540 = vmatpush.bf16.msra.mxu0 %v1530
  %1541 = vmatpush.bf16.msra.mxu0 %v1528
  %1542 = vmatpush.bf16.msra.mxu0 %v1526
  %1543 = vmatpush.bf16.msra.mxu0 %v1524
  %1544 = vmatpush.bf16.msra.mxu0 %v1522
  %1545 = vmatpush.bf16.msra.mxu0 %v1520
  %1546 = vmatmul.bf16.gmra.mxu0 %v439
  %v1547 = vpop.f32.mrf.mxu0
  %v1548 = vadd.f32 %v434, %v1547
  %v1549 = vpop.f32.mrf.mxu0
  %1550 = vdwg.mxu0
  %1551 = vmatpush.bf16.msra.mxu0 0
  %1552 = vmatpush.bf16.msra.mxu0 0
  %1553 = vmatpush.bf16.msra.mxu0 0
  %1554 = vmatpush.bf16.msra.mxu0 0
  %1555 = vmatpush.bf16.msra.mxu0 0
  %1556 = vmatpush.bf16.msra.mxu0 0
  %1557 = vmatpush.bf16.msra.mxu0 0
  %1558 = vmatpush.bf16.msra.mxu0 %v1536
  %1559 = vmatmul.bf16.gmra.mxu0 %v443
  %v1560 = vpop.f32.mrf.mxu0
  %v1561 = vadd.f32 %v1548, %v1560
  %v1562 = vpop.f32.mrf.mxu0
  %1563 = vdwg.mxu0
  %1564 = vmatpush.bf16.msra.mxu0 %v1535
  %1565 = vmatpush.bf16.msra.mxu0 %v1533
  %1566 = vmatpush.bf16.msra.mxu0 %v1531
  %1567 = vmatpush.bf16.msra.mxu0 %v1529
  %1568 = vmatpush.bf16.msra.mxu0 %v1527
  %1569 = vmatpush.bf16.msra.mxu0 %v1525
  %1570 = vmatpush.bf16.msra.mxu0 %v1523
  %1571 = vmatpush.bf16.msra.mxu0 %v1521
  %1572 = vmatmul.bf16.gmra.mxu0 %v439
  %v1573 = vpop.f32.mrf.mxu0
  %v1574 = vadd.f32 %v434, %v1573
  %v1575 = vpop.f32.mrf.mxu0
  %1576 = vdwg.mxu0
  %1577 = vmatpush.bf16.msra.mxu0 0
  %1578 = vmatpush.bf16.msra.mxu0 0
  %1579 = vmatpush.bf16.msra.mxu0 0
  %1580 = vmatpush.bf16.msra.mxu0 0
  %1581 = vmatpush.bf16.msra.mxu0 0
  %1582 = vmatpush.bf16.msra.mxu0 0
  %1583 = vmatpush.bf16.msra.mxu0 0
  %1584 = vmatpush.bf16.msra.mxu0 %v1537
  %1585 = vmatmul.bf16.gmra.mxu0 %v443
  %v1586 = vpop.f32.mrf.mxu0
  %v1587 = vadd.f32 %v1574, %v1586
  %v1588 = vpop.f32.mrf.mxu0
  %1589 = vdwg.mxu0
  %v1590 = vmax.f32 %v1561, 0.0
  %v1591 = vmax.f32 %v1587, 0.0
  %1592 = vrot.lane.b32.xlu0 %v1590, 17
  %v1593 = vpop.permute.xlu0 %1592
  %1594 = vrot.lane.b32.xlu0 %v146, 17
  %v1595 = vpop.permute.xlu0 %1594
  %1596 = vrot.lane.b32.xlu0 %v1591, 17
  %v1597 = vpop.permute.xlu0 %1596
  %1598 = vrot.lane.b32.xlu0 %v160, 17
  %v1599 = vpop.permute.xlu0 %1598
  %v1600 = vsel %vm267, %v1593, %v1597
  %v1601 = vsel %vm267, %v1595, %v1599
  %v1602 = vsel %vm267, %v1597, %v1593
  %v1603 = vsel %vm267, %v1599, %v1595
  %v1604 = vmul.f32 %v1602, %v272
  %v1605 = vmul.f32 %v1600, %v273
  %v1606 = vmul.f32 %v1603, %v272
  %v1607 = vmul.f32 %v1601, %v273
  %1608 = vrot.lane.b32.xlu0 %v1590, 16
  %v1609 = vpop.permute.xlu0 %1608
  %1610 = vrot.lane.b32.xlu0 %v146, 16
  %v1611 = vpop.permute.xlu0 %1610
  %1612 = vrot.lane.b32.xlu0 %v1591, 16
  %v1613 = vpop.permute.xlu0 %1612
  %1614 = vrot.lane.b32.xlu0 %v160, 16
  %v1615 = vpop.permute.xlu0 %1614
  %v1616 = vsel %vm286, %v1609, %v1613
  %v1617 = vsel %vm286, %v1611, %v1615
  %v1618 = vsel %vm286, %v1613, %v1609
  %v1619 = vsel %vm286, %v1615, %v1611
  %v1620 = vmul.f32 %v1618, %v291
  %v1621 = vmul.f32 %v1616, %v292
  %v1622 = vmul.f32 %v1619, %v291
  %v1623 = vmul.f32 %v1617, %v292
  %1624 = vrot.lane.b32.xlu0 %v1590, 15
  %v1625 = vpop.permute.xlu0 %1624
  %1626 = vrot.lane.b32.xlu0 %v146, 15
  %v1627 = vpop.permute.xlu0 %1626
  %1628 = vrot.lane.b32.xlu0 %v1591, 15
  %v1629 = vpop.permute.xlu0 %1628
  %1630 = vrot.lane.b32.xlu0 %v160, 15
  %v1631 = vpop.permute.xlu0 %1630
  %v1632 = vsel %vm305, %v1625, %v1629
  %v1633 = vsel %vm305, %v1627, %v1631
  %v1634 = vsel %vm305, %v1629, %v1625
  %v1635 = vsel %vm305, %v1631, %v1627
  %v1636 = vmul.f32 %v1634, %v310
  %v1637 = vmul.f32 %v1632, %v311
  %v1638 = vmul.f32 %v1635, %v310
  %v1639 = vmul.f32 %v1633, %v311
  %1640 = vrot.lane.b32.xlu0 %v1590, 1
  %v1641 = vpop.permute.xlu0 %1640
  %1642 = vrot.lane.b32.xlu0 %v146, 1
  %v1643 = vpop.permute.xlu0 %1642
  %1644 = vrot.lane.b32.xlu0 %v1591, 1
  %v1645 = vpop.permute.xlu0 %1644
  %1646 = vrot.lane.b32.xlu0 %v160, 1
  %v1647 = vpop.permute.xlu0 %1646
  %v1648 = vsel %vm324, %v1641, %v1645
  %v1649 = vsel %vm324, %v1643, %v1647
  %v1650 = vsel %vm324, %v1645, %v1641
  %v1651 = vsel %vm324, %v1647, %v1643
  %v1652 = vmul.f32 %v1650, %v329
  %v1653 = vmul.f32 %v1648, %v330
  %v1654 = vmul.f32 %v1651, %v329
  %v1655 = vmul.f32 %v1649, %v330
  %1656 = vrot.lane.b32.xlu0 %v1590, 127
  %v1657 = vpop.permute.xlu0 %1656
  %1658 = vrot.lane.b32.xlu0 %v146, 127
  %v1659 = vpop.permute.xlu0 %1658
  %1660 = vrot.lane.b32.xlu0 %v1591, 127
  %v1661 = vpop.permute.xlu0 %1660
  %1662 = vrot.lane.b32.xlu0 %v160, 127
  %v1663 = vpop.permute.xlu0 %1662
  %v1664 = vsel %vm343, %v1657, %v1661
  %v1665 = vsel %vm343, %v1659, %v1663
  %v1666 = vsel %vm343, %v1661, %v1657
  %v1667 = vsel %vm343, %v1663, %v1659
  %v1668 = vmul.f32 %v1664, %v348
  %v1669 = vmul.f32 %v1666, %v349
  %v1670 = vmul.f32 %v1665, %v348
  %v1671 = vmul.f32 %v1667, %v349
  %1672 = vrot.lane.b32.xlu0 %v1590, 113
  %v1673 = vpop.permute.xlu0 %1672
  %1674 = vrot.lane.b32.xlu0 %v146, 113
  %v1675 = vpop.permute.xlu0 %1674
  %1676 = vrot.lane.b32.xlu0 %v1591, 113
  %v1677 = vpop.permute.xlu0 %1676
  %1678 = vrot.lane.b32.xlu0 %v160, 113
  %v1679 = vpop.permute.xlu0 %1678
  %v1680 = vsel %vm362, %v1673, %v1677
  %v1681 = vsel %vm362, %v1675, %v1679
  %v1682 = vsel %vm362, %v1677, %v1673
  %v1683 = vsel %vm362, %v1679, %v1675
  %v1684 = vmul.f32 %v1680, %v367
  %v1685 = vmul.f32 %v1682, %v368
  %v1686 = vmul.f32 %v1681, %v367
  %v1687 = vmul.f32 %v1683, %v368
  %1688 = vrot.lane.b32.xlu0 %v1590, 112
  %v1689 = vpop.permute.xlu0 %1688
  %1690 = vrot.lane.b32.xlu0 %v146, 112
  %v1691 = vpop.permute.xlu0 %1690
  %1692 = vrot.lane.b32.xlu0 %v1591, 112
  %v1693 = vpop.permute.xlu0 %1692
  %1694 = vrot.lane.b32.xlu0 %v160, 112
  %v1695 = vpop.permute.xlu0 %1694
  %v1696 = vsel %vm381, %v1689, %v1693
  %v1697 = vsel %vm381, %v1691, %v1695
  %v1698 = vsel %vm381, %v1693, %v1689
  %v1699 = vsel %vm381, %v1695, %v1691
  %v1700 = vmul.f32 %v1696, %v386
  %v1701 = vmul.f32 %v1698, %v387
  %v1702 = vmul.f32 %v1697, %v386
  %v1703 = vmul.f32 %v1699, %v387
  %1704 = vrot.lane.b32.xlu0 %v1590, 111
  %v1705 = vpop.permute.xlu0 %1704
  %1706 = vrot.lane.b32.xlu0 %v146, 111
  %v1707 = vpop.permute.xlu0 %1706
  %1708 = vrot.lane.b32.xlu0 %v1591, 111
  %v1709 = vpop.permute.xlu0 %1708
  %1710 = vrot.lane.b32.xlu0 %v160, 111
  %v1711 = vpop.permute.xlu0 %1710
  %v1712 = vsel %vm400, %v1705, %v1709
  %v1713 = vsel %vm400, %v1707, %v1711
  %v1714 = vsel %vm400, %v1709, %v1705
  %v1715 = vsel %vm400, %v1711, %v1707
  %v1716 = vmul.f32 %v1712, %v405
  %v1717 = vmul.f32 %v1714, %v406
  %v1718 = vmul.f32 %v1713, %v405
  %v1719 = vmul.f32 %v1715, %v406
  %v1720 = vpack.c.bf16 %v1606, %v1604
  %v1721 = vpack.c.bf16 %v1607, %v1605
  %v1722 = vpack.c.bf16 %v1622, %v1620
  %v1723 = vpack.c.bf16 %v1623, %v1621
  %v1724 = vpack.c.bf16 %v1638, %v1636
  %v1725 = vpack.c.bf16 %v1639, %v1637
  %v1726 = vpack.c.bf16 %v1654, %v1652
  %v1727 = vpack.c.bf16 %v1655, %v1653
  %v1728 = vpack.c.bf16 %v146, %v1590
  %v1729 = vpack.c.bf16 %v160, %v1591
  %v1730 = vpack.c.bf16 %v1670, %v1668
  %v1731 = vpack.c.bf16 %v1671, %v1669
  %v1732 = vpack.c.bf16 %v1686, %v1684
  %v1733 = vpack.c.bf16 %v1687, %v1685
  %v1734 = vpack.c.bf16 %v1702, %v1700
  %v1735 = vpack.c.bf16 %v1703, %v1701
  %v1736 = vpack.c.bf16 %v1718, %v1716
  %v1737 = vpack.c.bf16 %v1719, %v1717
  %1738 = vmatpush.bf16.msra.mxu0 %v1734
  %1739 = vmatpush.bf16.msra.mxu0 %v1732
  %1740 = vmatpush.bf16.msra.mxu0 %v1730
  %1741 = vmatpush.bf16.msra.mxu0 %v1728
  %1742 = vmatpush.bf16.msra.mxu0 %v1726
  %1743 = vmatpush.bf16.msra.mxu0 %v1724
  %1744 = vmatpush.bf16.msra.mxu0 %v1722
  %1745 = vmatpush.bf16.msra.mxu0 %v1720
  %1746 = vmatmul.bf16.gmra.mxu0 %v655
  %v1747 = vpop.f32.mrf.mxu0
  %v1748 = vadd.f32 %v650, %v1747
  %v1749 = vpop.f32.mrf.mxu0
  %1750 = vdwg.mxu0
  %1751 = vmatpush.bf16.msra.mxu0 0
  %1752 = vmatpush.bf16.msra.mxu0 0
  %1753 = vmatpush.bf16.msra.mxu0 0
  %1754 = vmatpush.bf16.msra.mxu0 0
  %1755 = vmatpush.bf16.msra.mxu0 0
  %1756 = vmatpush.bf16.msra.mxu0 0
  %1757 = vmatpush.bf16.msra.mxu0 0
  %1758 = vmatpush.bf16.msra.mxu0 %v1736
  %1759 = vmatmul.bf16.gmra.mxu0 %v659
  %v1760 = vpop.f32.mrf.mxu0
  %v1761 = vadd.f32 %v1748, %v1760
  %v1762 = vpop.f32.mrf.mxu0
  %1763 = vdwg.mxu0
  %1764 = vmatpush.bf16.msra.mxu0 %v1735
  %1765 = vmatpush.bf16.msra.mxu0 %v1733
  %1766 = vmatpush.bf16.msra.mxu0 %v1731
  %1767 = vmatpush.bf16.msra.mxu0 %v1729
  %1768 = vmatpush.bf16.msra.mxu0 %v1727
  %1769 = vmatpush.bf16.msra.mxu0 %v1725
  %1770 = vmatpush.bf16.msra.mxu0 %v1723
  %1771 = vmatpush.bf16.msra.mxu0 %v1721
  %1772 = vmatmul.bf16.gmra.mxu0 %v655
  %v1773 = vpop.f32.mrf.mxu0
  %v1774 = vadd.f32 %v650, %v1773
  %v1775 = vpop.f32.mrf.mxu0
  %1776 = vdwg.mxu0
  %1777 = vmatpush.bf16.msra.mxu0 0
  %1778 = vmatpush.bf16.msra.mxu0 0
  %1779 = vmatpush.bf16.msra.mxu0 0
  %1780 = vmatpush.bf16.msra.mxu0 0
  %1781 = vmatpush.bf16.msra.mxu0 0
  %1782 = vmatpush.bf16.msra.mxu0 0
  %1783 = vmatpush.bf16.msra.mxu0 0
  %1784 = vmatpush.bf16.msra.mxu0 %v1737
  %1785 = vmatmul.bf16.gmra.mxu0 %v659
  %v1786 = vpop.f32.mrf.mxu0
  %v1787 = vadd.f32 %v1774, %v1786
  %v1788 = vpop.f32.mrf.mxu0
  %1789 = vdwg.mxu0
  %v1790 = vmax.f32 %v1761, 0.0
  %v1791 = vmax.f32 %v1787, 0.0
  %1792 = vrot.lane.b32.xlu0 %v1790, 17
  %v1793 = vpop.permute.xlu0 %1792
  %1794 = vrot.lane.b32.xlu0 %v77, 17
  %v1795 = vpop.permute.xlu0 %1794
  %1796 = vrot.lane.b32.xlu0 %v1791, 17
  %v1797 = vpop.permute.xlu0 %1796
  %1798 = vrot.lane.b32.xlu0 %v78, 17
  %v1799 = vpop.permute.xlu0 %1798
  %v1800 = vsel %vm267, %v1793, %v1797
  %v1801 = vsel %vm267, %v1795, %v1799
  %v1802 = vsel %vm267, %v1797, %v1793
  %v1803 = vsel %vm267, %v1799, %v1795
  %v1804 = vmul.f32 %v1802, %v272
  %v1805 = vmul.f32 %v1800, %v273
  %v1806 = vmul.f32 %v1803, %v272
  %v1807 = vmul.f32 %v1801, %v273
  %1808 = vrot.lane.b32.xlu0 %v1790, 16
  %v1809 = vpop.permute.xlu0 %1808
  %1810 = vrot.lane.b32.xlu0 %v77, 16
  %v1811 = vpop.permute.xlu0 %1810
  %1812 = vrot.lane.b32.xlu0 %v1791, 16
  %v1813 = vpop.permute.xlu0 %1812
  %1814 = vrot.lane.b32.xlu0 %v78, 16
  %v1815 = vpop.permute.xlu0 %1814
  %v1816 = vsel %vm286, %v1809, %v1813
  %v1817 = vsel %vm286, %v1811, %v1815
  %v1818 = vsel %vm286, %v1813, %v1809
  %v1819 = vsel %vm286, %v1815, %v1811
  %v1820 = vmul.f32 %v1818, %v291
  %v1821 = vmul.f32 %v1816, %v292
  %v1822 = vmul.f32 %v1819, %v291
  %v1823 = vmul.f32 %v1817, %v292
  %1824 = vrot.lane.b32.xlu0 %v1790, 15
  %v1825 = vpop.permute.xlu0 %1824
  %1826 = vrot.lane.b32.xlu0 %v77, 15
  %v1827 = vpop.permute.xlu0 %1826
  %1828 = vrot.lane.b32.xlu0 %v1791, 15
  %v1829 = vpop.permute.xlu0 %1828
  %1830 = vrot.lane.b32.xlu0 %v78, 15
  %v1831 = vpop.permute.xlu0 %1830
  %v1832 = vsel %vm305, %v1825, %v1829
  %v1833 = vsel %vm305, %v1827, %v1831
  %v1834 = vsel %vm305, %v1829, %v1825
  %v1835 = vsel %vm305, %v1831, %v1827
  %v1836 = vmul.f32 %v1834, %v310
  %v1837 = vmul.f32 %v1832, %v311
  %v1838 = vmul.f32 %v1835, %v310
  %v1839 = vmul.f32 %v1833, %v311
  %1840 = vrot.lane.b32.xlu0 %v1790, 1
  %v1841 = vpop.permute.xlu0 %1840
  %1842 = vrot.lane.b32.xlu0 %v77, 1
  %v1843 = vpop.permute.xlu0 %1842
  %1844 = vrot.lane.b32.xlu0 %v1791, 1
  %v1845 = vpop.permute.xlu0 %1844
  %1846 = vrot.lane.b32.xlu0 %v78, 1
  %v1847 = vpop.permute.xlu0 %1846
  %v1848 = vsel %vm324, %v1841, %v1845
  %v1849 = vsel %vm324, %v1843, %v1847
  %v1850 = vsel %vm324, %v1845, %v1841
  %v1851 = vsel %vm324, %v1847, %v1843
  %v1852 = vmul.f32 %v1850, %v329
  %v1853 = vmul.f32 %v1848, %v330
  %v1854 = vmul.f32 %v1851, %v329
  %v1855 = vmul.f32 %v1849, %v330
  %1856 = vrot.lane.b32.xlu0 %v1790, 127
  %v1857 = vpop.permute.xlu0 %1856
  %1858 = vrot.lane.b32.xlu0 %v77, 127
  %v1859 = vpop.permute.xlu0 %1858
  %1860 = vrot.lane.b32.xlu0 %v1791, 127
  %v1861 = vpop.permute.xlu0 %1860
  %1862 = vrot.lane.b32.xlu0 %v78, 127
  %v1863 = vpop.permute.xlu0 %1862
  %v1864 = vsel %vm343, %v1857, %v1861
  %v1865 = vsel %vm343, %v1859, %v1863
  %v1866 = vsel %vm343, %v1861, %v1857
  %v1867 = vsel %vm343, %v1863, %v1859
  %v1868 = vmul.f32 %v1864, %v348
  %v1869 = vmul.f32 %v1866, %v349
  %v1870 = vmul.f32 %v1865, %v348
  %v1871 = vmul.f32 %v1867, %v349
  %1872 = vrot.lane.b32.xlu0 %v1790, 113
  %v1873 = vpop.permute.xlu0 %1872
  %1874 = vrot.lane.b32.xlu0 %v77, 113
  %v1875 = vpop.permute.xlu0 %1874
  %1876 = vrot.lane.b32.xlu0 %v1791, 113
  %v1877 = vpop.permute.xlu0 %1876
  %1878 = vrot.lane.b32.xlu0 %v78, 113
  %v1879 = vpop.permute.xlu0 %1878
  %v1880 = vsel %vm362, %v1873, %v1877
  %v1881 = vsel %vm362, %v1875, %v1879
  %v1882 = vsel %vm362, %v1877, %v1873
  %v1883 = vsel %vm362, %v1879, %v1875
  %v1884 = vmul.f32 %v1880, %v367
  %v1885 = vmul.f32 %v1882, %v368
  %v1886 = vmul.f32 %v1881, %v367
  %v1887 = vmul.f32 %v1883, %v368
  %1888 = vrot.lane.b32.xlu0 %v1790, 112
  %v1889 = vpop.permute.xlu0 %1888
  %1890 = vrot.lane.b32.xlu0 %v77, 112
  %v1891 = vpop.permute.xlu0 %1890
  %1892 = vrot.lane.b32.xlu0 %v1791, 112
  %v1893 = vpop.permute.xlu0 %1892
  %1894 = vrot.lane.b32.xlu0 %v78, 112
  %v1895 = vpop.permute.xlu0 %1894
  %v1896 = vsel %vm381, %v1889, %v1893
  %v1897 = vsel %vm381, %v1891, %v1895
  %v1898 = vsel %vm381, %v1893, %v1889
  %v1899 = vsel %vm381, %v1895, %v1891
  %v1900 = vmul.f32 %v1896, %v386
  %v1901 = vmul.f32 %v1898, %v387
  %v1902 = vmul.f32 %v1897, %v386
  %v1903 = vmul.f32 %v1899, %v387
  %1904 = vrot.lane.b32.xlu0 %v1790, 111
  %v1905 = vpop.permute.xlu0 %1904
  %1906 = vrot.lane.b32.xlu0 %v77, 111
  %v1907 = vpop.permute.xlu0 %1906
  %1908 = vrot.lane.b32.xlu0 %v1791, 111
  %v1909 = vpop.permute.xlu0 %1908
  %1910 = vrot.lane.b32.xlu0 %v78, 111
  %v1911 = vpop.permute.xlu0 %1910
  %v1912 = vsel %vm400, %v1905, %v1909
  %v1913 = vsel %vm400, %v1907, %v1911
  %v1914 = vsel %vm400, %v1909, %v1905
  %v1915 = vsel %vm400, %v1911, %v1907
  %v1916 = vmul.f32 %v1912, %v405
  %v1917 = vmul.f32 %v1914, %v406
  %v1918 = vmul.f32 %v1913, %v405
  %v1919 = vmul.f32 %v1915, %v406
  %v1920 = vpack.c.bf16 %v1806, %v1804
  %v1921 = vpack.c.bf16 %v1807, %v1805
  %v1922 = vpack.c.bf16 %v1822, %v1820
  %v1923 = vpack.c.bf16 %v1823, %v1821
  %v1924 = vpack.c.bf16 %v1838, %v1836
  %v1925 = vpack.c.bf16 %v1839, %v1837
  %v1926 = vpack.c.bf16 %v1854, %v1852
  %v1927 = vpack.c.bf16 %v1855, %v1853
  %v1928 = vpack.c.bf16 %v77, %v1790
  %v1929 = vpack.c.bf16 %v78, %v1791
  %v1930 = vpack.c.bf16 %v1870, %v1868
  %v1931 = vpack.c.bf16 %v1871, %v1869
  %v1932 = vpack.c.bf16 %v1886, %v1884
  %v1933 = vpack.c.bf16 %v1887, %v1885
  %v1934 = vpack.c.bf16 %v1902, %v1900
  %v1935 = vpack.c.bf16 %v1903, %v1901
  %v1936 = vpack.c.bf16 %v1918, %v1916
  %v1937 = vpack.c.bf16 %v1919, %v1917
  %1938 = vmatpush.bf16.msra.mxu0 %v1934
  %1939 = vmatpush.bf16.msra.mxu0 %v1932
  %1940 = vmatpush.bf16.msra.mxu0 %v1930
  %1941 = vmatpush.bf16.msra.mxu0 %v1928
  %1942 = vmatpush.bf16.msra.mxu0 %v1926
  %1943 = vmatpush.bf16.msra.mxu0 %v1924
  %1944 = vmatpush.bf16.msra.mxu0 %v1922
  %1945 = vmatpush.bf16.msra.mxu0 %v1920
  %1946 = vmatmul.bf16.gmra.mxu0 %v871
  %v1947 = vpop.f32.mrf.mxu0
  %v1948 = vadd.f32 %v866, %v1947
  %v1949 = vpop.f32.mrf.mxu0
  %1950 = vdwg.mxu0
  %1951 = vmatpush.bf16.msra.mxu0 0
  %1952 = vmatpush.bf16.msra.mxu0 0
  %1953 = vmatpush.bf16.msra.mxu0 0
  %1954 = vmatpush.bf16.msra.mxu0 0
  %1955 = vmatpush.bf16.msra.mxu0 0
  %1956 = vmatpush.bf16.msra.mxu0 0
  %1957 = vmatpush.bf16.msra.mxu0 0
  %1958 = vmatpush.bf16.msra.mxu0 %v1936
  %1959 = vmatmul.bf16.gmra.mxu0 %v875
  %v1960 = vpop.f32.mrf.mxu0
  %v1961 = vadd.f32 %v1948, %v1960
  %v1962 = vpop.f32.mrf.mxu0
  %1963 = vdwg.mxu0
  %1964 = vmatpush.bf16.msra.mxu0 %v1935
  %1965 = vmatpush.bf16.msra.mxu0 %v1933
  %1966 = vmatpush.bf16.msra.mxu0 %v1931
  %1967 = vmatpush.bf16.msra.mxu0 %v1929
  %1968 = vmatpush.bf16.msra.mxu0 %v1927
  %1969 = vmatpush.bf16.msra.mxu0 %v1925
  %1970 = vmatpush.bf16.msra.mxu0 %v1923
  %1971 = vmatpush.bf16.msra.mxu0 %v1921
  %1972 = vmatmul.bf16.gmra.mxu0 %v871
  %v1973 = vpop.f32.mrf.mxu0
  %v1974 = vadd.f32 %v866, %v1973
  %v1975 = vpop.f32.mrf.mxu0
  %1976 = vdwg.mxu0
  %1977 = vmatpush.bf16.msra.mxu0 0
  %1978 = vmatpush.bf16.msra.mxu0 0
  %1979 = vmatpush.bf16.msra.mxu0 0
  %1980 = vmatpush.bf16.msra.mxu0 0
  %1981 = vmatpush.bf16.msra.mxu0 0
  %1982 = vmatpush.bf16.msra.mxu0 0
  %1983 = vmatpush.bf16.msra.mxu0 0
  %1984 = vmatpush.bf16.msra.mxu0 %v1937
  %1985 = vmatmul.bf16.gmra.mxu0 %v875
  %v1986 = vpop.f32.mrf.mxu0
  %v1987 = vadd.f32 %v1974, %v1986
  %v1988 = vpop.f32.mrf.mxu0
  %1989 = vdwg.mxu0
  %v1990 = vmax.f32 %v1961, 0.0
  %v1991 = vmax.f32 %v1987, 0.0
  %1992 = vrot.lane.b32.xlu0 %v1990, 17
  %v1993 = vpop.permute.xlu0 %1992
  %1994 = vrot.lane.b32.xlu0 %v1991, 17
  %v1995 = vpop.permute.xlu0 %1994
  %v1996 = vsel %vm267, %v1993, %v1995
  %v1997 = vsel %vm267, %v1995, %v1993
  %v1998 = vmul.f32 %v1997, %v272
  %v1999 = vmul.f32 %v1996, %v273
  %2000 = vrot.lane.b32.xlu0 %v1990, 16
  %v2001 = vpop.permute.xlu0 %2000
  %2002 = vrot.lane.b32.xlu0 %v1991, 16
  %v2003 = vpop.permute.xlu0 %2002
  %v2004 = vsel %vm286, %v2001, %v2003
  %v2005 = vsel %vm286, %v2003, %v2001
  %v2006 = vmul.f32 %v2005, %v291
  %v2007 = vmul.f32 %v2004, %v292
  %2008 = vrot.lane.b32.xlu0 %v1990, 15
  %v2009 = vpop.permute.xlu0 %2008
  %2010 = vrot.lane.b32.xlu0 %v1991, 15
  %v2011 = vpop.permute.xlu0 %2010
  %v2012 = vsel %vm305, %v2009, %v2011
  %v2013 = vsel %vm305, %v2011, %v2009
  %v2014 = vmul.f32 %v2013, %v310
  %v2015 = vmul.f32 %v2012, %v311
  %2016 = vrot.lane.b32.xlu0 %v1990, 1
  %v2017 = vpop.permute.xlu0 %2016
  %2018 = vrot.lane.b32.xlu0 %v1991, 1
  %v2019 = vpop.permute.xlu0 %2018
  %v2020 = vsel %vm324, %v2017, %v2019
  %v2021 = vsel %vm324, %v2019, %v2017
  %v2022 = vmul.f32 %v2021, %v329
  %v2023 = vmul.f32 %v2020, %v330
  %2024 = vrot.lane.b32.xlu0 %v1990, 127
  %v2025 = vpop.permute.xlu0 %2024
  %2026 = vrot.lane.b32.xlu0 %v1991, 127
  %v2027 = vpop.permute.xlu0 %2026
  %v2028 = vsel %vm343, %v2025, %v2027
  %v2029 = vsel %vm343, %v2027, %v2025
  %v2030 = vmul.f32 %v2028, %v348
  %v2031 = vmul.f32 %v2029, %v349
  %2032 = vrot.lane.b32.xlu0 %v1990, 113
  %v2033 = vpop.permute.xlu0 %2032
  %2034 = vrot.lane.b32.xlu0 %v1991, 113
  %v2035 = vpop.permute.xlu0 %2034
  %v2036 = vsel %vm362, %v2033, %v2035
  %v2037 = vsel %vm362, %v2035, %v2033
  %v2038 = vmul.f32 %v2036, %v367
  %v2039 = vmul.f32 %v2037, %v368
  %2040 = vrot.lane.b32.xlu0 %v1990, 112
  %v2041 = vpop.permute.xlu0 %2040
  %2042 = vrot.lane.b32.xlu0 %v1991, 112
  %v2043 = vpop.permute.xlu0 %2042
  %v2044 = vsel %vm381, %v2041, %v2043
  %v2045 = vsel %vm381, %v2043, %v2041
  %v2046 = vmul.f32 %v2044, %v386
  %v2047 = vmul.f32 %v2045, %v387
  %2048 = vrot.lane.b32.xlu0 %v1990, 111
  %v2049 = vpop.permute.xlu0 %2048
  %2050 = vrot.lane.b32.xlu0 %v1991, 111
  %v2051 = vpop.permute.xlu0 %2050
  %v2052 = vsel %vm400, %v2049, %v2051
  %v2053 = vsel %vm400, %v2051, %v2049
  %v2054 = vmul.f32 %v2052, %v405
  %v2055 = vmul.f32 %v2053, %v406
  %v2056 = vpack.c.bf16 %v2006, %v1998
  %v2057 = vpack.c.bf16 %v2007, %v1999
  %v2058 = vpack.c.bf16 %v2022, %v2014
  %v2059 = vpack.c.bf16 %v2023, %v2015
  %v2060 = vpack.c.bf16 %v2030, %v1990
  %v2061 = vpack.c.bf16 %v2031, %v1991
  %v2062 = vpack.c.bf16 %v2046, %v2038
  %v2063 = vpack.c.bf16 %v2047, %v2039
  %v2064 = vpack.c.bf16 %v2054, %v2054
  %v2065 = vpack.c.bf16 %v2055, %v2055
  %v2067 = vsel %vm222, %v2064, 0
  %v2070 = vsel %vm222, %v2065, 0
  %2072 = vmatpush.bf16.msra.mxu0 0
  %2073 = vmatpush.bf16.msra.mxu0 0
  %2074 = vmatpush.bf16.msra.mxu0 0
  %2075 = vmatpush.bf16.msra.mxu0 %v2067
  %2076 = vmatpush.bf16.msra.mxu0 %v2062
  %2077 = vmatpush.bf16.msra.mxu0 %v2060
  %2078 = vmatpush.bf16.msra.mxu0 %v2058
  %2079 = vmatpush.bf16.msra.mxu0 %v2056
  %2080 = vmatmul.bf16.gmra.mxu0 %v1026
  %v2081 = vpop.f32.mrf.mxu0
  %v2082 = vadd.f32 %v1012, %v2081
  %v2083 = vpop.f32.mrf.mxu0
  %v2084 = vadd.f32 %v1017, %v2083
  %2085 = vdwg.mxu0
  %2086 = vmatpush.bf16.msra.mxu0 0
  %2087 = vmatpush.bf16.msra.mxu0 0
  %2088 = vmatpush.bf16.msra.mxu0 0
  %2089 = vmatpush.bf16.msra.mxu0 %v2070
  %2090 = vmatpush.bf16.msra.mxu0 %v2063
  %2091 = vmatpush.bf16.msra.mxu0 %v2061
  %2092 = vmatpush.bf16.msra.mxu0 %v2059
  %2093 = vmatpush.bf16.msra.mxu0 %v2057
  %2094 = vmatmul.bf16.gmra.mxu0 %v1026
  %v2095 = vpop.f32.mrf.mxu0
  %v2096 = vadd.f32 %v1012, %v2095
  %v2097 = vpop.f32.mrf.mxu0
  %v2098 = vadd.f32 %v1017, %v2097
  %2099 = vdwg.mxu0
  %2100 = vrot.lane.b32.xlu0 %v2082, 17
  %v2101 = vpop.permute.xlu0 %2100
  %2102 = vrot.lane.b32.xlu0 %v2084, 17
  %v2103 = vpop.permute.xlu0 %2102
  %2104 = vrot.lane.b32.xlu0 %v2096, 17
  %v2105 = vpop.permute.xlu0 %2104
  %2106 = vrot.lane.b32.xlu0 %v2098, 17
  %v2107 = vpop.permute.xlu0 %2106
  %v2108 = vsel %vm267, %v2101, %v2105
  %v2109 = vsel %vm267, %v2103, %v2107
  %v2110 = vsel %vm267, %v2105, %v2101
  %v2111 = vsel %vm267, %v2107, %v2103
  %v2112 = vmul.f32 %v2110, %v272
  %v2113 = vmul.f32 %v2108, %v273
  %v2114 = vmul.f32 %v2111, %v272
  %v2115 = vmul.f32 %v2109, %v273
  %2116 = vrot.lane.b32.xlu0 %v2082, 16
  %v2117 = vpop.permute.xlu0 %2116
  %2118 = vrot.lane.b32.xlu0 %v2084, 16
  %v2119 = vpop.permute.xlu0 %2118
  %2120 = vrot.lane.b32.xlu0 %v2096, 16
  %v2121 = vpop.permute.xlu0 %2120
  %2122 = vrot.lane.b32.xlu0 %v2098, 16
  %v2123 = vpop.permute.xlu0 %2122
  %v2124 = vsel %vm286, %v2117, %v2121
  %v2125 = vsel %vm286, %v2119, %v2123
  %v2126 = vsel %vm286, %v2121, %v2117
  %v2127 = vsel %vm286, %v2123, %v2119
  %v2128 = vmul.f32 %v2126, %v291
  %v2129 = vmul.f32 %v2124, %v292
  %v2130 = vmul.f32 %v2127, %v291
  %v2131 = vmul.f32 %v2125, %v292
  %2132 = vrot.lane.b32.xlu0 %v2082, 15
  %v2133 = vpop.permute.xlu0 %2132
  %2134 = vrot.lane.b32.xlu0 %v2084, 15
  %v2135 = vpop.permute.xlu0 %2134
  %2136 = vrot.lane.b32.xlu0 %v2096, 15
  %v2137 = vpop.permute.xlu0 %2136
  %2138 = vrot.lane.b32.xlu0 %v2098, 15
  %v2139 = vpop.permute.xlu0 %2138
  %v2140 = vsel %vm305, %v2133, %v2137
  %v2141 = vsel %vm305, %v2135, %v2139
  %v2142 = vsel %vm305, %v2137, %v2133
  %v2143 = vsel %vm305, %v2139, %v2135
  %v2144 = vmul.f32 %v2142, %v310
  %v2145 = vmul.f32 %v2140, %v311
  %v2146 = vmul.f32 %v2143, %v310
  %v2147 = vmul.f32 %v2141, %v311
  %2148 = vrot.lane.b32.xlu0 %v2082, 1
  %v2149 = vpop.permute.xlu0 %2148
  %2150 = vrot.lane.b32.xlu0 %v2084, 1
  %v2151 = vpop.permute.xlu0 %2150
  %2152 = vrot.lane.b32.xlu0 %v2096, 1
  %v2153 = vpop.permute.xlu0 %2152
  %2154 = vrot.lane.b32.xlu0 %v2098, 1
  %v2155 = vpop.permute.xlu0 %2154
  %v2156 = vsel %vm324, %v2149, %v2153
  %v2157 = vsel %vm324, %v2151, %v2155
  %v2158 = vsel %vm324, %v2153, %v2149
  %v2159 = vsel %vm324, %v2155, %v2151
  %v2160 = vmul.f32 %v2158, %v329
  %v2161 = vmul.f32 %v2156, %v330
  %v2162 = vmul.f32 %v2159, %v329
  %v2163 = vmul.f32 %v2157, %v330
  %2164 = vrot.lane.b32.xlu0 %v2082, 127
  %v2165 = vpop.permute.xlu0 %2164
  %2166 = vrot.lane.b32.xlu0 %v2084, 127
  %v2167 = vpop.permute.xlu0 %2166
  %2168 = vrot.lane.b32.xlu0 %v2096, 127
  %v2169 = vpop.permute.xlu0 %2168
  %2170 = vrot.lane.b32.xlu0 %v2098, 127
  %v2171 = vpop.permute.xlu0 %2170
  %v2172 = vsel %vm343, %v2165, %v2169
  %v2173 = vsel %vm343, %v2167, %v2171
  %v2174 = vsel %vm343, %v2169, %v2165
  %v2175 = vsel %vm343, %v2171, %v2167
  %v2176 = vmul.f32 %v2172, %v348
  %v2177 = vmul.f32 %v2174, %v349
  %v2178 = vmul.f32 %v2173, %v348
  %v2179 = vmul.f32 %v2175, %v349
  %2180 = vrot.lane.b32.xlu0 %v2082, 113
  %v2181 = vpop.permute.xlu0 %2180
  %2182 = vrot.lane.b32.xlu0 %v2084, 113
  %v2183 = vpop.permute.xlu0 %2182
  %2184 = vrot.lane.b32.xlu0 %v2096, 113
  %v2185 = vpop.permute.xlu0 %2184
  %2186 = vrot.lane.b32.xlu0 %v2098, 113
  %v2187 = vpop.permute.xlu0 %2186
  %v2188 = vsel %vm362, %v2181, %v2185
  %v2189 = vsel %vm362, %v2183, %v2187
  %v2190 = vsel %vm362, %v2185, %v2181
  %v2191 = vsel %vm362, %v2187, %v2183
  %v2192 = vmul.f32 %v2188, %v367
  %v2193 = vmul.f32 %v2190, %v368
  %v2194 = vmul.f32 %v2189, %v367
  %v2195 = vmul.f32 %v2191, %v368
  %2196 = vrot.lane.b32.xlu0 %v2082, 112
  %v2197 = vpop.permute.xlu0 %2196
  %2198 = vrot.lane.b32.xlu0 %v2084, 112
  %v2199 = vpop.permute.xlu0 %2198
  %2200 = vrot.lane.b32.xlu0 %v2096, 112
  %v2201 = vpop.permute.xlu0 %2200
  %2202 = vrot.lane.b32.xlu0 %v2098, 112
  %v2203 = vpop.permute.xlu0 %2202
  %v2204 = vsel %vm381, %v2197, %v2201
  %v2205 = vsel %vm381, %v2199, %v2203
  %v2206 = vsel %vm381, %v2201, %v2197
  %v2207 = vsel %vm381, %v2203, %v2199
  %v2208 = vmul.f32 %v2204, %v386
  %v2209 = vmul.f32 %v2206, %v387
  %v2210 = vmul.f32 %v2205, %v386
  %v2211 = vmul.f32 %v2207, %v387
  %2212 = vrot.lane.b32.xlu0 %v2082, 111
  %v2213 = vpop.permute.xlu0 %2212
  %2214 = vrot.lane.b32.xlu0 %v2084, 111
  %v2215 = vpop.permute.xlu0 %2214
  %2216 = vrot.lane.b32.xlu0 %v2096, 111
  %v2217 = vpop.permute.xlu0 %2216
  %2218 = vrot.lane.b32.xlu0 %v2098, 111
  %v2219 = vpop.permute.xlu0 %2218
  %v2220 = vsel %vm400, %v2213, %v2217
  %v2221 = vsel %vm400, %v2215, %v2219
  %v2222 = vsel %vm400, %v2217, %v2213
  %v2223 = vsel %vm400, %v2219, %v2215
  %v2224 = vmul.f32 %v2220, %v405
  %v2225 = vmul.f32 %v2222, %v406
  %v2226 = vmul.f32 %v2221, %v405
  %v2227 = vmul.f32 %v2223, %v406
  %v2228 = vpack.c.bf16 %v2114, %v2112
  %v2229 = vpack.c.bf16 %v2115, %v2113
  %v2230 = vpack.c.bf16 %v2130, %v2128
  %v2231 = vpack.c.bf16 %v2131, %v2129
  %v2232 = vpack.c.bf16 %v2146, %v2144
  %v2233 = vpack.c.bf16 %v2147, %v2145
  %v2234 = vpack.c.bf16 %v2162, %v2160
  %v2235 = vpack.c.bf16 %v2163, %v2161
  %v2236 = vpack.c.bf16 %v2084, %v2082
  %v2237 = vpack.c.bf16 %v2098, %v2096
  %v2238 = vpack.c.bf16 %v2178, %v2176
  %v2239 = vpack.c.bf16 %v2179, %v2177
  %v2240 = vpack.c.bf16 %v2194, %v2192
  %v2241 = vpack.c.bf16 %v2195, %v2193
  %v2242 = vpack.c.bf16 %v2210, %v2208
  %v2243 = vpack.c.bf16 %v2211, %v2209
  %v2244 = vpack.c.bf16 %v2226, %v2224
  %v2245 = vpack.c.bf16 %v2227, %v2225
  %2246 = vmatpush.bf16.msra.mxu0 %v2242
  %2247 = vmatpush.bf16.msra.mxu0 %v2240
  %2248 = vmatpush.bf16.msra.mxu0 %v2238
  %2249 = vmatpush.bf16.msra.mxu0 %v2236
  %2250 = vmatpush.bf16.msra.mxu0 %v2234
  %2251 = vmatpush.bf16.msra.mxu0 %v2232
  %2252 = vmatpush.bf16.msra.mxu0 %v2230
  %2253 = vmatpush.bf16.msra.mxu0 %v2228
  %2254 = vmatmul.bf16.gmra.mxu0 %v1218
  %v2255 = vpop.f32.mrf.mxu0
  %v2256 = vadd.f32 %v1213, %v2255
  %v2257 = vpop.f32.mrf.mxu0
  %2258 = vdwg.mxu0
  %2259 = vmatpush.bf16.msra.mxu0 0
  %2260 = vmatpush.bf16.msra.mxu0 0
  %2261 = vmatpush.bf16.msra.mxu0 0
  %2262 = vmatpush.bf16.msra.mxu0 0
  %2263 = vmatpush.bf16.msra.mxu0 0
  %2264 = vmatpush.bf16.msra.mxu0 0
  %2265 = vmatpush.bf16.msra.mxu0 0
  %2266 = vmatpush.bf16.msra.mxu0 %v2244
  %2267 = vmatmul.bf16.gmra.mxu0 %v1222
  %v2268 = vpop.f32.mrf.mxu0
  %v2269 = vadd.f32 %v2256, %v2268
  %v2270 = vpop.f32.mrf.mxu0
  %2271 = vdwg.mxu0
  %2272 = vmatpush.bf16.msra.mxu0 %v2243
  %2273 = vmatpush.bf16.msra.mxu0 %v2241
  %2274 = vmatpush.bf16.msra.mxu0 %v2239
  %2275 = vmatpush.bf16.msra.mxu0 %v2237
  %2276 = vmatpush.bf16.msra.mxu0 %v2235
  %2277 = vmatpush.bf16.msra.mxu0 %v2233
  %2278 = vmatpush.bf16.msra.mxu0 %v2231
  %2279 = vmatpush.bf16.msra.mxu0 %v2229
  %2280 = vmatmul.bf16.gmra.mxu0 %v1218
  %v2281 = vpop.f32.mrf.mxu0
  %v2282 = vadd.f32 %v1213, %v2281
  %v2283 = vpop.f32.mrf.mxu0
  %2284 = vdwg.mxu0
  %2285 = vmatpush.bf16.msra.mxu0 0
  %2286 = vmatpush.bf16.msra.mxu0 0
  %2287 = vmatpush.bf16.msra.mxu0 0
  %2288 = vmatpush.bf16.msra.mxu0 0
  %2289 = vmatpush.bf16.msra.mxu0 0
  %2290 = vmatpush.bf16.msra.mxu0 0
  %2291 = vmatpush.bf16.msra.mxu0 0
  %2292 = vmatpush.bf16.msra.mxu0 %v2245
  %2293 = vmatmul.bf16.gmra.mxu0 %v1222
  %v2294 = vpop.f32.mrf.mxu0
  %v2295 = vadd.f32 %v2282, %v2294
  %v2296 = vpop.f32.mrf.mxu0
  %2297 = vdwg.mxu0
  %2298 = vrot.lane.b32.xlu0 %v2269, 17
  %v2299 = vpop.permute.xlu0 %2298
  %2300 = vrot.lane.b32.xlu0 %v2295, 17
  %v2301 = vpop.permute.xlu0 %2300
  %v2302 = vsel %vm267, %v2299, %v2301
  %v2303 = vsel %vm267, %v2301, %v2299
  %v2304 = vmul.f32 %v2303, %v272
  %v2305 = vmul.f32 %v2302, %v273
  %2306 = vrot.lane.b32.xlu0 %v2269, 16
  %v2307 = vpop.permute.xlu0 %2306
  %2308 = vrot.lane.b32.xlu0 %v2295, 16
  %v2309 = vpop.permute.xlu0 %2308
  %v2310 = vsel %vm286, %v2307, %v2309
  %v2311 = vsel %vm286, %v2309, %v2307
  %v2312 = vmul.f32 %v2311, %v291
  %v2313 = vmul.f32 %v2310, %v292
  %2314 = vrot.lane.b32.xlu0 %v2269, 15
  %v2315 = vpop.permute.xlu0 %2314
  %2316 = vrot.lane.b32.xlu0 %v2295, 15
  %v2317 = vpop.permute.xlu0 %2316
  %v2318 = vsel %vm305, %v2315, %v2317
  %v2319 = vsel %vm305, %v2317, %v2315
  %v2320 = vmul.f32 %v2319, %v310
  %v2321 = vmul.f32 %v2318, %v311
  %2322 = vrot.lane.b32.xlu0 %v2269, 1
  %v2323 = vpop.permute.xlu0 %2322
  %2324 = vrot.lane.b32.xlu0 %v2295, 1
  %v2325 = vpop.permute.xlu0 %2324
  %v2326 = vsel %vm324, %v2323, %v2325
  %v2327 = vsel %vm324, %v2325, %v2323
  %v2328 = vmul.f32 %v2327, %v329
  %v2329 = vmul.f32 %v2326, %v330
  %2330 = vrot.lane.b32.xlu0 %v2269, 127
  %v2331 = vpop.permute.xlu0 %2330
  %2332 = vrot.lane.b32.xlu0 %v2295, 127
  %v2333 = vpop.permute.xlu0 %2332
  %v2334 = vsel %vm343, %v2331, %v2333
  %v2335 = vsel %vm343, %v2333, %v2331
  %v2336 = vmul.f32 %v2334, %v348
  %v2337 = vmul.f32 %v2335, %v349
  %2338 = vrot.lane.b32.xlu0 %v2269, 113
  %v2339 = vpop.permute.xlu0 %2338
  %2340 = vrot.lane.b32.xlu0 %v2295, 113
  %v2341 = vpop.permute.xlu0 %2340
  %v2342 = vsel %vm362, %v2339, %v2341
  %v2343 = vsel %vm362, %v2341, %v2339
  %v2344 = vmul.f32 %v2342, %v367
  %v2345 = vmul.f32 %v2343, %v368
  %2346 = vrot.lane.b32.xlu0 %v2269, 112
  %v2347 = vpop.permute.xlu0 %2346
  %2348 = vrot.lane.b32.xlu0 %v2295, 112
  %v2349 = vpop.permute.xlu0 %2348
  %v2350 = vsel %vm381, %v2347, %v2349
  %v2351 = vsel %vm381, %v2349, %v2347
  %v2352 = vmul.f32 %v2350, %v386
  %v2353 = vmul.f32 %v2351, %v387
  %2354 = vrot.lane.b32.xlu0 %v2269, 111
  %v2355 = vpop.permute.xlu0 %2354
  %2356 = vrot.lane.b32.xlu0 %v2295, 111
  %v2357 = vpop.permute.xlu0 %2356
  %v2358 = vsel %vm400, %v2355, %v2357
  %v2359 = vsel %vm400, %v2357, %v2355
  %v2360 = vmul.f32 %v2358, %v405
  %v2361 = vmul.f32 %v2359, %v406
  %v2362 = vpack.c.bf16 %v2312, %v2304
  %v2363 = vpack.c.bf16 %v2313, %v2305
  %v2364 = vpack.c.bf16 %v2328, %v2320
  %v2365 = vpack.c.bf16 %v2329, %v2321
  %v2366 = vpack.c.bf16 %v2336, %v2269
  %v2367 = vpack.c.bf16 %v2337, %v2295
  %v2368 = vpack.c.bf16 %v2352, %v2344
  %v2369 = vpack.c.bf16 %v2353, %v2345
  %v2370 = vpack.c.bf16 %v2360, %v2360
  %v2371 = vpack.c.bf16 %v2361, %v2361
  %v2373 = vsel %vm222, %v2370, 0
  %v2376 = vsel %vm222, %v2371, 0
  %2378 = vmatpush.bf16.msra.mxu0 0
  %2379 = vmatpush.bf16.msra.mxu0 0
  %2380 = vmatpush.bf16.msra.mxu0 0
  %2381 = vmatpush.bf16.msra.mxu0 %v2373
  %2382 = vmatpush.bf16.msra.mxu0 %v2368
  %2383 = vmatpush.bf16.msra.mxu0 %v2366
  %2384 = vmatpush.bf16.msra.mxu0 %v2364
  %2385 = vmatpush.bf16.msra.mxu0 %v2362
  %2386 = vmatmul.bf16.gmra.mxu0 %v1358
  %v2387 = vpop.f32.mrf.mxu0
  %v2388 = vadd.f32 %v1355, %v2387
  %v2389 = vpop.f32.mrf.mxu0
  %2390 = vdwg.mxu0
  %2391 = vmatpush.bf16.msra.mxu0 0
  %2392 = vmatpush.bf16.msra.mxu0 0
  %2393 = vmatpush.bf16.msra.mxu0 0
  %2394 = vmatpush.bf16.msra.mxu0 %v2376
  %2395 = vmatpush.bf16.msra.mxu0 %v2369
  %2396 = vmatpush.bf16.msra.mxu0 %v2367
  %2397 = vmatpush.bf16.msra.mxu0 %v2365
  %2398 = vmatpush.bf16.msra.mxu0 %v2363
  %2399 = vmatmul.bf16.gmra.mxu0 %v1358
  %v2400 = vpop.f32.mrf.mxu0
  %v2401 = vadd.f32 %v1355, %v2400
  %v2402 = vpop.f32.mrf.mxu0
  %2403 = vdwg.mxu0
  %v2404 = vpack.c.bf16 %v2388, %v1376
  %v2405 = vpack.c.bf16 %v2401, %v1389
  %v2406 = vld [vmem:[%s7] sm:$0xff]
  %v2407 = vld [vmem:[%s7 + $0x8] sm:$0xff]
  %v2408 = vld [vmem:[%s7 + $0x10] sm:$0xff]
  %v2409 = vld [vmem:[%s7 + $0x18] sm:$0xff]
  %v2410 = vld [vmem:[%s7 + $0x20] sm:$0xff]
  %v2411 = vld [vmem:[%s7 + $0x28] sm:$0xff]
  %v2412 = vld [vmem:[%s7 + $0x30] sm:$0xff]
  %v2413 = vld [vmem:[%s7 + $0x38] sm:$0xff]
  %v2414 = vld [vmem:[%s7 + $0x40] sm:$0xff]
  %v2415 = vld [vmem:[%s7 + $0x48] sm:$0xff]
  %v2416 = vld [vmem:[%s7 + $0x50] sm:$0xff]
  %v2417 = vld [vmem:[%s7 + $0x58] sm:$0xff]
  %v2418 = vld [vmem:[%s7 + $0x60] sm:$0xff]
  %v2419 = vld [vmem:[%s7 + $0x68] sm:$0xff]
  %v2420 = vld [vmem:[%s7 + $0x70] sm:$0xff]
  %v2421 = vld [vmem:[%s7 + $0x78] sm:$0xff]
  %v2422 = vld [vmem:[%s7 + $0x80] sm:$0xff]
  %v2423 = vld [vmem:[%s7 + $0x88] sm:$0xff]
  %v2424 = vld [vmem:[%s7 + $0x90] sm:$0xff]
  %v2425 = vld [vmem:[%s7 + $0x98] sm:$0xff]
  %v2426 = vld [vmem:[%s7 + $0xa0] sm:$0xff]
  %v2427 = vld [vmem:[%s7 + $0xa8] sm:$0xff]
  %v2428 = vld [vmem:[%s7 + $0xb0] sm:$0xff]
  %v2429 = vld [vmem:[%s7 + $0xb8] sm:$0xff]
  %v2430 = vld [vmem:[%s7 + $0xc0] sm:$0xff]
  %v2431 = vld [vmem:[%s7 + $0xc8] sm:$0xff]
  %v2432 = vld [vmem:[%s7 + $0xd0] sm:$0xff]
  %v2433 = vld [vmem:[%s7 + $0xd8] sm:$0xff]
  %v2434 = vld [vmem:[%s7 + $0xe0] sm:$0xff]
  %v2435 = vld [vmem:[%s7 + $0xe8] sm:$0xff]
  %v2436 = vld [vmem:[%s7 + $0xf0] sm:$0xff]
  %v2437 = vld [vmem:[%s7 + $0xf8] sm:$0xff]
  %v2470 = vunpack.c.l.b16 %v2406
  %v2471 = vunpack.c.h.b16 %v2406
  %v2472 = vunpack.c.l.b16 %v2407
  %v2473 = vunpack.c.h.b16 %v2407
  %v2474 = vunpack.c.l.b16 %v2408
  %v2475 = vunpack.c.h.b16 %v2408
  %v2476 = vunpack.c.l.b16 %v2409
  %v2477 = vunpack.c.h.b16 %v2409
  %v2478 = vunpack.c.l.b16 %v2410
  %v2479 = vunpack.c.h.b16 %v2410
  %v2480 = vunpack.c.l.b16 %v2411
  %v2481 = vunpack.c.h.b16 %v2411
  %v2482 = vunpack.c.l.b16 %v2412
  %v2483 = vunpack.c.h.b16 %v2412
  %v2484 = vunpack.c.l.b16 %v2413
  %v2485 = vunpack.c.h.b16 %v2413
  %v2486 = vunpack.c.l.b16 %v2414
  %v2487 = vunpack.c.h.b16 %v2414
  %v2488 = vunpack.c.l.b16 %v2415
  %v2489 = vunpack.c.h.b16 %v2415
  %v2490 = vunpack.c.l.b16 %v2416
  %v2491 = vunpack.c.h.b16 %v2416
  %v2492 = vunpack.c.l.b16 %v2417
  %v2493 = vunpack.c.h.b16 %v2417
  %v2494 = vunpack.c.l.b16 %v2418
  %v2495 = vunpack.c.h.b16 %v2418
  %v2496 = vunpack.c.l.b16 %v2419
  %v2497 = vunpack.c.h.b16 %v2419
  %v2498 = vunpack.c.l.b16 %v2420
  %v2499 = vunpack.c.h.b16 %v2420
  %v2500 = vunpack.c.l.b16 %v2421
  %v2501 = vunpack.c.h.b16 %v2421
  %v2502 = vunpack.c.l.b16 %v2422
  %v2503 = vunpack.c.h.b16 %v2422
  %v2504 = vunpack.c.l.b16 %v2423
  %v2505 = vunpack.c.h.b16 %v2423
  %v2506 = vunpack.c.l.b16 %v2424
  %v2507 = vunpack.c.h.b16 %v2424
  %v2508 = vunpack.c.l.b16 %v2425
  %v2509 = vunpack.c.h.b16 %v2425
  %v2510 = vunpack.c.l.b16 %v2426
  %v2511 = vunpack.c.h.b16 %v2426
  %v2512 = vunpack.c.l.b16 %v2427
  %v2513 = vunpack.c.h.b16 %v2427
  %v2514 = vunpack.c.l.b16 %v2428
  %v2515 = vunpack.c.h.b16 %v2428
  %v2516 = vunpack.c.l.b16 %v2429
  %v2517 = vunpack.c.h.b16 %v2429
  %v2518 = vunpack.c.l.b16 %v2430
  %v2519 = vunpack.c.h.b16 %v2430
  %v2520 = vunpack.c.l.b16 %v2431
  %v2521 = vunpack.c.h.b16 %v2431
  %v2522 = vunpack.c.l.b16 %v2432
  %v2523 = vunpack.c.h.b16 %v2432
  %v2524 = vunpack.c.l.b16 %v2433
  %v2525 = vunpack.c.h.b16 %v2433
  %v2526 = vunpack.c.l.b16 %v2434
  %v2527 = vunpack.c.h.b16 %v2434
  %v2528 = vunpack.c.l.b16 %v2435
  %v2529 = vunpack.c.h.b16 %v2435
  %v2530 = vunpack.c.l.b16 %v2436
  %v2531 = vunpack.c.h.b16 %v2436
  %v2532 = vunpack.c.l.b16 %v2437
  %v2533 = vunpack.c.h.b16 %v2437
  %v2534 = vpack.c.b16 %v2472, %v2470
  %v2535 = vpack.c.b16 %v2473, %v2471
  %v2536 = vpack.c.b16 %v2476, %v2474
  %v2537 = vpack.c.b16 %v2477, %v2475
  %v2538 = vpack.c.b16 %v2480, %v2478
  %v2539 = vpack.c.b16 %v2481, %v2479
  %v2540 = vpack.c.b16 %v2484, %v2482
  %v2541 = vpack.c.b16 %v2485, %v2483
  %v2542 = vpack.c.b16 %v2488, %v2486
  %v2543 = vpack.c.b16 %v2489, %v2487
  %v2544 = vpack.c.b16 %v2492, %v2490
  %v2545 = vpack.c.b16 %v2493, %v2491
  %v2546 = vpack.c.b16 %v2496, %v2494
  %v2547 = vpack.c.b16 %v2497, %v2495
  %v2548 = vpack.c.b16 %v2500, %v2498
  %v2549 = vpack.c.b16 %v2501, %v2499
  %v2550 = vpack.c.b16 %v2504, %v2502
  %v2551 = vpack.c.b16 %v2505, %v2503
  %v2552 = vpack.c.b16 %v2508, %v2506
  %v2553 = vpack.c.b16 %v2509, %v2507
  %v2554 = vpack.c.b16 %v2512, %v2510
  %v2555 = vpack.c.b16 %v2513, %v2511
  %v2556 = vpack.c.b16 %v2516, %v2514
  %v2557 = vpack.c.b16 %v2517, %v2515
  %v2558 = vpack.c.b16 %v2520, %v2518
  %v2559 = vpack.c.b16 %v2521, %v2519
  %v2560 = vpack.c.b16 %v2524, %v2522
  %v2561 = vpack.c.b16 %v2525, %v2523
  %v2562 = vpack.c.b16 %v2528, %v2526
  %v2563 = vpack.c.b16 %v2529, %v2527
  %v2564 = vpack.c.b16 %v2532, %v2530
  %v2565 = vpack.c.b16 %v2533, %v2531
  %2598 = vmatpush.bf16.msra.mxu0 %v2548
  %2599 = vmatpush.bf16.msra.mxu0 %v2546
  %2600 = vmatpush.bf16.msra.mxu0 %v2544
  %2601 = vmatpush.bf16.msra.mxu0 %v2542
  %2602 = vmatpush.bf16.msra.mxu0 %v2540
  %2603 = vmatpush.bf16.msra.mxu0 %v2538
  %2604 = vmatpush.bf16.msra.mxu0 %v2536
  %2605 = vmatpush.bf16.msra.mxu0 %v2534
  %2606 = vmatmul.bf16.gmra.mxu0 %v2404
  %v2607 = vpop.f32.mrf.mxu0
  %v2608 = vadd.f32 0.0, %v2607
  %v2609 = vpop.f32.mrf.mxu0
  %v2610 = vadd.f32 0.0, %v2609
  %2611 = vdwg.mxu0
  %2612 = vmatpush.bf16.msra.mxu0 %v2564
  %2613 = vmatpush.bf16.msra.mxu0 %v2562
  %2614 = vmatpush.bf16.msra.mxu0 %v2560
  %2615 = vmatpush.bf16.msra.mxu0 %v2558
  %2616 = vmatpush.bf16.msra.mxu0 %v2556
  %2617 = vmatpush.bf16.msra.mxu0 %v2554
  %2618 = vmatpush.bf16.msra.mxu0 %v2552
  %2619 = vmatpush.bf16.msra.mxu0 %v2550
  %2620 = vmatmul.bf16.gmra.mxu0 %v2405
  %v2621 = vpop.f32.mrf.mxu0
  %v2622 = vadd.f32 %v2608, %v2621
  %v2623 = vpop.f32.mrf.mxu0
  %v2624 = vadd.f32 %v2610, %v2623
  %2625 = vdwg.mxu0
  %2626 = vmatpush.bf16.msra.mxu0 %v2549
  %2627 = vmatpush.bf16.msra.mxu0 %v2547
  %2628 = vmatpush.bf16.msra.mxu0 %v2545
  %2629 = vmatpush.bf16.msra.mxu0 %v2543
  %2630 = vmatpush.bf16.msra.mxu0 %v2541
  %2631 = vmatpush.bf16.msra.mxu0 %v2539
  %2632 = vmatpush.bf16.msra.mxu0 %v2537
  %2633 = vmatpush.bf16.msra.mxu0 %v2535
  %2634 = vmatmul.bf16.gmra.mxu0 %v2404
  %v2635 = vpop.f32.mrf.mxu0
  %v2636 = vadd.f32 0.0, %v2635
  %v2637 = vpop.f32.mrf.mxu0
  %v2638 = vadd.f32 0.0, %v2637
  %2639 = vdwg.mxu0
  %2640 = vmatpush.bf16.msra.mxu0 %v2565
  %2641 = vmatpush.bf16.msra.mxu0 %v2563
  %2642 = vmatpush.bf16.msra.mxu0 %v2561
  %2643 = vmatpush.bf16.msra.mxu0 %v2559
  %2644 = vmatpush.bf16.msra.mxu0 %v2557
  %2645 = vmatpush.bf16.msra.mxu0 %v2555
  %2646 = vmatpush.bf16.msra.mxu0 %v2553
  %2647 = vmatpush.bf16.msra.mxu0 %v2551
  %2648 = vmatmul.bf16.gmra.mxu0 %v2405
  %v2649 = vpop.f32.mrf.mxu0
  %v2650 = vadd.f32 %v2636, %v2649
  %v2651 = vpop.f32.mrf.mxu0
  %v2652 = vadd.f32 %v2638, %v2651
  %2653 = vdwg.mxu0
  %2654 = vst [vmem:[%s21] sm:$0xff] %v2622
  %2655 = vst [vmem:[%s21 + $0x8] sm:$0xff] %v2650
  %2656 = vst [vmem:[%s21 + $0x10] sm:$0xff] %v2624
  %2657 = vst [vmem:[%s21 + $0x18] sm:$0xff] %v2652
  // Predicated region
  $region86: #{simple_decoder_forward.1} parent=0 // pred_check
    _
  $region87: #{simple_decoder_forward.1} parent=0 // pred_check_branch
    %2659 = sbr.rel (0) target = $region89
  $region88: #{simple_decoder_forward.1} parent=0 // pred_region
    _
  $region89: #{simple_decoder_forward.1} parent=0 // pred_fallthru
    _
  // Predicated region
  $region90: #{simple_decoder_forward.1} parent=0 // pred_check
    _
  $region91: #{simple_decoder_forward.1} parent=0 // pred_check_branch
    %2661 = sbr.rel (0) target = $region93
  $region92: #{simple_decoder_forward.1} parent=0 // pred_region
    _
  $region93: #{simple_decoder_forward.1} parent=0 // pred_fallthru
    _

</llo_original>
